<compile_context>
chip_gen: v7x
topology: tpu7x:2x2x1
jax: 0.10.0
libtpu: 0.0.40
codegen_flags: <defaults>
</compile_context>

<pallas_src>
import functools
import math
from typing import NamedTuple

import jax
import jax.numpy as jnp
from jax import lax
from jax.experimental import pallas as pl
from jax.experimental.pallas import tpu as pltpu

_VMEM = pl.BlockSpec(memory_space=pltpu.MemorySpace.VMEM)


def _rup(x, m):
    return -(-x // m) * m


def _uniform(key, shape, scale):
    return jax.random.uniform(key, shape, jnp.float32, -scale, scale)


class _Cfg(NamedTuple):
    b_hidden: int
    s_hidden: int


# ----------------------------------------------------------------------------
# Fused kernel: pipelined b/s stacks + head (linear, 1-step LSTM, fc, sigmoid)
# ----------------------------------------------------------------------------
def _fused_forward_kernel(BH, SH, bx_ref, sx_ref, rec_ref, head_ref, hc0_ref,
                          out_ref, xb_scr, xs_scr):
    f32 = jnp.float32
    b_seq, BEP = bx_ref.shape
    s_seq, SEP = sx_ref.shape
    G4 = rec_ref.shape[1]
    C = G4 // 4                      # fused state width = 2*BH + 2*SH
    H = hc0_ref.shape[1]
    W_HEAD = head_ref.shape[1]

    # Static row offsets inside the two weight slabs (all 8-aligned by packing).
    r_bias = BEP + SEP
    r_big = r_bias + 8
    CP, HP = _rup(C, 8), _rup(H, 8)
    r_lin, r_blin = 0, CP
    r_wihf = CP + 8
    r_whhf = r_wihf + W_HEAD
    r_bf = r_whhf + HP
    r_fc = r_bf + 8

    def dot(a, b):
        return jnp.dot(a, b, preferred_element_type=f32)

    # ---- hoisted constants (JAX does not CSE iota/broadcast; build once). ----
    lane4c = lax.broadcasted_iota(jnp.int32, (1, G4), 1)
    g_rec = (lane4c >= 2 * C) & (lane4c < 3 * C)
    scale_rec = jnp.where(g_rec, 1.0, 0.5).astype(f32)
    off_rec = jnp.where(g_rec, 0.0, 0.5).astype(f32)
    lane_h = lax.broadcasted_iota(jnp.int32, (1, W_HEAD), 1)
    g_head = (lane_h >= 2 * H) & (lane_h < 3 * H)
    scale_head = jnp.where(g_head, 1.0, 0.5).astype(f32)
    off_head = jnp.where(g_head, 0.0, 0.5).astype(f32)
    lane_c = lax.broadcasted_iota(jnp.int32, (1, C), 1)

    mask_cache = {}

    def cell_mask(ab0, ab1, as0, as1):
        key = (ab0, ab1, as0, as1)
        if key not in mask_cache:
            conds = []
            if ab0:
                conds.append(lane_c < BH)
            if ab1:
                conds.append((lane_c >= BH) & (lane_c < 2 * BH))
            if as0:
                conds.append((lane_c >= 2 * BH) & (lane_c < 2 * BH + SH))
            if as1:
                conds.append(lane_c >= 2 * BH + SH)
            m = conds[0]
            for c in conds[1:]:
                m = m | c
            mask_cache[key] = m
        return mask_cache[key]

    def activate(gates, scale, off):
        # i/f/o weight columns were pre-scaled by 0.5 at init, so a single tanh
        # plus a masked affine gives sigmoid on i/f/o lanes and tanh on g lanes.
        a = jnp.tanh(gates)
        return a * scale + off

    # ---- hoisted layer-0 input projections: one GEMM per stack into lane-dense
    #      (seq, 4C) VMEM scratch (b0/s0 gate columns populated, rest zero). ----
    xb_scr[...] = dot(bx_ref[...], rec_ref[0:BEP, :])
    xs_scr[...] = dot(sx_ref[...], rec_ref[BEP:BEP + SEP, :])
    bias_row = rec_ref[r_bias:r_bias + 1, :]

    # ---- pipelined recurrence over the 4 fused cells (b0, b1, s0, s1). ----
    h_state = jnp.zeros((1, C), f32)
    c_state = jnp.zeros((1, C), f32)
    T = max(b_seq, s_seq)
    for t in range(T + 1):
        ab0, ab1 = t < b_seq, 1 <= t <= b_seq
        as0, as1 = t < s_seq, 1 <= t <= s_seq
        if not (ab0 or ab1 or as0 or as1):
            continue
        if t == 0:
            gates = bias_row                      # h_state == 0: skip the matmul
        else:
            gates = dot(h_state, rec_ref[r_big:r_big + C, :]) + bias_row
        if ab0:
            gates = gates + xb_scr[t:t + 1, :]
        if as0:
            gates = gates + xs_scr[t:t + 1, :]
        act = activate(gates, scale_rec, off_rec)
        i_g, f_g = act[:, 0:C], act[:, C:2 * C]
        g_g, o_g = act[:, 2 * C:3 * C], act[:, 3 * C:4 * C]
        c_new = f_g * c_state + i_g * g_g
        h_new = o_g * jnp.tanh(c_new)
        if ab0 and ab1 and as0 and as1:
            h_state, c_state = h_new, c_new
        else:
            m = cell_mask(ab0, ab1, as0, as1)     # only first / last steps
            h_state = jnp.where(m, h_new, h_state)
            c_state = jnp.where(m, c_new, c_state)

    # ---- head: Linear(concat) + single-step LSTM + fc_1 + sigmoid. ----
    # TODO(synk): nn.Dropout(p=0.3) and the inter-layer LSTM dropout=0.5 are
    # train-mode stochastic ops; eval-mode identity here.
    h0 = hc0_ref[0:1, :]
    c0 = hc0_ref[1:2, :]
    inp_row = dot(h_state, head_ref[r_lin:r_lin + C, :]) + head_ref[r_blin:r_blin + 1, :]
    gates_f = (dot(inp_row, head_ref[r_wihf:r_wihf + W_HEAD, :])
               + dot(h0, head_ref[r_whhf:r_whhf + H, :])
               + head_ref[r_bf:r_bf + 1, :])
    act = activate(gates_f, scale_head, off_head)
    i_g, f_g = act[:, 0:H], act[:, H:2 * H]
    g_g, o_g = act[:, 2 * H:3 * H], act[:, 3 * H:4 * H]
    c_o = f_g * c0 + i_g * g_g
    h_o = o_g * jnp.tanh(c_o)
    fc_row = head_ref[r_fc:r_fc + 1, :]
    logit = (jnp.sum(h_o * fc_row[:, 0:H], axis=-1, keepdims=True)
             + fc_row[:, W_HEAD - 1:W_HEAD])
    pred = jax.nn.sigmoid(logit)

    # One lane-dense (1, out_w) output row: [h_o | c_o | pred broadcast].
    pad = out_ref.shape[1] - 2 * H
    out_ref[...] = jnp.concatenate(
        [h_o, c_o, jnp.broadcast_to(pred, (1, pad))], axis=1)


# ----------------------------------------------------------------------------
# Jitted wrapper (one dispatch per forward; weights stay device-resident)
# ----------------------------------------------------------------------------
def _forward_impl(cfg, params, b_inp, s_inp, h0, c0):
    # TODO(synk): embedding lookup kept as a (tiny) XLA gather outside the kernel;
    # fusing it would need scalar-prefetch indices + manual row DMAs.
    bx = params["b_emb"][b_inp]                  # (b_seq, BEP)
    sx = params["s_emb"][s_inp]                  # (s_seq, SEP)
    hc0 = jnp.concatenate([h0, c0], axis=0)      # (2, H)
    H = h0.shape[1]
    G4 = params["rec_slab"].shape[1]
    b_seq, s_seq = bx.shape[0], sx.shape[0]
    out_w = _rup(2 * H + 1, 128)
    kernel = functools.partial(_fused_forward_kernel, cfg.b_hidden, cfg.s_hidden)
    out = pl.pallas_call(
        kernel,
        out_shape=jax.ShapeDtypeStruct((1, out_w), jnp.float32),
        in_specs=[_VMEM] * 5,
        out_specs=_VMEM,
        scratch_shapes=[
            pltpu.VMEM((b_seq, G4), jnp.float32),   # hoisted b-stack projections
            pltpu.VMEM((s_seq, G4), jnp.float32),   # hoisted s-stack projections
        ],
    )(bx, sx, params["rec_slab"], params["head_slab"], hc0)
    h_o = out[:, 0:H]
    c_o = out[:, H:2 * H]
    pred = out[:, 2 * H:2 * H + 1]
    return pred, h_o, c_o


_forward_jit = jax.jit(_forward_impl, static_argnums=0)


class LSTMsPallas:
    """JAX/Pallas port of the PyTorch `LSTMs` module (forward pass, eval mode)."""

    B_EMB = 100
    S_EMB = 40

    def __init__(self, b_dict_size, s_dict_size, b_hidden_size, s_hidden_size,
                 inp_size, hidden_size, key):
        BH, SH, H = b_hidden_size, s_hidden_size, hidden_size
        self.b_hidden, self.s_hidden = BH, SH
        self.inp_size, self.hidden = inp_size, H
        C = 2 * (BH + SH)
        G4 = 4 * C
        BEP = _rup(self.B_EMB, 8)
        SEP = _rup(self.S_EMB, 8)

        keys = iter(jax.random.split(key, 32))

        def nxt():
            return next(keys)

        def lstm_params(in_size, Hn):
            k = 1.0 / math.sqrt(Hn)
            w_ih = _uniform(nxt(), (in_size, 4 * Hn), k)
            w_hh = _uniform(nxt(), (Hn, 4 * Hn), k)
            bias = _uniform(nxt(), (1, 4 * Hn), k) + _uniform(nxt(), (1, 4 * Hn), k)
            return w_ih, w_hh, bias

        # -------- raw (un-packed) parameters; also used by the JAX reference.
        raw = {}
        raw["b_emb"] = jax.random.normal(nxt(), (b_dict_size, self.B_EMB), jnp.float32)
        raw["s_emb"] = jax.random.normal(nxt(), (s_dict_size, self.S_EMB), jnp.float32)
        raw["wih_b0"], raw["whh_b0"], raw["b_b0"] = lstm_params(self.B_EMB, BH)
        raw["wih_b1"], raw["whh_b1"], raw["b_b1"] = lstm_params(BH, BH)
        raw["wih_s0"], raw["whh_s0"], raw["b_s0"] = lstm_params(self.S_EMB, SH)
        raw["wih_s1"], raw["whh_s1"], raw["b_s1"] = lstm_params(SH, SH)
        kl = 1.0 / math.sqrt(BH + SH)
        raw["w_lin_b"] = _uniform(nxt(), (BH, inp_size), kl)
        raw["w_lin_s"] = _uniform(nxt(), (SH, inp_size), kl)
        raw["b_lin"] = _uniform(nxt(), (1, inp_size), kl)
        raw["wih_f"], raw["whh_f"], raw["b_f"] = lstm_params(inp_size, H)
        kf = 1.0 / math.sqrt(H)
        raw["w_fc"] = _uniform(nxt(), (1, H), kf)
        raw["b_fc"] = _uniform(nxt(), (1, 1), kf)
        self.raw = raw

        # -------- kernel-side packed parameters (two slabs, gate-major layout).
        offs = {"b0": 0, "b1": BH, "s0": 2 * BH, "s1": 2 * BH + SH}
        hsz = {"b0": BH, "b1": BH, "s0": SH, "s1": SH}

        def place(w, cell):
            """(rows, 4*Hc) torch-order gates -> (rows, G4) gate-major placed,
            with i/f/o columns pre-scaled by 0.5 (single-tanh activation)."""
            o, hc = offs[cell], hsz[cell]
            out = jnp.zeros((w.shape[0], G4), jnp.float32)
            for j in range(4):
                blk = w[:, j * hc:(j + 1) * hc]
                if j != 2:
                    blk = blk * 0.5
                out = out.at[:, j * C + o:j * C + o + hc].set(blk)
            return out

        rec = jnp.zeros((BEP + SEP + 8 + C, G4), jnp.float32)
        rec = rec.at[0:self.B_EMB, :].set(place(raw["wih_b0"], "b0"))
        rec = rec.at[BEP:BEP + self.S_EMB, :].set(place(raw["wih_s0"], "s0"))
        bias_row = (place(raw["b_b0"], "b0") + place(raw["b_b1"], "b1")
                    + place(raw["b_s0"], "s0") + place(raw["b_s1"], "s1"))
        rec = rec.at[BEP + SEP:BEP + SEP + 1, :].set(bias_row)
        # Block-structured per-step recurrent matrix (whh on diagonal blocks,
        # layer-1 wih on off-diagonal blocks fed by the layer-0 state lanes).
        wbig = jnp.zeros((C, G4), jnp.float32)
        wbig = wbig.at[0:BH, :].set(place(raw["whh_b0"], "b0") + place(raw["wih_b1"], "b1"))
        wbig = wbig.at[BH:2 * BH, :].set(place(raw["whh_b1"], "b1"))
        wbig = wbig.at[2 * BH:2 * BH + SH, :].set(
            place(raw["whh_s0"], "s0") + place(raw["wih_s1"], "s1"))
        wbig = wbig.at[2 * BH + SH:C, :].set(place(raw["whh_s1"], "s1"))
        rec = rec.at[BEP + SEP + 8:, :].set(wbig)

        W_HEAD = _rup(max(4 * H, inp_size), 128)
        CP, HP = _rup(C, 8), _rup(H, 8)
        r_blin = CP
        r_wihf = CP + 8
        r_whhf = r_wihf + W_HEAD
        r_bf = r_whhf + HP
        r_fc = r_bf + 8

        def scale_ifo(w):
            return jnp.concatenate(
                [w[:, :2 * H] * 0.5, w[:, 2 * H:3 * H], w[:, 3 * H:4 * H] * 0.5],
                axis=1)

        head = jnp.zeros((r_fc + 8, W_HEAD), jnp.float32)
        head = head.at[offs["b1"]:offs["b1"] + BH, 0:inp_size].set(raw["w_lin_b"])
        head = head.at[offs["s1"]:offs["s1"] + SH, 0:inp_size].set(raw["w_lin_s"])
        head = head.at[r_blin:r_blin + 1, 0:inp_size].set(raw["b_lin"])
        head = head.at[r_wihf:r_wihf + inp_size, 0:4 * H].set(scale_ifo(raw["wih_f"]))
        head = head.at[r_whhf:r_whhf + H, 0:4 * H].set(scale_ifo(raw["whh_f"]))
        head = head.at[r_bf:r_bf + 1, 0:4 * H].set(scale_ifo(raw["b_f"]))
        head = head.at[r_fc, 0:H].set(raw["w_fc"][0])
        head = head.at[r_fc, W_HEAD - 1].set(raw["b_fc"][0, 0])

        self.params = {
            "b_emb": jnp.pad(raw["b_emb"], ((0, 0), (0, BEP - self.B_EMB))),
            "s_emb": jnp.pad(raw["s_emb"], ((0, 0), (0, SEP - self.S_EMB))),
            "rec_slab": rec,
            "head_slab": head,
        }
        self._cfg = _Cfg(b_hidden=BH, s_hidden=SH)

        # Stateful recurrent cache (mirrors self.id / self.h / self.c in torch).
        self.id = None
        self.h = jnp.zeros((1, H), jnp.float32)
        self.c = jnp.zeros((1, H), jnp.float32)

    def forward(self, b_inp, s_inp, idv):
        # TODO(synk): host-side python `id` branch kept outside jit, like torch.
        if idv == self.id:
            h0, c0 = self.h, self.c
        else:
            h0 = jnp.zeros((1, self.hidden), jnp.float32)
            c0 = jnp.zeros((1, self.hidden), jnp.float32)
        pred, h_o, c_o = _forward_jit(self._cfg, self.params, b_inp, s_inp, h0, c0)
        self.id = idv
        self.h, self.c = h_o, c_o
        return pred[0]          # shape (1,), == torch `pred.squeeze(0)`


# ----------------------------------------------------------------------------
# Pure-JAX reference (correctness sanity check; uses the raw/unpacked params)
# ----------------------------------------------------------------------------
def _ref_forward(raw, b_inp, s_inp, h0, c0, BH, SH, H):
    def lstm_ref(x, w_ih, w_hh, b, Hn):
        def step(carry, x_t):
            h, c = carry
            g = x_t @ w_ih + h @ w_hh + b
            i = jax.nn.sigmoid(g[:, :Hn])
            f = jax.nn.sigmoid(g[:, Hn:2 * Hn])
            gg = jnp.tanh(g[:, 2 * Hn:3 * Hn])
            o = jax.nn.sigmoid(g[:, 3 * Hn:])
            c = f * c + i * gg
            h = o * jnp.tanh(c)
            return (h, c), h
        z = jnp.zeros((1, Hn), jnp.float32)
        (h, _), ys = lax.scan(step, (z, z), x)
        return ys, h

    b = raw["b_emb"][b_inp][:, None, :]
    s = raw["s_emb"][s_inp][:, None, :]
    yb, _ = lstm_ref(b, raw["wih_b0"], raw["whh_b0"], raw["b_b0"], BH)
    _, b_h = lstm_ref(yb, raw["wih_b1"], raw["whh_b1"], raw["b_b1"], BH)
    ys_, _ = lstm_ref(s, raw["wih_s0"], raw["whh_s0"], raw["b_s0"], SH)
    _, s_h = lstm_ref(ys_, raw["wih_s1"], raw["whh_s1"], raw["b_s1"], SH)

    inp = b_h @ raw["w_lin_b"] + s_h @ raw["w_lin_s"] + raw["b_lin"]
    g = inp @ raw["wih_f"] + h0 @ raw["whh_f"] + raw["b_f"]
    i = jax.nn.sigmoid(g[:, :H])
    f = jax.nn.sigmoid(g[:, H:2 * H])
    gg = jnp.tanh(g[:, 2 * H:3 * H])
    o = jax.nn.sigmoid(g[:, 3 * H:])
    c = f * c0 + i * gg
    h = o * jnp.tanh(c)
    pred = jax.nn.sigmoid(
        jnp.sum(h * raw["w_fc"], axis=-1, keepdims=True) + raw["b_fc"])
    return pred[0], h, c


if __name__ == "__main__":
    key = jax.random.PRNGKey(0)
    k_model, k_b, k_s = jax.random.split(key, 3)

    b_dict_size, s_dict_size = 50, 30
    b_hidden = s_hidden = 32
    inp_size = 32
    hidden_size = 32
    b_seq = s_seq = 8

    model = LSTMsPallas(b_dict_size, s_dict_size, b_hidden, s_hidden,
                        inp_size, hidden_size, k_model)

    b_inp = jax.random.randint(k_b, (b_seq,), 0, b_dict_size)
    s_inp = jax.random.randint(k_s, (s_seq,), 0, s_dict_size)

    # Call 1: new id -> zero-initialised recurrent state.
    pred1 = jax.block_until_ready(model.forward(b_inp, s_inp, idv=7))
    assert pred1.shape == (1,), pred1.shape
    z = jnp.zeros((1, hidden_size), jnp.float32)
    ref1, ref_h, ref_c = _ref_forward(model.raw, b_inp, s_inp, z, z,
                                      b_hidden, s_hidden, hidden_size)
    assert jnp.allclose(pred1, ref1, rtol=2e-3, atol=2e-3), (pred1, ref1)

    # Call 2: same id -> carried h/c state (exercises the stateful path).
    pred2 = jax.block_until_ready(model.forward(b_inp, s_inp, idv=7))
    ref2, _, _ = _ref_forward(model.raw, b_inp, s_inp, ref_h, ref_c,
                              b_hidden, s_hidden, hidden_size)
    assert jnp.allclose(pred2, ref2, rtol=2e-3, atol=2e-3), (pred2, ref2)

    print("KERNEL_OK")
</pallas_src>

<mosaic_0001>
module attributes {stable_mosaic.version = 11 : i64} {
  func.func @_fused_forward_kernel(%arg0: memref<8x104xf32, #tpu.memory_space<vmem>>, %arg1: memref<8x40xf32, #tpu.memory_space<vmem>>, %arg2: memref<280x512xf32, #tpu.memory_space<vmem>>, %arg3: memref<312x128xf32, #tpu.memory_space<vmem>>, %arg4: memref<2x32xf32, #tpu.memory_space<vmem>>, %arg5: memref<1x128xf32, #tpu.memory_space<vmem>>, %arg6: memref<8x512xf32, #tpu.memory_space<vmem>>, %arg7: memref<8x512xf32, #tpu.memory_space<vmem>>) attributes {dimension_semantics = [], scalar_prefetch = 0 : i64, scratch_operands = 2 : i64, tpu.core_type = #tpu.core_type<tc>} {
    %0 = tpu.iota {dimensions = array<i32: 1>} : vector<1x512xi32>
    %c256_i32 = arith.constant 256 : i32
    %1 = vector.broadcast %c256_i32 : i32 to vector<1x512xi32>
    %2 = arith.cmpi sge, %0, %1 : vector<1x512xi32>
    %c384_i32 = arith.constant 384 : i32
    %3 = vector.broadcast %c384_i32 : i32 to vector<1x512xi32>
    %4 = arith.cmpi slt, %0, %3 : vector<1x512xi32>
    %5 = arith.andi %2, %4 : vector<1x512xi1>
    %cst = arith.constant 1.000000e+00 : f32
    %cst_0 = arith.constant 5.000000e-01 : f32
    %6 = vector.broadcast %cst : f32 to vector<1x512xf32>
    %7 = vector.broadcast %cst_0 : f32 to vector<1x512xf32>
    %8 = arith.select %5, %6, %7 : vector<1x512xi1>, vector<1x512xf32>
    %cst_1 = arith.constant 0.000000e+00 : f32
    %cst_2 = arith.constant 5.000000e-01 : f32
    %9 = vector.broadcast %cst_1 : f32 to vector<1x512xf32>
    %10 = vector.broadcast %cst_2 : f32 to vector<1x512xf32>
    %11 = arith.select %5, %9, %10 : vector<1x512xi1>, vector<1x512xf32>
    %12 = tpu.iota {dimensions = array<i32: 1>} : vector<1x128xi32>
    %c64_i32 = arith.constant 64 : i32
    %13 = vector.broadcast %c64_i32 : i32 to vector<1x128xi32>
    %14 = arith.cmpi sge, %12, %13 : vector<1x128xi32>
    %c96_i32 = arith.constant 96 : i32
    %15 = vector.broadcast %c96_i32 : i32 to vector<1x128xi32>
    %16 = arith.cmpi slt, %12, %15 : vector<1x128xi32>
    %17 = arith.andi %14, %16 : vector<1x128xi1>
    %cst_3 = arith.constant 1.000000e+00 : f32
    %cst_4 = arith.constant 5.000000e-01 : f32
    %18 = vector.broadcast %cst_3 : f32 to vector<1x128xf32>
    %19 = vector.broadcast %cst_4 : f32 to vector<1x128xf32>
    %20 = arith.select %17, %18, %19 : vector<1x128xi1>, vector<1x128xf32>
    %cst_5 = arith.constant 0.000000e+00 : f32
    %cst_6 = arith.constant 5.000000e-01 : f32
    %21 = vector.broadcast %cst_5 : f32 to vector<1x128xf32>
    %22 = vector.broadcast %cst_6 : f32 to vector<1x128xf32>
    %23 = arith.select %17, %21, %22 : vector<1x128xi1>, vector<1x128xf32>
    %24 = tpu.iota {dimensions = array<i32: 1>} : vector<1x128xi32>
    %c0 = arith.constant 0 : index
    %c0_7 = arith.constant 0 : index
    %25 = vector.load %arg0[%c0, %c0_7] : memref<8x104xf32, #tpu.memory_space<vmem>>, vector<8x104xf32>
    %c0_8 = arith.constant 0 : index
    %c0_9 = arith.constant 0 : index
    %26 = vector.load %arg2[%c0_8, %c0_9] : memref<280x512xf32, #tpu.memory_space<vmem>>, vector<104x512xf32>
    %cst_10 = arith.constant dense<0.000000e+00> : vector<8x512xf32>
    %27 = tpu.matmul %25, %26, %cst_10 {dimension_numbers = #tpu.dot_dimension_numbers<[1], [0], [0], [1], [0, 0, 1, 1], [], []>} : vector<8x104xf32>, vector<104x512xf32>, vector<8x512xf32> -> vector<8x512xf32>
    %c0_11 = arith.constant 0 : index
    %c0_12 = arith.constant 0 : index
    %28 = vector.load %arg6[%c0_11, %c0_12] : memref<8x512xf32, #tpu.memory_space<vmem>>, vector<8x512xf32>
    tpu.vector_store %arg6[%c0_11, %c0_12], %27 {strides = array<i32>} : memref<8x512xf32, #tpu.memory_space<vmem>>, vector<8x512xf32>,
    %c0_13 = arith.constant 0 : index
    %c0_14 = arith.constant 0 : index
    %29 = vector.load %arg1[%c0_13, %c0_14] : memref<8x40xf32, #tpu.memory_space<vmem>>, vector<8x40xf32>
    %c104 = arith.constant 104 : index
    %c0_15 = arith.constant 0 : index
    %30 = vector.load %arg2[%c104, %c0_15] : memref<280x512xf32, #tpu.memory_space<vmem>>, vector<40x512xf32>
    %cst_16 = arith.constant dense<0.000000e+00> : vector<8x512xf32>
    %31 = tpu.matmul %29, %30, %cst_16 {dimension_numbers = #tpu.dot_dimension_numbers<[1], [0], [0], [1], [0, 0, 1, 1], [], []>} : vector<8x40xf32>, vector<40x512xf32>, vector<8x512xf32> -> vector<8x512xf32>
    %c0_17 = arith.constant 0 : index
    %c0_18 = arith.constant 0 : index
    %32 = vector.load %arg7[%c0_17, %c0_18] : memref<8x512xf32, #tpu.memory_space<vmem>>, vector<8x512xf32>
    tpu.vector_store %arg7[%c0_17, %c0_18], %31 {strides = array<i32>} : memref<8x512xf32, #tpu.memory_space<vmem>>, vector<8x512xf32>,
    %c144 = arith.constant 144 : index
    %c0_19 = arith.constant 0 : index
    %33 = vector.load %arg2[%c144, %c0_19] : memref<280x512xf32, #tpu.memory_space<vmem>>, vector<1x512xf32>
    %cst_20 = arith.constant 0.000000e+00 : f32
    %34 = vector.broadcast %cst_20 : f32 to vector<1x128xf32>
    %cst_21 = arith.constant 0.000000e+00 : f32
    %35 = vector.broadcast %cst_21 : f32 to vector<1x128xf32>
    %c0_22 = arith.constant 0 : index
    %c0_23 = arith.constant 0 : index
    %36 = vector.load %arg6[%c0_22, %c0_23] : memref<8x512xf32, #tpu.memory_space<vmem>>, vector<1x512xf32>
    %37 = arith.addf %33, %36 : vector<1x512xf32>
    %c0_24 = arith.constant 0 : index
    %c0_25 = arith.constant 0 : index
    %38 = vector.load %arg7[%c0_24, %c0_25] : memref<8x512xf32, #tpu.memory_space<vmem>>, vector<1x512xf32>
    %39 = arith.addf %37, %38 : vector<1x512xf32>
    %40 = math.tanh %39 : vector<1x512xf32>
    %41 = arith.mulf %40, %8 : vector<1x512xf32>
    %42 = arith.addf %41, %11 : vector<1x512xf32>
    %43 = vector.extract_strided_slice %42 {offsets = [0, 0], sizes = [1, 128], strides = [1, 1]} : vector<1x512xf32> to vector<1x128xf32>
    %44 = vector.extract_strided_slice %42 {offsets = [0, 128], sizes = [1, 128], strides = [1, 1]} : vector<1x512xf32> to vector<1x128xf32>
    %45 = vector.extract_strided_slice %42 {offsets = [0, 256], sizes = [1, 128], strides = [1, 1]} : vector<1x512xf32> to vector<1x128xf32>
    %46 = vector.extract_strided_slice %42 {offsets = [0, 384], sizes = [1, 128], strides = [1, 1]} : vector<1x512xf32> to vector<1x128xf32>
    %47 = arith.mulf %44, %35 : vector<1x128xf32>
    %48 = arith.mulf %43, %45 : vector<1x128xf32>
    %49 = arith.addf %47, %48 : vector<1x128xf32>
    %50 = math.tanh %49 : vector<1x128xf32>
    %51 = arith.mulf %46, %50 : vector<1x128xf32>
    %c32_i32 = arith.constant 32 : i32
    %52 = vector.broadcast %c32_i32 : i32 to vector<1x128xi32>
    %53 = arith.cmpi slt, %24, %52 : vector<1x128xi32>
    %c64_i32_26 = arith.constant 64 : i32
    %54 = vector.broadcast %c64_i32_26 : i32 to vector<1x128xi32>
    %55 = arith.cmpi sge, %24, %54 : vector<1x128xi32>
    %c96_i32_27 = arith.constant 96 : i32
    %56 = vector.broadcast %c96_i32_27 : i32 to vector<1x128xi32>
    %57 = arith.cmpi slt, %24, %56 : vector<1x128xi32>
    %58 = arith.andi %55, %57 : vector<1x128xi1>
    %59 = arith.ori %53, %58 : vector<1x128xi1>
    %60 = arith.select %59, %51, %34 : vector<1x128xi1>, vector<1x128xf32>
    %61 = arith.select %59, %49, %35 : vector<1x128xi1>, vector<1x128xf32>
    %c152 = arith.constant 152 : index
    %c0_28 = arith.constant 0 : index
    %62 = vector.load %arg2[%c152, %c0_28] : memref<280x512xf32, #tpu.memory_space<vmem>>, vector<128x512xf32>
    %cst_29 = arith.constant dense<0.000000e+00> : vector<1x512xf32>
    %63 = tpu.matmul %60, %62, %cst_29 {dimension_numbers = #tpu.dot_dimension_numbers<[1], [0], [0], [1], [0, 0, 1, 1], [], []>} : vector<1x128xf32>, vector<128x512xf32>, vector<1x512xf32> -> vector<1x512xf32>
    %64 = arith.addf %63, %33 : vector<1x512xf32>
    %c1 = arith.constant 1 : index
    %c0_30 = arith.constant 0 : index
    %65 = vector.load %arg6[%c1, %c0_30] : memref<8x512xf32, #tpu.memory_space<vmem>>, vector<1x512xf32>
    %66 = arith.addf %64, %65 : vector<1x512xf32>
    %c1_31 = arith.constant 1 : index
    %c0_32 = arith.constant 0 : index
    %67 = vector.load %arg7[%c1_31, %c0_32] : memref<8x512xf32, #tpu.memory_space<vmem>>, vector<1x512xf32>
    %68 = arith.addf %66, %67 : vector<1x512xf32>
    %69 = math.tanh %68 : vector<1x512xf32>
    %70 = arith.mulf %69, %8 : vector<1x512xf32>
    %71 = arith.addf %70, %11 : vector<1x512xf32>
    %72 = vector.extract_strided_slice %71 {offsets = [0, 0], sizes = [1, 128], strides = [1, 1]} : vector<1x512xf32> to vector<1x128xf32>
    %73 = vector.extract_strided_slice %71 {offsets = [0, 128], sizes = [1, 128], strides = [1, 1]} : vector<1x512xf32> to vector<1x128xf32>
    %74 = vector.extract_strided_slice %71 {offsets = [0, 256], sizes = [1, 128], strides = [1, 1]} : vector<1x512xf32> to vector<1x128xf32>
    %75 = vector.extract_strided_slice %71 {offsets = [0, 384], sizes = [1, 128], strides = [1, 1]} : vector<1x512xf32> to vector<1x128xf32>
    %76 = arith.mulf %73, %61 : vector<1x128xf32>
    %77 = arith.mulf %72, %74 : vector<1x128xf32>
    %78 = arith.addf %76, %77 : vector<1x128xf32>
    %79 = math.tanh %78 : vector<1x128xf32>
    %80 = arith.mulf %75, %79 : vector<1x128xf32>
    %c152_33 = arith.constant 152 : index
    %c0_34 = arith.constant 0 : index
    %81 = vector.load %arg2[%c152_33, %c0_34] : memref<280x512xf32, #tpu.memory_space<vmem>>, vector<128x512xf32>
    %cst_35 = arith.constant dense<0.000000e+00> : vector<1x512xf32>
    %82 = tpu.matmul %80, %81, %cst_35 {dimension_numbers = #tpu.dot_dimension_numbers<[1], [0], [0], [1], [0, 0, 1, 1], [], []>} : vector<1x128xf32>, vector<128x512xf32>, vector<1x512xf32> -> vector<1x512xf32>
    %83 = arith.addf %82, %33 : vector<1x512xf32>
    %c2 = arith.constant 2 : index
    %c0_36 = arith.constant 0 : index
    %84 = vector.load %arg6[%c2, %c0_36] : memref<8x512xf32, #tpu.memory_space<vmem>>, vector<1x512xf32>
    %85 = arith.addf %83, %84 : vector<1x512xf32>
    %c2_37 = arith.constant 2 : index
    %c0_38 = arith.constant 0 : index
    %86 = vector.load %arg7[%c2_37, %c0_38] : memref<8x512xf32, #tpu.memory_space<vmem>>, vector<1x512xf32>
    %87 = arith.addf %85, %86 : vector<1x512xf32>
    %88 = math.tanh %87 : vector<1x512xf32>
    %89 = arith.mulf %88, %8 : vector<1x512xf32>
    %90 = arith.addf %89, %11 : vector<1x512xf32>
    %91 = vector.extract_strided_slice %90 {offsets = [0, 0], sizes = [1, 128], strides = [1, 1]} : vector<1x512xf32> to vector<1x128xf32>
    %92 = vector.extract_strided_slice %90 {offsets = [0, 128], sizes = [1, 128], strides = [1, 1]} : vector<1x512xf32> to vector<1x128xf32>
    %93 = vector.extract_strided_slice %90 {offsets = [0, 256], sizes = [1, 128], strides = [1, 1]} : vector<1x512xf32> to vector<1x128xf32>
    %94 = vector.extract_strided_slice %90 {offsets = [0, 384], sizes = [1, 128], strides = [1, 1]} : vector<1x512xf32> to vector<1x128xf32>
    %95 = arith.mulf %92, %78 : vector<1x128xf32>
    %96 = arith.mulf %91, %93 : vector<1x128xf32>
    %97 = arith.addf %95, %96 : vector<1x128xf32>
    %98 = math.tanh %97 : vector<1x128xf32>
    %99 = arith.mulf %94, %98 : vector<1x128xf32>
    %c152_39 = arith.constant 152 : index
    %c0_40 = arith.constant 0 : index
    %100 = vector.load %arg2[%c152_39, %c0_40] : memref<280x512xf32, #tpu.memory_space<vmem>>, vector<128x512xf32>
    %cst_41 = arith.constant dense<0.000000e+00> : vector<1x512xf32>
    %101 = tpu.matmul %99, %100, %cst_41 {dimension_numbers = #tpu.dot_dimension_numbers<[1], [0], [0], [1], [0, 0, 1, 1], [], []>} : vector<1x128xf32>, vector<128x512xf32>, vector<1x512xf32> -> vector<1x512xf32>
    %102 = arith.addf %101, %33 : vector<1x512xf32>
    %c3 = arith.constant 3 : index
    %c0_42 = arith.constant 0 : index
    %103 = vector.load %arg6[%c3, %c0_42] : memref<8x512xf32, #tpu.memory_space<vmem>>, vector<1x512xf32>
    %104 = arith.addf %102, %103 : vector<1x512xf32>
    %c3_43 = arith.constant 3 : index
    %c0_44 = arith.constant 0 : index
    %105 = vector.load %arg7[%c3_43, %c0_44] : memref<8x512xf32, #tpu.memory_space<vmem>>, vector<1x512xf32>
    %106 = arith.addf %104, %105 : vector<1x512xf32>
    %107 = math.tanh %106 : vector<1x512xf32>
    %108 = arith.mulf %107, %8 : vector<1x512xf32>
    %109 = arith.addf %108, %11 : vector<1x512xf32>
    %110 = vector.extract_strided_slice %109 {offsets = [0, 0], sizes = [1, 128], strides = [1, 1]} : vector<1x512xf32> to vector<1x128xf32>
    %111 = vector.extract_strided_slice %109 {offsets = [0, 128], sizes = [1, 128], strides = [1, 1]} : vector<1x512xf32> to vector<1x128xf32>
    %112 = vector.extract_strided_slice %109 {offsets = [0, 256], sizes = [1, 128], strides = [1, 1]} : vector<1x512xf32> to vector<1x128xf32>
    %113 = vector.extract_strided_slice %109 {offsets = [0, 384], sizes = [1, 128], strides = [1, 1]} : vector<1x512xf32> to vector<1x128xf32>
    %114 = arith.mulf %111, %97 : vector<1x128xf32>
    %115 = arith.mulf %110, %112 : vector<1x128xf32>
    %116 = arith.addf %114, %115 : vector<1x128xf32>
    %117 = math.tanh %116 : vector<1x128xf32>
    %118 = arith.mulf %113, %117 : vector<1x128xf32>
    %c152_45 = arith.constant 152 : index
    %c0_46 = arith.constant 0 : index
    %119 = vector.load %arg2[%c152_45, %c0_46] : memref<280x512xf32, #tpu.memory_space<vmem>>, vector<128x512xf32>
    %cst_47 = arith.constant dense<0.000000e+00> : vector<1x512xf32>
    %120 = tpu.matmul %118, %119, %cst_47 {dimension_numbers = #tpu.dot_dimension_numbers<[1], [0], [0], [1], [0, 0, 1, 1], [], []>} : vector<1x128xf32>, vector<128x512xf32>, vector<1x512xf32> -> vector<1x512xf32>
    %121 = arith.addf %120, %33 : vector<1x512xf32>
    %c4 = arith.constant 4 : index
    %c0_48 = arith.constant 0 : index
    %122 = vector.load %arg6[%c4, %c0_48] : memref<8x512xf32, #tpu.memory_space<vmem>>, vector<1x512xf32>
    %123 = arith.addf %121, %122 : vector<1x512xf32>
    %c4_49 = arith.constant 4 : index
    %c0_50 = arith.constant 0 : index
    %124 = vector.load %arg7[%c4_49, %c0_50] : memref<8x512xf32, #tpu.memory_space<vmem>>, vector<1x512xf32>
    %125 = arith.addf %123, %124 : vector<1x512xf32>
    %126 = math.tanh %125 : vector<1x512xf32>
    %127 = arith.mulf %126, %8 : vector<1x512xf32>
    %128 = arith.addf %127, %11 : vector<1x512xf32>
    %129 = vector.extract_strided_slice %128 {offsets = [0, 0], sizes = [1, 128], strides = [1, 1]} : vector<1x512xf32> to vector<1x128xf32>
    %130 = vector.extract_strided_slice %128 {offsets = [0, 128], sizes = [1, 128], strides = [1, 1]} : vector<1x512xf32> to vector<1x128xf32>
    %131 = vector.extract_strided_slice %128 {offsets = [0, 256], sizes = [1, 128], strides = [1, 1]} : vector<1x512xf32> to vector<1x128xf32>
    %132 = vector.extract_strided_slice %128 {offsets = [0, 384], sizes = [1, 128], strides = [1, 1]} : vector<1x512xf32> to vector<1x128xf32>
    %133 = arith.mulf %130, %116 : vector<1x128xf32>
    %134 = arith.mulf %129, %131 : vector<1x128xf32>
    %135 = arith.addf %133, %134 : vector<1x128xf32>
    %136 = math.tanh %135 : vector<1x128xf32>
    %137 = arith.mulf %132, %136 : vector<1x128xf32>
    %c152_51 = arith.constant 152 : index
    %c0_52 = arith.constant 0 : index
    %138 = vector.load %arg2[%c152_51, %c0_52] : memref<280x512xf32, #tpu.memory_space<vmem>>, vector<128x512xf32>
    %cst_53 = arith.constant dense<0.000000e+00> : vector<1x512xf32>
    %139 = tpu.matmul %137, %138, %cst_53 {dimension_numbers = #tpu.dot_dimension_numbers<[1], [0], [0], [1], [0, 0, 1, 1], [], []>} : vector<1x128xf32>, vector<128x512xf32>, vector<1x512xf32> -> vector<1x512xf32>
    %140 = arith.addf %139, %33 : vector<1x512xf32>
    %c5 = arith.constant 5 : index
    %c0_54 = arith.constant 0 : index
    %141 = vector.load %arg6[%c5, %c0_54] : memref<8x512xf32, #tpu.memory_space<vmem>>, vector<1x512xf32>
    %142 = arith.addf %140, %141 : vector<1x512xf32>
    %c5_55 = arith.constant 5 : index
    %c0_56 = arith.constant 0 : index
    %143 = vector.load %arg7[%c5_55, %c0_56] : memref<8x512xf32, #tpu.memory_space<vmem>>, vector<1x512xf32>
    %144 = arith.addf %142, %143 : vector<1x512xf32>
    %145 = math.tanh %144 : vector<1x512xf32>
    %146 = arith.mulf %145, %8 : vector<1x512xf32>
    %147 = arith.addf %146, %11 : vector<1x512xf32>
    %148 = vector.extract_strided_slice %147 {offsets = [0, 0], sizes = [1, 128], strides = [1, 1]} : vector<1x512xf32> to vector<1x128xf32>
    %149 = vector.extract_strided_slice %147 {offsets = [0, 128], sizes = [1, 128], strides = [1, 1]} : vector<1x512xf32> to vector<1x128xf32>
    %150 = vector.extract_strided_slice %147 {offsets = [0, 256], sizes = [1, 128], strides = [1, 1]} : vector<1x512xf32> to vector<1x128xf32>
    %151 = vector.extract_strided_slice %147 {offsets = [0, 384], sizes = [1, 128], strides = [1, 1]} : vector<1x512xf32> to vector<1x128xf32>
    %152 = arith.mulf %149, %135 : vector<1x128xf32>
    %153 = arith.mulf %148, %150 : vector<1x128xf32>
    %154 = arith.addf %152, %153 : vector<1x128xf32>
    %155 = math.tanh %154 : vector<1x128xf32>
    %156 = arith.mulf %151, %155 : vector<1x128xf32>
    %c152_57 = arith.constant 152 : index
    %c0_58 = arith.constant 0 : index
    %157 = vector.load %arg2[%c152_57, %c0_58] : memref<280x512xf32, #tpu.memory_space<vmem>>, vector<128x512xf32>
    %cst_59 = arith.constant dense<0.000000e+00> : vector<1x512xf32>
    %158 = tpu.matmul %156, %157, %cst_59 {dimension_numbers = #tpu.dot_dimension_numbers<[1], [0], [0], [1], [0, 0, 1, 1], [], []>} : vector<1x128xf32>, vector<128x512xf32>, vector<1x512xf32> -> vector<1x512xf32>
    %159 = arith.addf %158, %33 : vector<1x512xf32>
    %c6 = arith.constant 6 : index
    %c0_60 = arith.constant 0 : index
    %160 = vector.load %arg6[%c6, %c0_60] : memref<8x512xf32, #tpu.memory_space<vmem>>, vector<1x512xf32>
    %161 = arith.addf %159, %160 : vector<1x512xf32>
    %c6_61 = arith.constant 6 : index
    %c0_62 = arith.constant 0 : index
    %162 = vector.load %arg7[%c6_61, %c0_62] : memref<8x512xf32, #tpu.memory_space<vmem>>, vector<1x512xf32>
    %163 = arith.addf %161, %162 : vector<1x512xf32>
    %164 = math.tanh %163 : vector<1x512xf32>
    %165 = arith.mulf %164, %8 : vector<1x512xf32>
    %166 = arith.addf %165, %11 : vector<1x512xf32>
    %167 = vector.extract_strided_slice %166 {offsets = [0, 0], sizes = [1, 128], strides = [1, 1]} : vector<1x512xf32> to vector<1x128xf32>
    %168 = vector.extract_strided_slice %166 {offsets = [0, 128], sizes = [1, 128], strides = [1, 1]} : vector<1x512xf32> to vector<1x128xf32>
    %169 = vector.extract_strided_slice %166 {offsets = [0, 256], sizes = [1, 128], strides = [1, 1]} : vector<1x512xf32> to vector<1x128xf32>
    %170 = vector.extract_strided_slice %166 {offsets = [0, 384], sizes = [1, 128], strides = [1, 1]} : vector<1x512xf32> to vector<1x128xf32>
    %171 = arith.mulf %168, %154 : vector<1x128xf32>
    %172 = arith.mulf %167, %169 : vector<1x128xf32>
    %173 = arith.addf %171, %172 : vector<1x128xf32>
    %174 = math.tanh %173 : vector<1x128xf32>
    %175 = arith.mulf %170, %174 : vector<1x128xf32>
    %c152_63 = arith.constant 152 : index
    %c0_64 = arith.constant 0 : index
    %176 = vector.load %arg2[%c152_63, %c0_64] : memref<280x512xf32, #tpu.memory_space<vmem>>, vector<128x512xf32>
    %cst_65 = arith.constant dense<0.000000e+00> : vector<1x512xf32>
    %177 = tpu.matmul %175, %176, %cst_65 {dimension_numbers = #tpu.dot_dimension_numbers<[1], [0], [0], [1], [0, 0, 1, 1], [], []>} : vector<1x128xf32>, vector<128x512xf32>, vector<1x512xf32> -> vector<1x512xf32>
    %178 = arith.addf %177, %33 : vector<1x512xf32>
    %c7 = arith.constant 7 : index
    %c0_66 = arith.constant 0 : index
    %179 = vector.load %arg6[%c7, %c0_66] : memref<8x512xf32, #tpu.memory_space<vmem>>, vector<1x512xf32>
    %180 = arith.addf %178, %179 : vector<1x512xf32>
    %c7_67 = arith.constant 7 : index
    %c0_68 = arith.constant 0 : index
    %181 = vector.load %arg7[%c7_67, %c0_68] : memref<8x512xf32, #tpu.memory_space<vmem>>, vector<1x512xf32>
    %182 = arith.addf %180, %181 : vector<1x512xf32>
    %183 = math.tanh %182 : vector<1x512xf32>
    %184 = arith.mulf %183, %8 : vector<1x512xf32>
    %185 = arith.addf %184, %11 : vector<1x512xf32>
    %186 = vector.extract_strided_slice %185 {offsets = [0, 0], sizes = [1, 128], strides = [1, 1]} : vector<1x512xf32> to vector<1x128xf32>
    %187 = vector.extract_strided_slice %185 {offsets = [0, 128], sizes = [1, 128], strides = [1, 1]} : vector<1x512xf32> to vector<1x128xf32>
    %188 = vector.extract_strided_slice %185 {offsets = [0, 256], sizes = [1, 128], strides = [1, 1]} : vector<1x512xf32> to vector<1x128xf32>
    %189 = vector.extract_strided_slice %185 {offsets = [0, 384], sizes = [1, 128], strides = [1, 1]} : vector<1x512xf32> to vector<1x128xf32>
    %190 = arith.mulf %187, %173 : vector<1x128xf32>
    %191 = arith.mulf %186, %188 : vector<1x128xf32>
    %192 = arith.addf %190, %191 : vector<1x128xf32>
    %193 = math.tanh %192 : vector<1x128xf32>
    %194 = arith.mulf %189, %193 : vector<1x128xf32>
    %c152_69 = arith.constant 152 : index
    %c0_70 = arith.constant 0 : index
    %195 = vector.load %arg2[%c152_69, %c0_70] : memref<280x512xf32, #tpu.memory_space<vmem>>, vector<128x512xf32>
    %cst_71 = arith.constant dense<0.000000e+00> : vector<1x512xf32>
    %196 = tpu.matmul %194, %195, %cst_71 {dimension_numbers = #tpu.dot_dimension_numbers<[1], [0], [0], [1], [0, 0, 1, 1], [], []>} : vector<1x128xf32>, vector<128x512xf32>, vector<1x512xf32> -> vector<1x512xf32>
    %197 = arith.addf %196, %33 : vector<1x512xf32>
    %198 = math.tanh %197 : vector<1x512xf32>
    %199 = arith.mulf %198, %8 : vector<1x512xf32>
    %200 = arith.addf %199, %11 : vector<1x512xf32>
    %201 = vector.extract_strided_slice %200 {offsets = [0, 0], sizes = [1, 128], strides = [1, 1]} : vector<1x512xf32> to vector<1x128xf32>
    %202 = vector.extract_strided_slice %200 {offsets = [0, 128], sizes = [1, 128], strides = [1, 1]} : vector<1x512xf32> to vector<1x128xf32>
    %203 = vector.extract_strided_slice %200 {offsets = [0, 256], sizes = [1, 128], strides = [1, 1]} : vector<1x512xf32> to vector<1x128xf32>
    %204 = vector.extract_strided_slice %200 {offsets = [0, 384], sizes = [1, 128], strides = [1, 1]} : vector<1x512xf32> to vector<1x128xf32>
    %205 = arith.mulf %202, %192 : vector<1x128xf32>
    %206 = arith.mulf %201, %203 : vector<1x128xf32>
    %207 = arith.addf %205, %206 : vector<1x128xf32>
    %208 = math.tanh %207 : vector<1x128xf32>
    %209 = arith.mulf %204, %208 : vector<1x128xf32>
    %c32_i32_72 = arith.constant 32 : i32
    %210 = vector.broadcast %c32_i32_72 : i32 to vector<1x128xi32>
    %211 = arith.cmpi sge, %24, %210 : vector<1x128xi32>
    %c64_i32_73 = arith.constant 64 : i32
    %212 = vector.broadcast %c64_i32_73 : i32 to vector<1x128xi32>
    %213 = arith.cmpi slt, %24, %212 : vector<1x128xi32>
    %214 = arith.andi %211, %213 : vector<1x128xi1>
    %c96_i32_74 = arith.constant 96 : i32
    %215 = vector.broadcast %c96_i32_74 : i32 to vector<1x128xi32>
    %216 = arith.cmpi sge, %24, %215 : vector<1x128xi32>
    %217 = arith.ori %214, %216 : vector<1x128xi1>
    %218 = arith.select %217, %209, %194 : vector<1x128xi1>, vector<1x128xf32>
    %c0_75 = arith.constant 0 : index
    %c0_76 = arith.constant 0 : index
    %219 = vector.load %arg4[%c0_75, %c0_76] : memref<2x32xf32, #tpu.memory_space<vmem>>, vector<1x32xf32>
    %c1_77 = arith.constant 1 : index
    %c0_78 = arith.constant 0 : index
    %220 = vector.load %arg4[%c1_77, %c0_78] : memref<2x32xf32, #tpu.memory_space<vmem>>, vector<1x32xf32>
    %c0_79 = arith.constant 0 : index
    %c0_80 = arith.constant 0 : index
    %221 = vector.load %arg3[%c0_79, %c0_80] : memref<312x128xf32, #tpu.memory_space<vmem>>, vector<128x128xf32>
    %cst_81 = arith.constant dense<0.000000e+00> : vector<1x128xf32>
    %222 = tpu.matmul %218, %221, %cst_81 {dimension_numbers = #tpu.dot_dimension_numbers<[1], [0], [0], [1], [0, 0, 1, 1], [], []>} : vector<1x128xf32>, vector<128x128xf32>, vector<1x128xf32> -> vector<1x128xf32>
    %c128 = arith.constant 128 : index
    %c0_82 = arith.constant 0 : index
    %223 = vector.load %arg3[%c128, %c0_82] : memref<312x128xf32, #tpu.memory_space<vmem>>, vector<1x128xf32>
    %224 = arith.addf %222, %223 : vector<1x128xf32>
    %c136 = arith.constant 136 : index
    %c0_83 = arith.constant 0 : index
    %225 = vector.load %arg3[%c136, %c0_83] : memref<312x128xf32, #tpu.memory_space<vmem>>, vector<128x128xf32>
    %cst_84 = arith.constant dense<0.000000e+00> : vector<1x128xf32>
    %226 = tpu.matmul %224, %225, %cst_84 {dimension_numbers = #tpu.dot_dimension_numbers<[1], [0], [0], [1], [0, 0, 1, 1], [], []>} : vector<1x128xf32>, vector<128x128xf32>, vector<1x128xf32> -> vector<1x128xf32>
    %c264 = arith.constant 264 : index
    %c0_85 = arith.constant 0 : index
    %227 = vector.load %arg3[%c264, %c0_85] : memref<312x128xf32, #tpu.memory_space<vmem>>, vector<32x128xf32>
    %cst_86 = arith.constant dense<0.000000e+00> : vector<1x128xf32>
    %228 = tpu.matmul %219, %227, %cst_86 {dimension_numbers = #tpu.dot_dimension_numbers<[1], [0], [0], [1], [0, 0, 1, 1], [], []>} : vector<1x32xf32>, vector<32x128xf32>, vector<1x128xf32> -> vector<1x128xf32>
    %229 = arith.addf %226, %228 : vector<1x128xf32>
    %c296 = arith.constant 296 : index
    %c0_87 = arith.constant 0 : index
    %230 = vector.load %arg3[%c296, %c0_87] : memref<312x128xf32, #tpu.memory_space<vmem>>, vector<1x128xf32>
    %231 = arith.addf %229, %230 : vector<1x128xf32>
    %232 = math.tanh %231 : vector<1x128xf32>
    %233 = arith.mulf %232, %20 : vector<1x128xf32>
    %234 = arith.addf %233, %23 : vector<1x128xf32>
    %235 = vector.extract_strided_slice %234 {offsets = [0, 0], sizes = [1, 32], strides = [1, 1]} : vector<1x128xf32> to vector<1x32xf32>
    %236 = vector.extract_strided_slice %234 {offsets = [0, 32], sizes = [1, 32], strides = [1, 1]} : vector<1x128xf32> to vector<1x32xf32>
    %237 = vector.extract_strided_slice %234 {offsets = [0, 64], sizes = [1, 32], strides = [1, 1]} : vector<1x128xf32> to vector<1x32xf32>
    %238 = vector.extract_strided_slice %234 {offsets = [0, 96], sizes = [1, 32], strides = [1, 1]} : vector<1x128xf32> to vector<1x32xf32>
    %239 = arith.mulf %236, %220 : vector<1x32xf32>
    %240 = arith.mulf %235, %237 : vector<1x32xf32>
    %241 = arith.addf %239, %240 : vector<1x32xf32>
    %242 = math.tanh %241 : vector<1x32xf32>
    %243 = arith.mulf %238, %242 : vector<1x32xf32>
    %c304 = arith.constant 304 : index
    %c0_88 = arith.constant 0 : index
    %244 = vector.load %arg3[%c304, %c0_88] : memref<312x128xf32, #tpu.memory_space<vmem>>, vector<1x128xf32>
    %245 = vector.extract_strided_slice %244 {offsets = [0, 0], sizes = [1, 32], strides = [1, 1]} : vector<1x128xf32> to vector<1x32xf32>
    %246 = arith.mulf %243, %245 : vector<1x32xf32>
    %cst_89 = arith.constant dense<0.000000e+00> : vector<1xf32>
    %247 = vector.multi_reduction <add>, %246, %cst_89 [1] : vector<1x32xf32> to vector<1xf32>
    %248 = vector.shape_cast %247 : vector<1xf32> to vector<1x1xf32>
    %249 = vector.extract_strided_slice %244 {offsets = [0, 127], sizes = [1, 1], strides = [1, 1]} : vector<1x128xf32> to vector<1x1xf32>
    %250 = arith.addf %248, %249 : vector<1x1xf32>
    %251 = arith.negf %250 : vector<1x1xf32>
    %252 = math.exp %251 : vector<1x1xf32>
    %cst_90 = arith.constant 1.000000e+00 : f32
    %253 = vector.broadcast %cst_90 : f32 to vector<1x1xf32>
    %254 = arith.addf %253, %252 : vector<1x1xf32>
    %255 = arith.divf %253, %254 : vector<1x1xf32>
    %256 = vector.shape_cast %255 : vector<1x1xf32> to vector<1x1xf32>
    %257 = vector.broadcast %256 : vector<1x1xf32> to vector<1x64xf32>
    %258 = tpu.concatenate %243, %241, %257 in 1 : vector<1x32xf32>, vector<1x32xf32>, vector<1x64xf32> -> vector<1x128xf32>
    %c0_91 = arith.constant 0 : index
    %c0_92 = arith.constant 0 : index
    %259 = vector.load %arg5[%c0_91, %c0_92] : memref<1x128xf32, #tpu.memory_space<vmem>>, vector<1x128xf32>
    tpu.vector_store %arg5[%c0_91, %c0_92], %258 {strides = array<i32>} : memref<1x128xf32, #tpu.memory_space<vmem>>, vector<1x128xf32>,
    return
  }
}

</mosaic_0001>

<llo_original>
// kernel: _forward_impl.1
$region0: #{_forward_impl.1}
  #allocation0 [shape = 'u32[]', space=smem, size = 0x4, offset = 0x4, fixed_abs, tag = 'smem constant byte address 0x4 - core index']
  #allocation1 [shape = 'u32[144,128]{1,0:T(1,128)}', space=vmem, size = 0x12000, scoped, tag = 'internal scratch']
  #allocation2 [shape = 'f32[8,512]{1,0:T(8,128)}', space=vmem, size = 0x4000, scoped, tag = 'scratch operand']
  #allocation3 [shape = 'f32[8,512]{1,0:T(8,128)}', space=vmem, size = 0x4000, scoped, tag = 'scratch operand']
  %s0 = inlined_call_operand.vmem [shape: f32[8,104], index: 0, kind: input, shape index: {}]
  %s1 = inlined_call_operand.vmem [shape: f32[8,40], index: 1, kind: input, shape index: {}]
  %s2 = inlined_call_operand.hbm [shape: f32[280,512], index: 2, kind: input, shape index: {}]
  %s3 = inlined_call_operand.hbm [shape: f32[312,128], index: 3, kind: input, shape index: {}]
  %s4 = inlined_call_operand.vmem [shape: f32[2,32], index: 4, kind: input, shape index: {}]
  %s5 = inlined_call_operand.vmem [shape: f32[1,128], index: 5, kind: output, shape index: {}]
  %s6 = sld [smem:[#allocation0]]
  $region38: #{_forward_impl.1} parent=0
    _
  %s8 = ssub.s32 1, %s6
  %s9 = scalar_select 0, %s8, %s6
  $region1: #{_forward_impl.1} parent=0
    #allocation4 [shape = 'u8[573440]{0}', space=vmem, size = 0x8c000, scoped, tag = 'input window, operand 2, single buffered']
    #allocation5 [shape = 's32[1]{0}', space=sflag, size = 0x4, scoped, tag = 'scoped memory for _forward_impl.1']
    #allocation6 [shape = 'u8[159744]{0}', space=vmem, size = 0x27000, scoped, tag = 'input window, operand 3, single buffered']
    #allocation7 [shape = 's32[1]{0}', space=sflag, size = 0x4, scoped, tag = 'scoped memory for _forward_impl.1']
    %10 = vsyncpa [#allocation5], 0
    %11 = vsyncpa [#allocation7], 0
    // Predicated region
    $region2: #{_forward_impl.1} parent=1 // pred_check
      _
    $region3: #{_forward_impl.1} parent=1 // pred_check_branch
      %13 = sbr.rel (0) target = $region5
    $region4: #{_forward_impl.1} parent=1 // pred_region
      _
    $region5: #{_forward_impl.1} parent=1 // pred_fallthru
      _
    // Predicated region
    $region6: #{_forward_impl.1} parent=1 // pred_check
      _
    $region7: #{_forward_impl.1} parent=1 // pred_check_branch
      %15 = sbr.rel (0) target = $region9
    $region8: #{_forward_impl.1} parent=1 // pred_region
      _
    $region9: #{_forward_impl.1} parent=1 // pred_fallthru
      _
    // Predicated region
    $region10: #{_forward_impl.1} parent=1 // pred_check
      _
    $region11: #{_forward_impl.1} parent=1 // pred_check_branch
      %17 = sbr.rel (0) target = $region13
    $region12: #{_forward_impl.1} parent=1 // pred_region
      %s19 = ssub.s32 17920, 17920
      %20 = vsyncadd [#allocation5], %s19
      %s21 = sshll.u32 [#allocation4], 4
      %s22 = int_to_ptr.vmem [resolvable:$true] %s21
      %27 = dma.hbm_to_vmem [thread:$0]  %s2, 17920, %s22, [#allocation5], 512, 512, 32
    $region13: #{_forward_impl.1} parent=1 // pred_fallthru
      _
    // Predicated region
    $region14: #{_forward_impl.1} parent=1 // pred_check
      _
    $region15: #{_forward_impl.1} parent=1 // pred_check_branch
      %29 = sbr.rel (0) target = $region17
    $region16: #{_forward_impl.1} parent=1 // pred_region
      %s31 = ssub.s32 4992, 4992
      %32 = vsyncadd [#allocation7], %s31
      %s33 = sshll.u32 [#allocation6], 4
      %s34 = int_to_ptr.vmem [resolvable:$true] %s33
      %39 = dma.hbm_to_vmem [thread:$0]  %s3, 4992, %s34, [#allocation7], 128, 128, 8
    $region17: #{_forward_impl.1} parent=1 // pred_fallthru
      _
    // Predicated region
    $region18: #{_forward_impl.1} parent=1 // pred_check
      _
    $region19: #{_forward_impl.1} parent=1 // pred_check_branch
      %41 = sbr.rel (0) target = $region21
    $region20: #{_forward_impl.1} parent=1 // pred_region
      _
    $region21: #{_forward_impl.1} parent=1 // pred_fallthru
      _
    // Predicated region
    $region22: #{_forward_impl.1} parent=1 // pred_check
      _
    $region23: #{_forward_impl.1} parent=1 // pred_check_branch
      %43 = sbr.rel (0) target = $region25
    $region24: #{_forward_impl.1} parent=1 // pred_region
      %44 = dma.done [#allocation5], 17920
    $region25: #{_forward_impl.1} parent=1 // pred_fallthru
      _
    // Predicated region
    $region26: #{_forward_impl.1} parent=1 // pred_check
      _
    $region27: #{_forward_impl.1} parent=1 // pred_check_branch
      %46 = sbr.rel (0) target = $region29
    $region28: #{_forward_impl.1} parent=1 // pred_region
      %47 = dma.done [#allocation7], 4992
    $region29: #{_forward_impl.1} parent=1 // pred_fallthru
      _
    %v48 = vlaneseq
    %v49 = vand.u32 %v48, 127
    %v50 = vadd.s32 %v49, 128
    %v51 = vadd.s32 %v49, 256
    %v52 = vadd.s32 %v49, 384
    %vm53 = vcmp.ge.s32.totalorder %v49, 256
    %vm54 = vcmp.ge.s32.totalorder %v50, 256
    %vm55 = vcmp.ge.s32.totalorder %v51, 256
    %vm56 = vcmp.ge.s32.totalorder %v52, 256
    %vm57 = vcmp.lt.s32.totalorder %v49, 384
    %vm58 = vcmp.lt.s32.totalorder %v50, 384
    %vm59 = vcmp.lt.s32.totalorder %v51, 384
    %vm60 = vcmp.lt.s32.totalorder %v52, 384
    %vm61 = vmand %vm53, %vm57
    %vm62 = vmand %vm54, %vm58
    %vm63 = vmand %vm55, %vm59
    %vm64 = vmand %vm56, %vm60
    %v65 = vsel %vm61, 1.0, 0.5
    %v66 = vsel %vm62, 1.0, 0.5
    %v67 = vsel %vm63, 1.0, 0.5
    %v68 = vsel %vm64, 1.0, 0.5
    %v69 = vsel %vm61, 0.0, 0.5
    %v70 = vsel %vm62, 0.0, 0.5
    %v71 = vsel %vm63, 0.0, 0.5
    %v72 = vsel %vm64, 0.0, 0.5
    %vm73 = vcmp.ge.s32.totalorder %v49, 64
    %vm74 = vcmp.lt.s32.totalorder %v49, 96
    %vm75 = vmand %vm73, %vm74
    %v76 = vsel %vm75, 1.0, 0.5
    %v77 = vsel %vm75, 0.0, 0.5
    %v78 = vld [vmem:[%s0] sm:$0xff]
    %v79 = vld [vmem:[#allocation4] sm:$0xff]
    %v80 = vld [vmem:[#allocation4 + $0x8] sm:$0xff]
    %v81 = vld [vmem:[#allocation4 + $0x10] sm:$0xff]
    %v82 = vld [vmem:[#allocation4 + $0x18] sm:$0xff]
    %v83 = vld [vmem:[#allocation4 + $0x20] sm:$0xff]
    %v84 = vld [vmem:[#allocation4 + $0x28] sm:$0xff]
    %v85 = vld [vmem:[#allocation4 + $0x30] sm:$0xff]
    %v86 = vld [vmem:[#allocation4 + $0x38] sm:$0xff]
    %v87 = vld [vmem:[#allocation4 + $0x40] sm:$0xff]
    %v88 = vld [vmem:[#allocation4 + $0x48] sm:$0xff]
    %v89 = vld [vmem:[#allocation4 + $0x50] sm:$0xff]
    %v90 = vld [vmem:[#allocation4 + $0x58] sm:$0xff]
    %v91 = vld [vmem:[#allocation4 + $0x60] sm:$0xff]
    %v92 = vld [vmem:[#allocation4 + $0x68] sm:$0xff]
    %v93 = vld [vmem:[#allocation4 + $0x70] sm:$0xff]
    %v94 = vld [vmem:[#allocation4 + $0x78] sm:$0xff]
    %v95 = vld [vmem:[#allocation4 + $0x80] sm:$0xff]
    %v96 = vld [vmem:[#allocation4 + $0x88] sm:$0xff]
    %v97 = vld [vmem:[#allocation4 + $0x90] sm:$0xff]
    %v98 = vld [vmem:[#allocation4 + $0x98] sm:$0xff]
    %v99 = vld [vmem:[#allocation4 + $0xa0] sm:$0xff]
    %v100 = vld [vmem:[#allocation4 + $0xa8] sm:$0xff]
    %v101 = vld [vmem:[#allocation4 + $0xb0] sm:$0xff]
    %v102 = vld [vmem:[#allocation4 + $0xb8] sm:$0xff]
    %v103 = vld [vmem:[#allocation4 + $0xc0] sm:$0xff]
    %v104 = vld [vmem:[#allocation4 + $0xc8] sm:$0xff]
    %v105 = vld [vmem:[#allocation4 + $0xd0] sm:$0xff]
    %v106 = vld [vmem:[#allocation4 + $0xd8] sm:$0xff]
    %v107 = vld [vmem:[#allocation4 + $0xe0] sm:$0xff]
    %v108 = vld [vmem:[#allocation4 + $0xe8] sm:$0xff]
    %v109 = vld [vmem:[#allocation4 + $0xf0] sm:$0xff]
    %v110 = vld [vmem:[#allocation4 + $0xf8] sm:$0xff]
    %v111 = vld [vmem:[#allocation4 + $0x100] sm:$0xff]
    %v112 = vld [vmem:[#allocation4 + $0x108] sm:$0xff]
    %v113 = vld [vmem:[#allocation4 + $0x110] sm:$0xff]
    %v114 = vld [vmem:[#allocation4 + $0x118] sm:$0xff]
    %v115 = vld [vmem:[#allocation4 + $0x120] sm:$0xff]
    %v116 = vld [vmem:[#allocation4 + $0x128] sm:$0xff]
    %v117 = vld [vmem:[#allocation4 + $0x130] sm:$0xff]
    %v118 = vld [vmem:[#allocation4 + $0x138] sm:$0xff]
    %v119 = vld [vmem:[#allocation4 + $0x140] sm:$0xff]
    %v120 = vld [vmem:[#allocation4 + $0x148] sm:$0xff]
    %v121 = vld [vmem:[#allocation4 + $0x150] sm:$0xff]
    %v122 = vld [vmem:[#allocation4 + $0x158] sm:$0xff]
    %v123 = vld [vmem:[#allocation4 + $0x160] sm:$0xff]
    %v124 = vld [vmem:[#allocation4 + $0x168] sm:$0xff]
    %v125 = vld [vmem:[#allocation4 + $0x170] sm:$0xff]
    %v126 = vld [vmem:[#allocation4 + $0x178] sm:$0xff]
    %v127 = vld [vmem:[#allocation4 + $0x180] sm:$0xff]
    %v128 = vld [vmem:[#allocation4 + $0x188] sm:$0xff]
    %v129 = vld [vmem:[#allocation4 + $0x190] sm:$0xff]
    %v130 = vld [vmem:[#allocation4 + $0x198] sm:$0xff]
    %vm131 = vcmask 850944
    %v133 = vsel %vm131, %v78, 0
    %135 = vmatprep.subr.mxu0 %v80
    %136 = vmatpush1.msra.mxu0 %v79
    %137 = vmatprep.subr.mxu0 %v84
    %138 = vmatpush1.msra.mxu0 %v83
    %139 = vmatprep.subr.mxu0 %v88
    %140 = vmatpush1.msra.mxu0 %v87
    %141 = vmatprep.subr.mxu0 %v92
    %142 = vmatpush1.msra.mxu0 %v91
    %143 = vmatprep.subr.mxu0 %v96
    %144 = vmatpush1.msra.mxu0 %v95
    %145 = vmatprep.subr.mxu0 %v100
    %146 = vmatpush1.msra.mxu0 %v99
    %147 = vmatprep.subr.mxu0 %v104
    %148 = vmatpush1.msra.mxu0 %v103
    %149 = vmatprep.subr.mxu0 %v108
    %150 = vmatpush1.msra.mxu0 %v107
    %151 = vmatprep.subr.mxu0 %v112
    %152 = vmatpush1.msra.mxu0 %v111
    %153 = vmatprep.subr.mxu0 %v116
    %154 = vmatpush1.msra.mxu0 %v115
    %155 = vmatprep.subr.mxu0 %v120
    %156 = vmatpush1.msra.mxu0 %v119
    %157 = vmatprep.subr.mxu0 %v124
    %158 = vmatpush1.msra.mxu0 %v123
    %159 = vmatprep.subr.mxu0 %v128
    %160 = vmatpush1.msra.mxu0 %v127
    %161 = vmatprep.subr.mxu0 0.0
    %162 = vmatpush1.msra.mxu0 0.0
    %163 = vmatprep.subr.mxu0 0.0
    %164 = vmatpush1.msra.mxu0 0.0
    %165 = vmatprep.subr.mxu0 0.0
    %166 = vmatpush1.msra.mxu0 0.0
    %167 = vmatprep.subr.mxu0 0.0
    %168 = vmatpush1.msra.mxu0 0.0
    %169 = vmatprep.subr.mxu0 0.0
    %170 = vmatpush1.msra.mxu0 0.0
    %171 = vmatprep.subr.mxu0 0.0
    %172 = vmatpush1.msra.mxu0 0.0
    %173 = vmatprep.subr.mxu0 0.0
    %174 = vmatpush1.msra.mxu0 0.0
    %175 = vmatprep.subr.mxu0 0.0
    %176 = vmatpush1.msra.mxu0 0.0
    %177 = vmatprep.subr.mxu0 0.0
    %178 = vmatpush1.msra.mxu0 0.0
    %179 = vmatprep.subr.mxu0 0.0
    %180 = vmatpush1.msra.mxu0 0.0
    %181 = vmatprep.subr.mxu0 0.0
    %182 = vmatpush1.msra.mxu0 0.0
    %183 = vmatprep.subr.mxu0 0.0
    %184 = vmatpush1.msra.mxu0 0.0
    %185 = vmatprep.subr.mxu0 0.0
    %186 = vmatpush1.msra.mxu0 0.0
    %187 = vmatprep.subr.mxu0 0.0
    %188 = vmatpush1.msra.mxu0 0.0
    %189 = vmatprep.subr.mxu0 0.0
    %190 = vmatpush1.msra.mxu0 0.0
    %191 = vmatprep.subr.mxu0 0.0
    %192 = vmatpush1.msra.mxu0 0.0
    %193 = vmatprep.subr.mxu0 0.0
    %194 = vmatpush1.msra.mxu0 0.0
    %195 = vmatprep.subr.mxu0 0.0
    %196 = vmatpush1.msra.mxu0 0.0
    %197 = vmatprep.subr.mxu0 0.0
    %198 = vmatpush1.msra.mxu0 0.0
    %199 = vmatprep.mubr.f32.mxu0 0.0
    %200 = vmatmul.mubr.f32.gmra.mrb[0].mxu0 %v133
    %v201 = vpop.f32.mrb[0].mxu0
    %v202 = vadd.f32 0.0, %v201
    %v203 = vpop.f32.mrb[0].mxu0
    %v204 = vadd.f32 0.0, %v203
    %205 = vdwg.mxu0
    %206 = vmatprep.subr.mxu0 %v82
    %207 = vmatpush1.msra.mxu0 %v81
    %208 = vmatprep.subr.mxu0 %v86
    %209 = vmatpush1.msra.mxu0 %v85
    %210 = vmatprep.subr.mxu0 %v90
    %211 = vmatpush1.msra.mxu0 %v89
    %212 = vmatprep.subr.mxu0 %v94
    %213 = vmatpush1.msra.mxu0 %v93
    %214 = vmatprep.subr.mxu0 %v98
    %215 = vmatpush1.msra.mxu0 %v97
    %216 = vmatprep.subr.mxu0 %v102
    %217 = vmatpush1.msra.mxu0 %v101
    %218 = vmatprep.subr.mxu0 %v106
    %219 = vmatpush1.msra.mxu0 %v105
    %220 = vmatprep.subr.mxu0 %v110
    %221 = vmatpush1.msra.mxu0 %v109
    %222 = vmatprep.subr.mxu0 %v114
    %223 = vmatpush1.msra.mxu0 %v113
    %224 = vmatprep.subr.mxu0 %v118
    %225 = vmatpush1.msra.mxu0 %v117
    %226 = vmatprep.subr.mxu0 %v122
    %227 = vmatpush1.msra.mxu0 %v121
    %228 = vmatprep.subr.mxu0 %v126
    %229 = vmatpush1.msra.mxu0 %v125
    %230 = vmatprep.subr.mxu0 %v130
    %231 = vmatpush1.msra.mxu0 %v129
    %232 = vmatprep.subr.mxu0 0.0
    %233 = vmatpush1.msra.mxu0 0.0
    %234 = vmatprep.subr.mxu0 0.0
    %235 = vmatpush1.msra.mxu0 0.0
    %236 = vmatprep.subr.mxu0 0.0
    %237 = vmatpush1.msra.mxu0 0.0
    %238 = vmatprep.subr.mxu0 0.0
    %239 = vmatpush1.msra.mxu0 0.0
    %240 = vmatprep.subr.mxu0 0.0
    %241 = vmatpush1.msra.mxu0 0.0
    %242 = vmatprep.subr.mxu0 0.0
    %243 = vmatpush1.msra.mxu0 0.0
    %244 = vmatprep.subr.mxu0 0.0
    %245 = vmatpush1.msra.mxu0 0.0
    %246 = vmatprep.subr.mxu0 0.0
    %247 = vmatpush1.msra.mxu0 0.0
    %248 = vmatprep.subr.mxu0 0.0
    %249 = vmatpush1.msra.mxu0 0.0
    %250 = vmatprep.subr.mxu0 0.0
    %251 = vmatpush1.msra.mxu0 0.0
    %252 = vmatprep.subr.mxu0 0.0
    %253 = vmatpush1.msra.mxu0 0.0
    %254 = vmatprep.subr.mxu0 0.0
    %255 = vmatpush1.msra.mxu0 0.0
    %256 = vmatprep.subr.mxu0 0.0
    %257 = vmatpush1.msra.mxu0 0.0
    %258 = vmatprep.subr.mxu0 0.0
    %259 = vmatpush1.msra.mxu0 0.0
    %260 = vmatprep.subr.mxu0 0.0
    %261 = vmatpush1.msra.mxu0 0.0
    %262 = vmatprep.subr.mxu0 0.0
    %263 = vmatpush1.msra.mxu0 0.0
    %264 = vmatprep.subr.mxu0 0.0
    %265 = vmatpush1.msra.mxu0 0.0
    %266 = vmatprep.subr.mxu0 0.0
    %267 = vmatpush1.msra.mxu0 0.0
    %268 = vmatprep.subr.mxu0 0.0
    %269 = vmatpush1.msra.mxu0 0.0
    %270 = vmatprep.mubr.f32.mxu0 0.0
    %271 = vmatmul.mubr.f32.gmra.mrb[0].mxu0 %v133
    %v272 = vpop.f32.mrb[0].mxu0
    %v273 = vadd.f32 0.0, %v272
    %v274 = vpop.f32.mrb[0].mxu0
    %v275 = vadd.f32 0.0, %v274
    %276 = vdwg.mxu0
    %277 = vst [vmem:[#allocation2] sm:$0xff] %v202
    %278 = vst [vmem:[#allocation2 + $0x8] sm:$0xff] %v204
    %279 = vst [vmem:[#allocation2 + $0x10] sm:$0xff] %v273
    %280 = vst [vmem:[#allocation2 + $0x18] sm:$0xff] %v275
    %v281 = vld [vmem:[%s1] sm:$0xff]
    %v282 = vld [vmem:[#allocation4 + $0x1a0] sm:$0xff]
    %v283 = vld [vmem:[#allocation4 + $0x1a8] sm:$0xff]
    %v284 = vld [vmem:[#allocation4 + $0x1b0] sm:$0xff]
    %v285 = vld [vmem:[#allocation4 + $0x1b8] sm:$0xff]
    %v286 = vld [vmem:[#allocation4 + $0x1c0] sm:$0xff]
    %v287 = vld [vmem:[#allocation4 + $0x1c8] sm:$0xff]
    %v288 = vld [vmem:[#allocation4 + $0x1d0] sm:$0xff]
    %v289 = vld [vmem:[#allocation4 + $0x1d8] sm:$0xff]
    %v290 = vld [vmem:[#allocation4 + $0x1e0] sm:$0xff]
    %v291 = vld [vmem:[#allocation4 + $0x1e8] sm:$0xff]
    %v292 = vld [vmem:[#allocation4 + $0x1f0] sm:$0xff]
    %v293 = vld [vmem:[#allocation4 + $0x1f8] sm:$0xff]
    %v294 = vld [vmem:[#allocation4 + $0x200] sm:$0xff]
    %v295 = vld [vmem:[#allocation4 + $0x208] sm:$0xff]
    %v296 = vld [vmem:[#allocation4 + $0x210] sm:$0xff]
    %v297 = vld [vmem:[#allocation4 + $0x218] sm:$0xff]
    %v298 = vld [vmem:[#allocation4 + $0x220] sm:$0xff]
    %v299 = vld [vmem:[#allocation4 + $0x228] sm:$0xff]
    %v300 = vld [vmem:[#allocation4 + $0x230] sm:$0xff]
    %v301 = vld [vmem:[#allocation4 + $0x238] sm:$0xff]
    %vm302 = vcmask 326656
    %v304 = vsel %vm302, %v281, 0
    %306 = vmatprep.subr.mxu0 %v283
    %307 = vmatpush1.msra.mxu0 %v282
    %308 = vmatprep.subr.mxu0 %v287
    %309 = vmatpush1.msra.mxu0 %v286
    %310 = vmatprep.subr.mxu0 %v291
    %311 = vmatpush1.msra.mxu0 %v290
    %312 = vmatprep.subr.mxu0 %v295
    %313 = vmatpush1.msra.mxu0 %v294
    %314 = vmatprep.subr.mxu0 %v299
    %315 = vmatpush1.msra.mxu0 %v298
    %316 = vmatprep.subr.mxu0 0.0
    %317 = vmatpush1.msra.mxu0 0.0
    %318 = vmatprep.subr.mxu0 0.0
    %319 = vmatpush1.msra.mxu0 0.0
    %320 = vmatprep.subr.mxu0 0.0
    %321 = vmatpush1.msra.mxu0 0.0
    %322 = vmatprep.subr.mxu0 0.0
    %323 = vmatpush1.msra.mxu0 0.0
    %324 = vmatprep.subr.mxu0 0.0
    %325 = vmatpush1.msra.mxu0 0.0
    %326 = vmatprep.subr.mxu0 0.0
    %327 = vmatpush1.msra.mxu0 0.0
    %328 = vmatprep.subr.mxu0 0.0
    %329 = vmatpush1.msra.mxu0 0.0
    %330 = vmatprep.subr.mxu0 0.0
    %331 = vmatpush1.msra.mxu0 0.0
    %332 = vmatprep.subr.mxu0 0.0
    %333 = vmatpush1.msra.mxu0 0.0
    %334 = vmatprep.subr.mxu0 0.0
    %335 = vmatpush1.msra.mxu0 0.0
    %336 = vmatprep.subr.mxu0 0.0
    %337 = vmatpush1.msra.mxu0 0.0
    %338 = vmatprep.subr.mxu0 0.0
    %339 = vmatpush1.msra.mxu0 0.0
    %340 = vmatprep.subr.mxu0 0.0
    %341 = vmatpush1.msra.mxu0 0.0
    %342 = vmatprep.subr.mxu0 0.0
    %343 = vmatpush1.msra.mxu0 0.0
    %344 = vmatprep.subr.mxu0 0.0
    %345 = vmatpush1.msra.mxu0 0.0
    %346 = vmatprep.subr.mxu0 0.0
    %347 = vmatpush1.msra.mxu0 0.0
    %348 = vmatprep.subr.mxu0 0.0
    %349 = vmatpush1.msra.mxu0 0.0
    %350 = vmatprep.subr.mxu0 0.0
    %351 = vmatpush1.msra.mxu0 0.0
    %352 = vmatprep.subr.mxu0 0.0
    %353 = vmatpush1.msra.mxu0 0.0
    %354 = vmatprep.subr.mxu0 0.0
    %355 = vmatpush1.msra.mxu0 0.0
    %356 = vmatprep.subr.mxu0 0.0
    %357 = vmatpush1.msra.mxu0 0.0
    %358 = vmatprep.subr.mxu0 0.0
    %359 = vmatpush1.msra.mxu0 0.0
    %360 = vmatprep.subr.mxu0 0.0
    %361 = vmatpush1.msra.mxu0 0.0
    %362 = vmatprep.subr.mxu0 0.0
    %363 = vmatpush1.msra.mxu0 0.0
    %364 = vmatprep.subr.mxu0 0.0
    %365 = vmatpush1.msra.mxu0 0.0
    %366 = vmatprep.subr.mxu0 0.0
    %367 = vmatpush1.msra.mxu0 0.0
    %368 = vmatprep.subr.mxu0 0.0
    %369 = vmatpush1.msra.mxu0 0.0
    %370 = vmatprep.mubr.f32.mxu0 0.0
    %371 = vmatmul.mubr.f32.gmra.mrb[0].mxu0 %v304
    %v372 = vpop.f32.mrb[0].mxu0
    %v373 = vadd.f32 0.0, %v372
    %v374 = vpop.f32.mrb[0].mxu0
    %v375 = vadd.f32 0.0, %v374
    %376 = vdwg.mxu0
    %377 = vmatprep.subr.mxu0 %v285
    %378 = vmatpush1.msra.mxu0 %v284
    %379 = vmatprep.subr.mxu0 %v289
    %380 = vmatpush1.msra.mxu0 %v288
    %381 = vmatprep.subr.mxu0 %v293
    %382 = vmatpush1.msra.mxu0 %v292
    %383 = vmatprep.subr.mxu0 %v297
    %384 = vmatpush1.msra.mxu0 %v296
    %385 = vmatprep.subr.mxu0 %v301
    %386 = vmatpush1.msra.mxu0 %v300
    %387 = vmatprep.subr.mxu0 0.0
    %388 = vmatpush1.msra.mxu0 0.0
    %389 = vmatprep.subr.mxu0 0.0
    %390 = vmatpush1.msra.mxu0 0.0
    %391 = vmatprep.subr.mxu0 0.0
    %392 = vmatpush1.msra.mxu0 0.0
    %393 = vmatprep.subr.mxu0 0.0
    %394 = vmatpush1.msra.mxu0 0.0
    %395 = vmatprep.subr.mxu0 0.0
    %396 = vmatpush1.msra.mxu0 0.0
    %397 = vmatprep.subr.mxu0 0.0
    %398 = vmatpush1.msra.mxu0 0.0
    %399 = vmatprep.subr.mxu0 0.0
    %400 = vmatpush1.msra.mxu0 0.0
    %401 = vmatprep.subr.mxu0 0.0
    %402 = vmatpush1.msra.mxu0 0.0
    %403 = vmatprep.subr.mxu0 0.0
    %404 = vmatpush1.msra.mxu0 0.0
    %405 = vmatprep.subr.mxu0 0.0
    %406 = vmatpush1.msra.mxu0 0.0
    %407 = vmatprep.subr.mxu0 0.0
    %408 = vmatpush1.msra.mxu0 0.0
    %409 = vmatprep.subr.mxu0 0.0
    %410 = vmatpush1.msra.mxu0 0.0
    %411 = vmatprep.subr.mxu0 0.0
    %412 = vmatpush1.msra.mxu0 0.0
    %413 = vmatprep.subr.mxu0 0.0
    %414 = vmatpush1.msra.mxu0 0.0
    %415 = vmatprep.subr.mxu0 0.0
    %416 = vmatpush1.msra.mxu0 0.0
    %417 = vmatprep.subr.mxu0 0.0
    %418 = vmatpush1.msra.mxu0 0.0
    %419 = vmatprep.subr.mxu0 0.0
    %420 = vmatpush1.msra.mxu0 0.0
    %421 = vmatprep.subr.mxu0 0.0
    %422 = vmatpush1.msra.mxu0 0.0
    %423 = vmatprep.subr.mxu0 0.0
    %424 = vmatpush1.msra.mxu0 0.0
    %425 = vmatprep.subr.mxu0 0.0
    %426 = vmatpush1.msra.mxu0 0.0
    %427 = vmatprep.subr.mxu0 0.0
    %428 = vmatpush1.msra.mxu0 0.0
    %429 = vmatprep.subr.mxu0 0.0
    %430 = vmatpush1.msra.mxu0 0.0
    %431 = vmatprep.subr.mxu0 0.0
    %432 = vmatpush1.msra.mxu0 0.0
    %433 = vmatprep.subr.mxu0 0.0
    %434 = vmatpush1.msra.mxu0 0.0
    %435 = vmatprep.subr.mxu0 0.0
    %436 = vmatpush1.msra.mxu0 0.0
    %437 = vmatprep.subr.mxu0 0.0
    %438 = vmatpush1.msra.mxu0 0.0
    %439 = vmatprep.subr.mxu0 0.0
    %440 = vmatpush1.msra.mxu0 0.0
    %441 = vmatprep.mubr.f32.mxu0 0.0
    %442 = vmatmul.mubr.f32.gmra.mrb[0].mxu0 %v304
    %v443 = vpop.f32.mrb[0].mxu0
    %v444 = vadd.f32 0.0, %v443
    %v445 = vpop.f32.mrb[0].mxu0
    %v446 = vadd.f32 0.0, %v445
    %447 = vdwg.mxu0
    %448 = vst [vmem:[#allocation3] sm:$0xff] %v373
    %449 = vst [vmem:[#allocation3 + $0x8] sm:$0xff] %v375
    %450 = vst [vmem:[#allocation3 + $0x10] sm:$0xff] %v444
    %451 = vst [vmem:[#allocation3 + $0x18] sm:$0xff] %v446
    %s452 = scalar_lea.vmem [#allocation4], 576
    %v453 = vld [vmem:[%s452] ss:$8 sm:$0xf]
    %v454 = vld [vmem:[#allocation2] ss:$8 sm:$0xf]
    %v455 = vadd.f32 %v453, %v454
    %v456 = vld [vmem:[#allocation3] ss:$8 sm:$0xf]
    %v457 = vadd.f32 %v455, %v456
    %v458 = vtanh.pop %v457
    %v463 = vcombine.low %v65, %v66
    %v464 = vcombine.low %v67, %v68
    %v466 = vunpack.c.l.s4 1966171168
    %v467 = vunpack.c.0.s8 %v466
    %v468 = vlaneseq
    %v469 = vshrl.u32 %v468, 7
    %v470 = vsub.s32 %v467, %v469
    %v471 = vrot.slane %v463, %v470
    %v473 = vunpack.c.l.s4 1966171168
    %v474 = vunpack.c.0.s8 %v473
    %v475 = vlaneseq
    %v476 = vshrl.u32 %v475, 7
    %v477 = vsub.s32 %v474, %v476
    %v478 = vrot.slane %v464, %v477
    %v479 = vcombine.low %v471, %v478
    %v481 = vunpack.c.l.s4 1966171168
    %v482 = vunpack.c.0.s8 %v481
    %v483 = vlaneseq
    %v484 = vshrl.u32 %v483, 7
    %v485 = vsub.s32 %v482, %v484
    %v486 = vrot.slane %v479, %v485
    %v488 = vmul.f32 %v458, %v486
    %v493 = vcombine.low %v69, %v70
    %v494 = vcombine.low %v71, %v72
    %v496 = vunpack.c.l.s4 1966171168
    %v497 = vunpack.c.0.s8 %v496
    %v498 = vlaneseq
    %v499 = vshrl.u32 %v498, 7
    %v500 = vsub.s32 %v497, %v499
    %v501 = vrot.slane %v493, %v500
    %v503 = vunpack.c.l.s4 1966171168
    %v504 = vunpack.c.0.s8 %v503
    %v505 = vlaneseq
    %v506 = vshrl.u32 %v505, 7
    %v507 = vsub.s32 %v504, %v506
    %v508 = vrot.slane %v494, %v507
    %v509 = vcombine.low %v501, %v508
    %v511 = vunpack.c.l.s4 1966171168
    %v512 = vunpack.c.0.s8 %v511
    %v513 = vlaneseq
    %v514 = vshrl.u32 %v513, 7
    %v515 = vsub.s32 %v512, %v514
    %v516 = vrot.slane %v509, %v515
    %v518 = vadd.f32 %v488, %v516
    %v520 = vrot.slane %v518, 1
    %v522 = vmul.f32 %v520, 0.0
    %v523 = vrot.slane %v518, 2
    %v525 = vmul.f32 %v518, %v523
    %v526 = vadd.f32 %v522, %v525
    %v527 = vtanh.pop %v526
    %v528 = vrot.slane %v518, 3
    %v530 = vmul.f32 %v528, %v527
    %vm531 = vcmp.lt.s32.totalorder %v49, 32
    %vm532 = vmor %vm531, %vm75
    %v533 = vsel %vm532, %v530, 0.0
    %v534 = vsel %vm532, %v526, 0.0
    %v535 = vld [vmem:[#allocation4 + $0x260] sm:$0xff]
    %v536 = vld [vmem:[#allocation4 + $0x268] sm:$0xff]
    %v537 = vld [vmem:[#allocation4 + $0x270] sm:$0xff]
    %v538 = vld [vmem:[#allocation4 + $0x278] sm:$0xff]
    %v539 = vld [vmem:[#allocation4 + $0x280] sm:$0xff]
    %v540 = vld [vmem:[#allocation4 + $0x288] sm:$0xff]
    %v541 = vld [vmem:[#allocation4 + $0x290] sm:$0xff]
    %v542 = vld [vmem:[#allocation4 + $0x298] sm:$0xff]
    %v543 = vld [vmem:[#allocation4 + $0x2a0] sm:$0xff]
    %v544 = vld [vmem:[#allocation4 + $0x2a8] sm:$0xff]
    %v545 = vld [vmem:[#allocation4 + $0x2b0] sm:$0xff]
    %v546 = vld [vmem:[#allocation4 + $0x2b8] sm:$0xff]
    %v547 = vld [vmem:[#allocation4 + $0x2c0] sm:$0xff]
    %v548 = vld [vmem:[#allocation4 + $0x2c8] sm:$0xff]
    %v549 = vld [vmem:[#allocation4 + $0x2d0] sm:$0xff]
    %v550 = vld [vmem:[#allocation4 + $0x2d8] sm:$0xff]
    %v551 = vld [vmem:[#allocation4 + $0x2e0] sm:$0xff]
    %v552 = vld [vmem:[#allocation4 + $0x2e8] sm:$0xff]
    %v553 = vld [vmem:[#allocation4 + $0x2f0] sm:$0xff]
    %v554 = vld [vmem:[#allocation4 + $0x2f8] sm:$0xff]
    %v555 = vld [vmem:[#allocation4 + $0x300] sm:$0xff]
    %v556 = vld [vmem:[#allocation4 + $0x308] sm:$0xff]
    %v557 = vld [vmem:[#allocation4 + $0x310] sm:$0xff]
    %v558 = vld [vmem:[#allocation4 + $0x318] sm:$0xff]
    %v559 = vld [vmem:[#allocation4 + $0x320] sm:$0xff]
    %v560 = vld [vmem:[#allocation4 + $0x328] sm:$0xff]
    %v561 = vld [vmem:[#allocation4 + $0x330] sm:$0xff]
    %v562 = vld [vmem:[#allocation4 + $0x338] sm:$0xff]
    %v563 = vld [vmem:[#allocation4 + $0x340] sm:$0xff]
    %v564 = vld [vmem:[#allocation4 + $0x348] sm:$0xff]
    %v565 = vld [vmem:[#allocation4 + $0x350] sm:$0xff]
    %v566 = vld [vmem:[#allocation4 + $0x358] sm:$0xff]
    %v567 = vld [vmem:[#allocation4 + $0x360] sm:$0xff]
    %v568 = vld [vmem:[#allocation4 + $0x368] sm:$0xff]
    %v569 = vld [vmem:[#allocation4 + $0x370] sm:$0xff]
    %v570 = vld [vmem:[#allocation4 + $0x378] sm:$0xff]
    %v571 = vld [vmem:[#allocation4 + $0x380] sm:$0xff]
    %v572 = vld [vmem:[#allocation4 + $0x388] sm:$0xff]
    %v573 = vld [vmem:[#allocation4 + $0x390] sm:$0xff]
    %v574 = vld [vmem:[#allocation4 + $0x398] sm:$0xff]
    %v575 = vld [vmem:[#allocation4 + $0x3a0] sm:$0xff]
    %v576 = vld [vmem:[#allocation4 + $0x3a8] sm:$0xff]
    %v577 = vld [vmem:[#allocation4 + $0x3b0] sm:$0xff]
    %v578 = vld [vmem:[#allocation4 + $0x3b8] sm:$0xff]
    %v579 = vld [vmem:[#allocation4 + $0x3c0] sm:$0xff]
    %v580 = vld [vmem:[#allocation4 + $0x3c8] sm:$0xff]
    %v581 = vld [vmem:[#allocation4 + $0x3d0] sm:$0xff]
    %v582 = vld [vmem:[#allocation4 + $0x3d8] sm:$0xff]
    %v583 = vld [vmem:[#allocation4 + $0x3e0] sm:$0xff]
    %v584 = vld [vmem:[#allocation4 + $0x3e8] sm:$0xff]
    %v585 = vld [vmem:[#allocation4 + $0x3f0] sm:$0xff]
    %v586 = vld [vmem:[#allocation4 + $0x3f8] sm:$0xff]
    %v587 = vld [vmem:[#allocation4 + $0x400] sm:$0xff]
    %v588 = vld [vmem:[#allocation4 + $0x408] sm:$0xff]
    %v589 = vld [vmem:[#allocation4 + $0x410] sm:$0xff]
    %v590 = vld [vmem:[#allocation4 + $0x418] sm:$0xff]
    %v591 = vld [vmem:[#allocation4 + $0x420] sm:$0xff]
    %v592 = vld [vmem:[#allocation4 + $0x428] sm:$0xff]
    %v593 = vld [vmem:[#allocation4 + $0x430] sm:$0xff]
    %v594 = vld [vmem:[#allocation4 + $0x438] sm:$0xff]
    %v595 = vld [vmem:[#allocation4 + $0x440] sm:$0xff]
    %v596 = vld [vmem:[#allocation4 + $0x448] sm:$0xff]
    %v597 = vld [vmem:[#allocation4 + $0x450] sm:$0xff]
    %v598 = vld [vmem:[#allocation4 + $0x458] sm:$0xff]
    %v600 = vlaneseq
    %v601 = vshrl.u32 %v600, 7
    %v602 = vsub.s32 0, %v601
    %v603 = vrot.slane %v453, %v602
    %v604 = vlaneseq
    %v605 = vshrl.u32 %v604, 7
    %v606 = vsub.s32 1, %v605
    %v607 = vrot.slane %v453, %v606
    %v608 = vlaneseq
    %v609 = vshrl.u32 %v608, 7
    %v610 = vsub.s32 2, %v609
    %v611 = vrot.slane %v453, %v610
    %v612 = vlaneseq
    %v613 = vshrl.u32 %v612, 7
    %v614 = vsub.s32 3, %v613
    %v615 = vrot.slane %v453, %v614
    %620 = vmatprep.subr.mxu0 %v536
    %621 = vmatpush1.msra.mxu0 %v535
    %622 = vmatprep.subr.mxu0 %v540
    %623 = vmatpush1.msra.mxu0 %v539
    %624 = vmatprep.subr.mxu0 %v544
    %625 = vmatpush1.msra.mxu0 %v543
    %626 = vmatprep.subr.mxu0 %v548
    %627 = vmatpush1.msra.mxu0 %v547
    %628 = vmatprep.subr.mxu0 %v552
    %629 = vmatpush1.msra.mxu0 %v551
    %630 = vmatprep.subr.mxu0 %v556
    %631 = vmatpush1.msra.mxu0 %v555
    %632 = vmatprep.subr.mxu0 %v560
    %633 = vmatpush1.msra.mxu0 %v559
    %634 = vmatprep.subr.mxu0 %v564
    %635 = vmatpush1.msra.mxu0 %v563
    %636 = vmatprep.subr.mxu0 %v568
    %637 = vmatpush1.msra.mxu0 %v567
    %638 = vmatprep.subr.mxu0 %v572
    %639 = vmatpush1.msra.mxu0 %v571
    %640 = vmatprep.subr.mxu0 %v576
    %641 = vmatpush1.msra.mxu0 %v575
    %642 = vmatprep.subr.mxu0 %v580
    %643 = vmatpush1.msra.mxu0 %v579
    %644 = vmatprep.subr.mxu0 %v584
    %645 = vmatpush1.msra.mxu0 %v583
    %646 = vmatprep.subr.mxu0 %v588
    %647 = vmatpush1.msra.mxu0 %v587
    %648 = vmatprep.subr.mxu0 %v592
    %649 = vmatpush1.msra.mxu0 %v591
    %650 = vmatprep.subr.mxu0 %v596
    %651 = vmatpush1.msra.mxu0 %v595
    %652 = vmatprep.subr.mxu0 0.0
    %653 = vmatpush1.msra.mxu0 0.0
    %654 = vmatprep.subr.mxu0 0.0
    %655 = vmatpush1.msra.mxu0 0.0
    %656 = vmatprep.subr.mxu0 0.0
    %657 = vmatpush1.msra.mxu0 0.0
    %658 = vmatprep.subr.mxu0 0.0
    %659 = vmatpush1.msra.mxu0 0.0
    %660 = vmatprep.subr.mxu0 0.0
    %661 = vmatpush1.msra.mxu0 0.0
    %662 = vmatprep.subr.mxu0 0.0
    %663 = vmatpush1.msra.mxu0 0.0
    %664 = vmatprep.subr.mxu0 0.0
    %665 = vmatpush1.msra.mxu0 0.0
    %666 = vmatprep.subr.mxu0 0.0
    %667 = vmatpush1.msra.mxu0 0.0
    %668 = vmatprep.subr.mxu0 0.0
    %669 = vmatpush1.msra.mxu0 0.0
    %670 = vmatprep.subr.mxu0 0.0
    %671 = vmatpush1.msra.mxu0 0.0
    %672 = vmatprep.subr.mxu0 0.0
    %673 = vmatpush1.msra.mxu0 0.0
    %674 = vmatprep.subr.mxu0 0.0
    %675 = vmatpush1.msra.mxu0 0.0
    %676 = vmatprep.subr.mxu0 0.0
    %677 = vmatpush1.msra.mxu0 0.0
    %678 = vmatprep.subr.mxu0 0.0
    %679 = vmatpush1.msra.mxu0 0.0
    %680 = vmatprep.subr.mxu0 0.0
    %681 = vmatpush1.msra.mxu0 0.0
    %682 = vmatprep.subr.mxu0 0.0
    %683 = vmatpush1.msra.mxu0 0.0
    %684 = vmatprep.mubr.f32.mxu0 0.0
    %685 = vmatmul.mubr.f32.gmra.mrb[0].mxu0 %v533
    %v686 = vpop.f32.mrb[0].mxu0
    %v687 = vadd.f32 %v603, %v686
    %v688 = vpop.f32.mrb[0].mxu0
    %v689 = vadd.f32 %v607, %v688
    %690 = vdwg.mxu0
    %691 = vmatprep.subr.mxu0 %v538
    %692 = vmatpush1.msra.mxu0 %v537
    %693 = vmatprep.subr.mxu0 %v542
    %694 = vmatpush1.msra.mxu0 %v541
    %695 = vmatprep.subr.mxu0 %v546
    %696 = vmatpush1.msra.mxu0 %v545
    %697 = vmatprep.subr.mxu0 %v550
    %698 = vmatpush1.msra.mxu0 %v549
    %699 = vmatprep.subr.mxu0 %v554
    %700 = vmatpush1.msra.mxu0 %v553
    %701 = vmatprep.subr.mxu0 %v558
    %702 = vmatpush1.msra.mxu0 %v557
    %703 = vmatprep.subr.mxu0 %v562
    %704 = vmatpush1.msra.mxu0 %v561
    %705 = vmatprep.subr.mxu0 %v566
    %706 = vmatpush1.msra.mxu0 %v565
    %707 = vmatprep.subr.mxu0 %v570
    %708 = vmatpush1.msra.mxu0 %v569
    %709 = vmatprep.subr.mxu0 %v574
    %710 = vmatpush1.msra.mxu0 %v573
    %711 = vmatprep.subr.mxu0 %v578
    %712 = vmatpush1.msra.mxu0 %v577
    %713 = vmatprep.subr.mxu0 %v582
    %714 = vmatpush1.msra.mxu0 %v581
    %715 = vmatprep.subr.mxu0 %v586
    %716 = vmatpush1.msra.mxu0 %v585
    %717 = vmatprep.subr.mxu0 %v590
    %718 = vmatpush1.msra.mxu0 %v589
    %719 = vmatprep.subr.mxu0 %v594
    %720 = vmatpush1.msra.mxu0 %v593
    %721 = vmatprep.subr.mxu0 %v598
    %722 = vmatpush1.msra.mxu0 %v597
    %723 = vmatprep.subr.mxu0 0.0
    %724 = vmatpush1.msra.mxu0 0.0
    %725 = vmatprep.subr.mxu0 0.0
    %726 = vmatpush1.msra.mxu0 0.0
    %727 = vmatprep.subr.mxu0 0.0
    %728 = vmatpush1.msra.mxu0 0.0
    %729 = vmatprep.subr.mxu0 0.0
    %730 = vmatpush1.msra.mxu0 0.0
    %731 = vmatprep.subr.mxu0 0.0
    %732 = vmatpush1.msra.mxu0 0.0
    %733 = vmatprep.subr.mxu0 0.0
    %734 = vmatpush1.msra.mxu0 0.0
    %735 = vmatprep.subr.mxu0 0.0
    %736 = vmatpush1.msra.mxu0 0.0
    %737 = vmatprep.subr.mxu0 0.0
    %738 = vmatpush1.msra.mxu0 0.0
    %739 = vmatprep.subr.mxu0 0.0
    %740 = vmatpush1.msra.mxu0 0.0
    %741 = vmatprep.subr.mxu0 0.0
    %742 = vmatpush1.msra.mxu0 0.0
    %743 = vmatprep.subr.mxu0 0.0
    %744 = vmatpush1.msra.mxu0 0.0
    %745 = vmatprep.subr.mxu0 0.0
    %746 = vmatpush1.msra.mxu0 0.0
    %747 = vmatprep.subr.mxu0 0.0
    %748 = vmatpush1.msra.mxu0 0.0
    %749 = vmatprep.subr.mxu0 0.0
    %750 = vmatpush1.msra.mxu0 0.0
    %751 = vmatprep.subr.mxu0 0.0
    %752 = vmatpush1.msra.mxu0 0.0
    %753 = vmatprep.subr.mxu0 0.0
    %754 = vmatpush1.msra.mxu0 0.0
    %755 = vmatprep.mubr.f32.mxu0 0.0
    %756 = vmatmul.mubr.f32.gmra.mrb[0].mxu0 %v533
    %v757 = vpop.f32.mrb[0].mxu0
    %v758 = vadd.f32 %v611, %v757
    %v759 = vpop.f32.mrb[0].mxu0
    %v760 = vadd.f32 %v615, %v759
    %761 = vdwg.mxu0
    %s762 = scalar_lea.vmem [#allocation2], 1
    %v763 = vld [vmem:[%s762] ss:$8 sm:$0xf]
    %v765 = vlaneseq
    %v766 = vshrl.u32 %v765, 7
    %v767 = vsub.s32 0, %v766
    %v768 = vrot.slane %v763, %v767
    %v769 = vlaneseq
    %v770 = vshrl.u32 %v769, 7
    %v771 = vsub.s32 1, %v770
    %v772 = vrot.slane %v763, %v771
    %v773 = vlaneseq
    %v774 = vshrl.u32 %v773, 7
    %v775 = vsub.s32 2, %v774
    %v776 = vrot.slane %v763, %v775
    %v777 = vlaneseq
    %v778 = vshrl.u32 %v777, 7
    %v779 = vsub.s32 3, %v778
    %v780 = vrot.slane %v763, %v779
    %v785 = vadd.f32 %v687, %v768
    %v786 = vadd.f32 %v689, %v772
    %v787 = vadd.f32 %v758, %v776
    %v788 = vadd.f32 %v760, %v780
    %s789 = scalar_lea.vmem [#allocation3], 1
    %v790 = vld [vmem:[%s789] ss:$8 sm:$0xf]
    %v792 = vlaneseq
    %v793 = vshrl.u32 %v792, 7
    %v794 = vsub.s32 0, %v793
    %v795 = vrot.slane %v790, %v794
    %v796 = vlaneseq
    %v797 = vshrl.u32 %v796, 7
    %v798 = vsub.s32 1, %v797
    %v799 = vrot.slane %v790, %v798
    %v800 = vlaneseq
    %v801 = vshrl.u32 %v800, 7
    %v802 = vsub.s32 2, %v801
    %v803 = vrot.slane %v790, %v802
    %v804 = vlaneseq
    %v805 = vshrl.u32 %v804, 7
    %v806 = vsub.s32 3, %v805
    %v807 = vrot.slane %v790, %v806
    %v812 = vadd.f32 %v785, %v795
    %v813 = vadd.f32 %v786, %v799
    %v814 = vadd.f32 %v787, %v803
    %v815 = vadd.f32 %v788, %v807
    %v816 = vtanh.pop %v812
    %v817 = vtanh.pop %v813
    %v818 = vtanh.pop %v814
    %v819 = vtanh.pop %v815
    %v820 = vmul.f32 %v816, %v65
    %v821 = vmul.f32 %v817, %v66
    %v822 = vmul.f32 %v818, %v67
    %v823 = vmul.f32 %v819, %v68
    %v824 = vadd.f32 %v820, %v69
    %v825 = vadd.f32 %v821, %v70
    %v826 = vadd.f32 %v822, %v71
    %v827 = vadd.f32 %v823, %v72
    %v828 = vmul.f32 %v825, %v534
    %v829 = vmul.f32 %v824, %v826
    %v830 = vadd.f32 %v828, %v829
    %v831 = vtanh.pop %v830
    %v832 = vmul.f32 %v827, %v831
    %833 = vmatprep.subr.mxu0 %v536
    %834 = vmatpush1.msra.mxu0 %v535
    %835 = vmatprep.subr.mxu0 %v540
    %836 = vmatpush1.msra.mxu0 %v539
    %837 = vmatprep.subr.mxu0 %v544
    %838 = vmatpush1.msra.mxu0 %v543
    %839 = vmatprep.subr.mxu0 %v548
    %840 = vmatpush1.msra.mxu0 %v547
    %841 = vmatprep.subr.mxu0 %v552
    %842 = vmatpush1.msra.mxu0 %v551
    %843 = vmatprep.subr.mxu0 %v556
    %844 = vmatpush1.msra.mxu0 %v555
    %845 = vmatprep.subr.mxu0 %v560
    %846 = vmatpush1.msra.mxu0 %v559
    %847 = vmatprep.subr.mxu0 %v564
    %848 = vmatpush1.msra.mxu0 %v563
    %849 = vmatprep.subr.mxu0 %v568
    %850 = vmatpush1.msra.mxu0 %v567
    %851 = vmatprep.subr.mxu0 %v572
    %852 = vmatpush1.msra.mxu0 %v571
    %853 = vmatprep.subr.mxu0 %v576
    %854 = vmatpush1.msra.mxu0 %v575
    %855 = vmatprep.subr.mxu0 %v580
    %856 = vmatpush1.msra.mxu0 %v579
    %857 = vmatprep.subr.mxu0 %v584
    %858 = vmatpush1.msra.mxu0 %v583
    %859 = vmatprep.subr.mxu0 %v588
    %860 = vmatpush1.msra.mxu0 %v587
    %861 = vmatprep.subr.mxu0 %v592
    %862 = vmatpush1.msra.mxu0 %v591
    %863 = vmatprep.subr.mxu0 %v596
    %864 = vmatpush1.msra.mxu0 %v595
    %865 = vmatprep.subr.mxu0 0.0
    %866 = vmatpush1.msra.mxu0 0.0
    %867 = vmatprep.subr.mxu0 0.0
    %868 = vmatpush1.msra.mxu0 0.0
    %869 = vmatprep.subr.mxu0 0.0
    %870 = vmatpush1.msra.mxu0 0.0
    %871 = vmatprep.subr.mxu0 0.0
    %872 = vmatpush1.msra.mxu0 0.0
    %873 = vmatprep.subr.mxu0 0.0
    %874 = vmatpush1.msra.mxu0 0.0
    %875 = vmatprep.subr.mxu0 0.0
    %876 = vmatpush1.msra.mxu0 0.0
    %877 = vmatprep.subr.mxu0 0.0
    %878 = vmatpush1.msra.mxu0 0.0
    %879 = vmatprep.subr.mxu0 0.0
    %880 = vmatpush1.msra.mxu0 0.0
    %881 = vmatprep.subr.mxu0 0.0
    %882 = vmatpush1.msra.mxu0 0.0
    %883 = vmatprep.subr.mxu0 0.0
    %884 = vmatpush1.msra.mxu0 0.0
    %885 = vmatprep.subr.mxu0 0.0
    %886 = vmatpush1.msra.mxu0 0.0
    %887 = vmatprep.subr.mxu0 0.0
    %888 = vmatpush1.msra.mxu0 0.0
    %889 = vmatprep.subr.mxu0 0.0
    %890 = vmatpush1.msra.mxu0 0.0
    %891 = vmatprep.subr.mxu0 0.0
    %892 = vmatpush1.msra.mxu0 0.0
    %893 = vmatprep.subr.mxu0 0.0
    %894 = vmatpush1.msra.mxu0 0.0
    %895 = vmatprep.subr.mxu0 0.0
    %896 = vmatpush1.msra.mxu0 0.0
    %897 = vmatprep.mubr.f32.mxu0 0.0
    %898 = vmatmul.mubr.f32.gmra.mrb[0].mxu0 %v832
    %v899 = vpop.f32.mrb[0].mxu0
    %v900 = vadd.f32 %v603, %v899
    %v901 = vpop.f32.mrb[0].mxu0
    %v902 = vadd.f32 %v607, %v901
    %903 = vdwg.mxu0
    %904 = vmatprep.subr.mxu0 %v538
    %905 = vmatpush1.msra.mxu0 %v537
    %906 = vmatprep.subr.mxu0 %v542
    %907 = vmatpush1.msra.mxu0 %v541
    %908 = vmatprep.subr.mxu0 %v546
    %909 = vmatpush1.msra.mxu0 %v545
    %910 = vmatprep.subr.mxu0 %v550
    %911 = vmatpush1.msra.mxu0 %v549
    %912 = vmatprep.subr.mxu0 %v554
    %913 = vmatpush1.msra.mxu0 %v553
    %914 = vmatprep.subr.mxu0 %v558
    %915 = vmatpush1.msra.mxu0 %v557
    %916 = vmatprep.subr.mxu0 %v562
    %917 = vmatpush1.msra.mxu0 %v561
    %918 = vmatprep.subr.mxu0 %v566
    %919 = vmatpush1.msra.mxu0 %v565
    %920 = vmatprep.subr.mxu0 %v570
    %921 = vmatpush1.msra.mxu0 %v569
    %922 = vmatprep.subr.mxu0 %v574
    %923 = vmatpush1.msra.mxu0 %v573
    %924 = vmatprep.subr.mxu0 %v578
    %925 = vmatpush1.msra.mxu0 %v577
    %926 = vmatprep.subr.mxu0 %v582
    %927 = vmatpush1.msra.mxu0 %v581
    %928 = vmatprep.subr.mxu0 %v586
    %929 = vmatpush1.msra.mxu0 %v585
    %930 = vmatprep.subr.mxu0 %v590
    %931 = vmatpush1.msra.mxu0 %v589
    %932 = vmatprep.subr.mxu0 %v594
    %933 = vmatpush1.msra.mxu0 %v593
    %934 = vmatprep.subr.mxu0 %v598
    %935 = vmatpush1.msra.mxu0 %v597
    %936 = vmatprep.subr.mxu0 0.0
    %937 = vmatpush1.msra.mxu0 0.0
    %938 = vmatprep.subr.mxu0 0.0
    %939 = vmatpush1.msra.mxu0 0.0
    %940 = vmatprep.subr.mxu0 0.0
    %941 = vmatpush1.msra.mxu0 0.0
    %942 = vmatprep.subr.mxu0 0.0
    %943 = vmatpush1.msra.mxu0 0.0
    %944 = vmatprep.subr.mxu0 0.0
    %945 = vmatpush1.msra.mxu0 0.0
    %946 = vmatprep.subr.mxu0 0.0
    %947 = vmatpush1.msra.mxu0 0.0
    %948 = vmatprep.subr.mxu0 0.0
    %949 = vmatpush1.msra.mxu0 0.0
    %950 = vmatprep.subr.mxu0 0.0
    %951 = vmatpush1.msra.mxu0 0.0
    %952 = vmatprep.subr.mxu0 0.0
    %953 = vmatpush1.msra.mxu0 0.0
    %954 = vmatprep.subr.mxu0 0.0
    %955 = vmatpush1.msra.mxu0 0.0
    %956 = vmatprep.subr.mxu0 0.0
    %957 = vmatpush1.msra.mxu0 0.0
    %958 = vmatprep.subr.mxu0 0.0
    %959 = vmatpush1.msra.mxu0 0.0
    %960 = vmatprep.subr.mxu0 0.0
    %961 = vmatpush1.msra.mxu0 0.0
    %962 = vmatprep.subr.mxu0 0.0
    %963 = vmatpush1.msra.mxu0 0.0
    %964 = vmatprep.subr.mxu0 0.0
    %965 = vmatpush1.msra.mxu0 0.0
    %966 = vmatprep.subr.mxu0 0.0
    %967 = vmatpush1.msra.mxu0 0.0
    %968 = vmatprep.mubr.f32.mxu0 0.0
    %969 = vmatmul.mubr.f32.gmra.mrb[0].mxu0 %v832
    %v970 = vpop.f32.mrb[0].mxu0
    %v971 = vadd.f32 %v611, %v970
    %v972 = vpop.f32.mrb[0].mxu0
    %v973 = vadd.f32 %v615, %v972
    %974 = vdwg.mxu0
    %s975 = scalar_lea.vmem [#allocation2], 2
    %v976 = vld [vmem:[%s975] ss:$8 sm:$0xf]
    %v978 = vlaneseq
    %v979 = vshrl.u32 %v978, 7
    %v980 = vsub.s32 0, %v979
    %v981 = vrot.slane %v976, %v980
    %v982 = vlaneseq
    %v983 = vshrl.u32 %v982, 7
    %v984 = vsub.s32 1, %v983
    %v985 = vrot.slane %v976, %v984
    %v986 = vlaneseq
    %v987 = vshrl.u32 %v986, 7
    %v988 = vsub.s32 2, %v987
    %v989 = vrot.slane %v976, %v988
    %v990 = vlaneseq
    %v991 = vshrl.u32 %v990, 7
    %v992 = vsub.s32 3, %v991
    %v993 = vrot.slane %v976, %v992
    %v998 = vadd.f32 %v900, %v981
    %v999 = vadd.f32 %v902, %v985
    %v1000 = vadd.f32 %v971, %v989
    %v1001 = vadd.f32 %v973, %v993
    %s1002 = scalar_lea.vmem [#allocation3], 2
    %v1003 = vld [vmem:[%s1002] ss:$8 sm:$0xf]
    %v1005 = vlaneseq
    %v1006 = vshrl.u32 %v1005, 7
    %v1007 = vsub.s32 0, %v1006
    %v1008 = vrot.slane %v1003, %v1007
    %v1009 = vlaneseq
    %v1010 = vshrl.u32 %v1009, 7
    %v1011 = vsub.s32 1, %v1010
    %v1012 = vrot.slane %v1003, %v1011
    %v1013 = vlaneseq
    %v1014 = vshrl.u32 %v1013, 7
    %v1015 = vsub.s32 2, %v1014
    %v1016 = vrot.slane %v1003, %v1015
    %v1017 = vlaneseq
    %v1018 = vshrl.u32 %v1017, 7
    %v1019 = vsub.s32 3, %v1018
    %v1020 = vrot.slane %v1003, %v1019
    %v1025 = vadd.f32 %v998, %v1008
    %v1026 = vadd.f32 %v999, %v1012
    %v1027 = vadd.f32 %v1000, %v1016
    %v1028 = vadd.f32 %v1001, %v1020
    %v1029 = vtanh.pop %v1025
    %v1030 = vtanh.pop %v1026
    %v1031 = vtanh.pop %v1027
    %v1032 = vtanh.pop %v1028
    %v1033 = vmul.f32 %v1029, %v65
    %v1034 = vmul.f32 %v1030, %v66
    %v1035 = vmul.f32 %v1031, %v67
    %v1036 = vmul.f32 %v1032, %v68
    %v1037 = vadd.f32 %v1033, %v69
    %v1038 = vadd.f32 %v1034, %v70
    %v1039 = vadd.f32 %v1035, %v71
    %v1040 = vadd.f32 %v1036, %v72
    %v1041 = vmul.f32 %v1038, %v830
    %v1042 = vmul.f32 %v1037, %v1039
    %v1043 = vadd.f32 %v1041, %v1042
    %v1044 = vtanh.pop %v1043
    %v1045 = vmul.f32 %v1040, %v1044
    %1046 = vmatprep.subr.mxu0 %v536
    %1047 = vmatpush1.msra.mxu0 %v535
    %1048 = vmatprep.subr.mxu0 %v540
    %1049 = vmatpush1.msra.mxu0 %v539
    %1050 = vmatprep.subr.mxu0 %v544
    %1051 = vmatpush1.msra.mxu0 %v543
    %1052 = vmatprep.subr.mxu0 %v548
    %1053 = vmatpush1.msra.mxu0 %v547
    %1054 = vmatprep.subr.mxu0 %v552
    %1055 = vmatpush1.msra.mxu0 %v551
    %1056 = vmatprep.subr.mxu0 %v556
    %1057 = vmatpush1.msra.mxu0 %v555
    %1058 = vmatprep.subr.mxu0 %v560
    %1059 = vmatpush1.msra.mxu0 %v559
    %1060 = vmatprep.subr.mxu0 %v564
    %1061 = vmatpush1.msra.mxu0 %v563
    %1062 = vmatprep.subr.mxu0 %v568
    %1063 = vmatpush1.msra.mxu0 %v567
    %1064 = vmatprep.subr.mxu0 %v572
    %1065 = vmatpush1.msra.mxu0 %v571
    %1066 = vmatprep.subr.mxu0 %v576
    %1067 = vmatpush1.msra.mxu0 %v575
    %1068 = vmatprep.subr.mxu0 %v580
    %1069 = vmatpush1.msra.mxu0 %v579
    %1070 = vmatprep.subr.mxu0 %v584
    %1071 = vmatpush1.msra.mxu0 %v583
    %1072 = vmatprep.subr.mxu0 %v588
    %1073 = vmatpush1.msra.mxu0 %v587
    %1074 = vmatprep.subr.mxu0 %v592
    %1075 = vmatpush1.msra.mxu0 %v591
    %1076 = vmatprep.subr.mxu0 %v596
    %1077 = vmatpush1.msra.mxu0 %v595
    %1078 = vmatprep.subr.mxu0 0.0
    %1079 = vmatpush1.msra.mxu0 0.0
    %1080 = vmatprep.subr.mxu0 0.0
    %1081 = vmatpush1.msra.mxu0 0.0
    %1082 = vmatprep.subr.mxu0 0.0
    %1083 = vmatpush1.msra.mxu0 0.0
    %1084 = vmatprep.subr.mxu0 0.0
    %1085 = vmatpush1.msra.mxu0 0.0
    %1086 = vmatprep.subr.mxu0 0.0
    %1087 = vmatpush1.msra.mxu0 0.0
    %1088 = vmatprep.subr.mxu0 0.0
    %1089 = vmatpush1.msra.mxu0 0.0
    %1090 = vmatprep.subr.mxu0 0.0
    %1091 = vmatpush1.msra.mxu0 0.0
    %1092 = vmatprep.subr.mxu0 0.0
    %1093 = vmatpush1.msra.mxu0 0.0
    %1094 = vmatprep.subr.mxu0 0.0
    %1095 = vmatpush1.msra.mxu0 0.0
    %1096 = vmatprep.subr.mxu0 0.0
    %1097 = vmatpush1.msra.mxu0 0.0
    %1098 = vmatprep.subr.mxu0 0.0
    %1099 = vmatpush1.msra.mxu0 0.0
    %1100 = vmatprep.subr.mxu0 0.0
    %1101 = vmatpush1.msra.mxu0 0.0
    %1102 = vmatprep.subr.mxu0 0.0
    %1103 = vmatpush1.msra.mxu0 0.0
    %1104 = vmatprep.subr.mxu0 0.0
    %1105 = vmatpush1.msra.mxu0 0.0
    %1106 = vmatprep.subr.mxu0 0.0
    %1107 = vmatpush1.msra.mxu0 0.0
    %1108 = vmatprep.subr.mxu0 0.0
    %1109 = vmatpush1.msra.mxu0 0.0
    %1110 = vmatprep.mubr.f32.mxu0 0.0
    %1111 = vmatmul.mubr.f32.gmra.mrb[0].mxu0 %v1045
    %v1112 = vpop.f32.mrb[0].mxu0
    %v1113 = vadd.f32 %v603, %v1112
    %v1114 = vpop.f32.mrb[0].mxu0
    %v1115 = vadd.f32 %v607, %v1114
    %1116 = vdwg.mxu0
    %1117 = vmatprep.subr.mxu0 %v538
    %1118 = vmatpush1.msra.mxu0 %v537
    %1119 = vmatprep.subr.mxu0 %v542
    %1120 = vmatpush1.msra.mxu0 %v541
    %1121 = vmatprep.subr.mxu0 %v546
    %1122 = vmatpush1.msra.mxu0 %v545
    %1123 = vmatprep.subr.mxu0 %v550
    %1124 = vmatpush1.msra.mxu0 %v549
    %1125 = vmatprep.subr.mxu0 %v554
    %1126 = vmatpush1.msra.mxu0 %v553
    %1127 = vmatprep.subr.mxu0 %v558
    %1128 = vmatpush1.msra.mxu0 %v557
    %1129 = vmatprep.subr.mxu0 %v562
    %1130 = vmatpush1.msra.mxu0 %v561
    %1131 = vmatprep.subr.mxu0 %v566
    %1132 = vmatpush1.msra.mxu0 %v565
    %1133 = vmatprep.subr.mxu0 %v570
    %1134 = vmatpush1.msra.mxu0 %v569
    %1135 = vmatprep.subr.mxu0 %v574
    %1136 = vmatpush1.msra.mxu0 %v573
    %1137 = vmatprep.subr.mxu0 %v578
    %1138 = vmatpush1.msra.mxu0 %v577
    %1139 = vmatprep.subr.mxu0 %v582
    %1140 = vmatpush1.msra.mxu0 %v581
    %1141 = vmatprep.subr.mxu0 %v586
    %1142 = vmatpush1.msra.mxu0 %v585
    %1143 = vmatprep.subr.mxu0 %v590
    %1144 = vmatpush1.msra.mxu0 %v589
    %1145 = vmatprep.subr.mxu0 %v594
    %1146 = vmatpush1.msra.mxu0 %v593
    %1147 = vmatprep.subr.mxu0 %v598
    %1148 = vmatpush1.msra.mxu0 %v597
    %1149 = vmatprep.subr.mxu0 0.0
    %1150 = vmatpush1.msra.mxu0 0.0
    %1151 = vmatprep.subr.mxu0 0.0
    %1152 = vmatpush1.msra.mxu0 0.0
    %1153 = vmatprep.subr.mxu0 0.0
    %1154 = vmatpush1.msra.mxu0 0.0
    %1155 = vmatprep.subr.mxu0 0.0
    %1156 = vmatpush1.msra.mxu0 0.0
    %1157 = vmatprep.subr.mxu0 0.0
    %1158 = vmatpush1.msra.mxu0 0.0
    %1159 = vmatprep.subr.mxu0 0.0
    %1160 = vmatpush1.msra.mxu0 0.0
    %1161 = vmatprep.subr.mxu0 0.0
    %1162 = vmatpush1.msra.mxu0 0.0
    %1163 = vmatprep.subr.mxu0 0.0
    %1164 = vmatpush1.msra.mxu0 0.0
    %1165 = vmatprep.subr.mxu0 0.0
    %1166 = vmatpush1.msra.mxu0 0.0
    %1167 = vmatprep.subr.mxu0 0.0
    %1168 = vmatpush1.msra.mxu0 0.0
    %1169 = vmatprep.subr.mxu0 0.0
    %1170 = vmatpush1.msra.mxu0 0.0
    %1171 = vmatprep.subr.mxu0 0.0
    %1172 = vmatpush1.msra.mxu0 0.0
    %1173 = vmatprep.subr.mxu0 0.0
    %1174 = vmatpush1.msra.mxu0 0.0
    %1175 = vmatprep.subr.mxu0 0.0
    %1176 = vmatpush1.msra.mxu0 0.0
    %1177 = vmatprep.subr.mxu0 0.0
    %1178 = vmatpush1.msra.mxu0 0.0
    %1179 = vmatprep.subr.mxu0 0.0
    %1180 = vmatpush1.msra.mxu0 0.0
    %1181 = vmatprep.mubr.f32.mxu0 0.0
    %1182 = vmatmul.mubr.f32.gmra.mrb[0].mxu0 %v1045
    %v1183 = vpop.f32.mrb[0].mxu0
    %v1184 = vadd.f32 %v611, %v1183
    %v1185 = vpop.f32.mrb[0].mxu0
    %v1186 = vadd.f32 %v615, %v1185
    %1187 = vdwg.mxu0
    %s1188 = scalar_lea.vmem [#allocation2], 3
    %v1189 = vld [vmem:[%s1188] ss:$8 sm:$0xf]
    %v1191 = vlaneseq
    %v1192 = vshrl.u32 %v1191, 7
    %v1193 = vsub.s32 0, %v1192
    %v1194 = vrot.slane %v1189, %v1193
    %v1195 = vlaneseq
    %v1196 = vshrl.u32 %v1195, 7
    %v1197 = vsub.s32 1, %v1196
    %v1198 = vrot.slane %v1189, %v1197
    %v1199 = vlaneseq
    %v1200 = vshrl.u32 %v1199, 7
    %v1201 = vsub.s32 2, %v1200
    %v1202 = vrot.slane %v1189, %v1201
    %v1203 = vlaneseq
    %v1204 = vshrl.u32 %v1203, 7
    %v1205 = vsub.s32 3, %v1204
    %v1206 = vrot.slane %v1189, %v1205
    %v1211 = vadd.f32 %v1113, %v1194
    %v1212 = vadd.f32 %v1115, %v1198
    %v1213 = vadd.f32 %v1184, %v1202
    %v1214 = vadd.f32 %v1186, %v1206
    %s1215 = scalar_lea.vmem [#allocation3], 3
    %v1216 = vld [vmem:[%s1215] ss:$8 sm:$0xf]
    %v1218 = vlaneseq
    %v1219 = vshrl.u32 %v1218, 7
    %v1220 = vsub.s32 0, %v1219
    %v1221 = vrot.slane %v1216, %v1220
    %v1222 = vlaneseq
    %v1223 = vshrl.u32 %v1222, 7
    %v1224 = vsub.s32 1, %v1223
    %v1225 = vrot.slane %v1216, %v1224
    %v1226 = vlaneseq
    %v1227 = vshrl.u32 %v1226, 7
    %v1228 = vsub.s32 2, %v1227
    %v1229 = vrot.slane %v1216, %v1228
    %v1230 = vlaneseq
    %v1231 = vshrl.u32 %v1230, 7
    %v1232 = vsub.s32 3, %v1231
    %v1233 = vrot.slane %v1216, %v1232
    %v1238 = vadd.f32 %v1211, %v1221
    %v1239 = vadd.f32 %v1212, %v1225
    %v1240 = vadd.f32 %v1213, %v1229
    %v1241 = vadd.f32 %v1214, %v1233
    %v1242 = vtanh.pop %v1238
    %v1243 = vtanh.pop %v1239
    %v1244 = vtanh.pop %v1240
    %v1245 = vtanh.pop %v1241
    %v1246 = vmul.f32 %v1242, %v65
    %v1247 = vmul.f32 %v1243, %v66
    %v1248 = vmul.f32 %v1244, %v67
    %v1249 = vmul.f32 %v1245, %v68
    %v1250 = vadd.f32 %v1246, %v69
    %v1251 = vadd.f32 %v1247, %v70
    %v1252 = vadd.f32 %v1248, %v71
    %v1253 = vadd.f32 %v1249, %v72
    %v1254 = vmul.f32 %v1251, %v1043
    %v1255 = vmul.f32 %v1250, %v1252
    %v1256 = vadd.f32 %v1254, %v1255
    %v1257 = vtanh.pop %v1256
    %v1258 = vmul.f32 %v1253, %v1257
    %1259 = vmatprep.subr.mxu0 %v536
    %1260 = vmatpush1.msra.mxu0 %v535
    %1261 = vmatprep.subr.mxu0 %v540
    %1262 = vmatpush1.msra.mxu0 %v539
    %1263 = vmatprep.subr.mxu0 %v544
    %1264 = vmatpush1.msra.mxu0 %v543
    %1265 = vmatprep.subr.mxu0 %v548
    %1266 = vmatpush1.msra.mxu0 %v547
    %1267 = vmatprep.subr.mxu0 %v552
    %1268 = vmatpush1.msra.mxu0 %v551
    %1269 = vmatprep.subr.mxu0 %v556
    %1270 = vmatpush1.msra.mxu0 %v555
    %1271 = vmatprep.subr.mxu0 %v560
    %1272 = vmatpush1.msra.mxu0 %v559
    %1273 = vmatprep.subr.mxu0 %v564
    %1274 = vmatpush1.msra.mxu0 %v563
    %1275 = vmatprep.subr.mxu0 %v568
    %1276 = vmatpush1.msra.mxu0 %v567
    %1277 = vmatprep.subr.mxu0 %v572
    %1278 = vmatpush1.msra.mxu0 %v571
    %1279 = vmatprep.subr.mxu0 %v576
    %1280 = vmatpush1.msra.mxu0 %v575
    %1281 = vmatprep.subr.mxu0 %v580
    %1282 = vmatpush1.msra.mxu0 %v579
    %1283 = vmatprep.subr.mxu0 %v584
    %1284 = vmatpush1.msra.mxu0 %v583
    %1285 = vmatprep.subr.mxu0 %v588
    %1286 = vmatpush1.msra.mxu0 %v587
    %1287 = vmatprep.subr.mxu0 %v592
    %1288 = vmatpush1.msra.mxu0 %v591
    %1289 = vmatprep.subr.mxu0 %v596
    %1290 = vmatpush1.msra.mxu0 %v595
    %1291 = vmatprep.subr.mxu0 0.0
    %1292 = vmatpush1.msra.mxu0 0.0
    %1293 = vmatprep.subr.mxu0 0.0
    %1294 = vmatpush1.msra.mxu0 0.0
    %1295 = vmatprep.subr.mxu0 0.0
    %1296 = vmatpush1.msra.mxu0 0.0
    %1297 = vmatprep.subr.mxu0 0.0
    %1298 = vmatpush1.msra.mxu0 0.0
    %1299 = vmatprep.subr.mxu0 0.0
    %1300 = vmatpush1.msra.mxu0 0.0
    %1301 = vmatprep.subr.mxu0 0.0
    %1302 = vmatpush1.msra.mxu0 0.0
    %1303 = vmatprep.subr.mxu0 0.0
    %1304 = vmatpush1.msra.mxu0 0.0
    %1305 = vmatprep.subr.mxu0 0.0
    %1306 = vmatpush1.msra.mxu0 0.0
    %1307 = vmatprep.subr.mxu0 0.0
    %1308 = vmatpush1.msra.mxu0 0.0
    %1309 = vmatprep.subr.mxu0 0.0
    %1310 = vmatpush1.msra.mxu0 0.0
    %1311 = vmatprep.subr.mxu0 0.0
    %1312 = vmatpush1.msra.mxu0 0.0
    %1313 = vmatprep.subr.mxu0 0.0
    %1314 = vmatpush1.msra.mxu0 0.0
    %1315 = vmatprep.subr.mxu0 0.0
    %1316 = vmatpush1.msra.mxu0 0.0
    %1317 = vmatprep.subr.mxu0 0.0
    %1318 = vmatpush1.msra.mxu0 0.0
    %1319 = vmatprep.subr.mxu0 0.0
    %1320 = vmatpush1.msra.mxu0 0.0
    %1321 = vmatprep.subr.mxu0 0.0
    %1322 = vmatpush1.msra.mxu0 0.0
    %1323 = vmatprep.mubr.f32.mxu0 0.0
    %1324 = vmatmul.mubr.f32.gmra.mrb[0].mxu0 %v1258
    %v1325 = vpop.f32.mrb[0].mxu0
    %v1326 = vadd.f32 %v603, %v1325
    %v1327 = vpop.f32.mrb[0].mxu0
    %v1328 = vadd.f32 %v607, %v1327
    %1329 = vdwg.mxu0
    %1330 = vmatprep.subr.mxu0 %v538
    %1331 = vmatpush1.msra.mxu0 %v537
    %1332 = vmatprep.subr.mxu0 %v542
    %1333 = vmatpush1.msra.mxu0 %v541
    %1334 = vmatprep.subr.mxu0 %v546
    %1335 = vmatpush1.msra.mxu0 %v545
    %1336 = vmatprep.subr.mxu0 %v550
    %1337 = vmatpush1.msra.mxu0 %v549
    %1338 = vmatprep.subr.mxu0 %v554
    %1339 = vmatpush1.msra.mxu0 %v553
    %1340 = vmatprep.subr.mxu0 %v558
    %1341 = vmatpush1.msra.mxu0 %v557
    %1342 = vmatprep.subr.mxu0 %v562
    %1343 = vmatpush1.msra.mxu0 %v561
    %1344 = vmatprep.subr.mxu0 %v566
    %1345 = vmatpush1.msra.mxu0 %v565
    %1346 = vmatprep.subr.mxu0 %v570
    %1347 = vmatpush1.msra.mxu0 %v569
    %1348 = vmatprep.subr.mxu0 %v574
    %1349 = vmatpush1.msra.mxu0 %v573
    %1350 = vmatprep.subr.mxu0 %v578
    %1351 = vmatpush1.msra.mxu0 %v577
    %1352 = vmatprep.subr.mxu0 %v582
    %1353 = vmatpush1.msra.mxu0 %v581
    %1354 = vmatprep.subr.mxu0 %v586
    %1355 = vmatpush1.msra.mxu0 %v585
    %1356 = vmatprep.subr.mxu0 %v590
    %1357 = vmatpush1.msra.mxu0 %v589
    %1358 = vmatprep.subr.mxu0 %v594
    %1359 = vmatpush1.msra.mxu0 %v593
    %1360 = vmatprep.subr.mxu0 %v598
    %1361 = vmatpush1.msra.mxu0 %v597
    %1362 = vmatprep.subr.mxu0 0.0
    %1363 = vmatpush1.msra.mxu0 0.0
    %1364 = vmatprep.subr.mxu0 0.0
    %1365 = vmatpush1.msra.mxu0 0.0
    %1366 = vmatprep.subr.mxu0 0.0
    %1367 = vmatpush1.msra.mxu0 0.0
    %1368 = vmatprep.subr.mxu0 0.0
    %1369 = vmatpush1.msra.mxu0 0.0
    %1370 = vmatprep.subr.mxu0 0.0
    %1371 = vmatpush1.msra.mxu0 0.0
    %1372 = vmatprep.subr.mxu0 0.0
    %1373 = vmatpush1.msra.mxu0 0.0
    %1374 = vmatprep.subr.mxu0 0.0
    %1375 = vmatpush1.msra.mxu0 0.0
    %1376 = vmatprep.subr.mxu0 0.0
    %1377 = vmatpush1.msra.mxu0 0.0
    %1378 = vmatprep.subr.mxu0 0.0
    %1379 = vmatpush1.msra.mxu0 0.0
    %1380 = vmatprep.subr.mxu0 0.0
    %1381 = vmatpush1.msra.mxu0 0.0
    %1382 = vmatprep.subr.mxu0 0.0
    %1383 = vmatpush1.msra.mxu0 0.0
    %1384 = vmatprep.subr.mxu0 0.0
    %1385 = vmatpush1.msra.mxu0 0.0
    %1386 = vmatprep.subr.mxu0 0.0
    %1387 = vmatpush1.msra.mxu0 0.0
    %1388 = vmatprep.subr.mxu0 0.0
    %1389 = vmatpush1.msra.mxu0 0.0
    %1390 = vmatprep.subr.mxu0 0.0
    %1391 = vmatpush1.msra.mxu0 0.0
    %1392 = vmatprep.subr.mxu0 0.0
    %1393 = vmatpush1.msra.mxu0 0.0
    %1394 = vmatprep.mubr.f32.mxu0 0.0
    %1395 = vmatmul.mubr.f32.gmra.mrb[0].mxu0 %v1258
    %v1396 = vpop.f32.mrb[0].mxu0
    %v1397 = vadd.f32 %v611, %v1396
    %v1398 = vpop.f32.mrb[0].mxu0
    %v1399 = vadd.f32 %v615, %v1398
    %1400 = vdwg.mxu0
    %s1401 = scalar_lea.vmem [#allocation2], 4
    %v1402 = vld [vmem:[%s1401] ss:$8 sm:$0xf]
    %v1404 = vlaneseq
    %v1405 = vshrl.u32 %v1404, 7
    %v1406 = vsub.s32 0, %v1405
    %v1407 = vrot.slane %v1402, %v1406
    %v1408 = vlaneseq
    %v1409 = vshrl.u32 %v1408, 7
    %v1410 = vsub.s32 1, %v1409
    %v1411 = vrot.slane %v1402, %v1410
    %v1412 = vlaneseq
    %v1413 = vshrl.u32 %v1412, 7
    %v1414 = vsub.s32 2, %v1413
    %v1415 = vrot.slane %v1402, %v1414
    %v1416 = vlaneseq
    %v1417 = vshrl.u32 %v1416, 7
    %v1418 = vsub.s32 3, %v1417
    %v1419 = vrot.slane %v1402, %v1418
    %v1424 = vadd.f32 %v1326, %v1407
    %v1425 = vadd.f32 %v1328, %v1411
    %v1426 = vadd.f32 %v1397, %v1415
    %v1427 = vadd.f32 %v1399, %v1419
    %s1428 = scalar_lea.vmem [#allocation3], 4
    %v1429 = vld [vmem:[%s1428] ss:$8 sm:$0xf]
    %v1431 = vlaneseq
    %v1432 = vshrl.u32 %v1431, 7
    %v1433 = vsub.s32 0, %v1432
    %v1434 = vrot.slane %v1429, %v1433
    %v1435 = vlaneseq
    %v1436 = vshrl.u32 %v1435, 7
    %v1437 = vsub.s32 1, %v1436
    %v1438 = vrot.slane %v1429, %v1437
    %v1439 = vlaneseq
    %v1440 = vshrl.u32 %v1439, 7
    %v1441 = vsub.s32 2, %v1440
    %v1442 = vrot.slane %v1429, %v1441
    %v1443 = vlaneseq
    %v1444 = vshrl.u32 %v1443, 7
    %v1445 = vsub.s32 3, %v1444
    %v1446 = vrot.slane %v1429, %v1445
    %v1451 = vadd.f32 %v1424, %v1434
    %v1452 = vadd.f32 %v1425, %v1438
    %v1453 = vadd.f32 %v1426, %v1442
    %v1454 = vadd.f32 %v1427, %v1446
    %v1455 = vtanh.pop %v1451
    %v1456 = vtanh.pop %v1452
    %v1457 = vtanh.pop %v1453
    %v1458 = vtanh.pop %v1454
    %v1459 = vmul.f32 %v1455, %v65
    %v1460 = vmul.f32 %v1456, %v66
    %v1461 = vmul.f32 %v1457, %v67
    %v1462 = vmul.f32 %v1458, %v68
    %v1463 = vadd.f32 %v1459, %v69
    %v1464 = vadd.f32 %v1460, %v70
    %v1465 = vadd.f32 %v1461, %v71
    %v1466 = vadd.f32 %v1462, %v72
    %v1467 = vmul.f32 %v1464, %v1256
    %v1468 = vmul.f32 %v1463, %v1465
    %v1469 = vadd.f32 %v1467, %v1468
    %v1470 = vtanh.pop %v1469
    %v1471 = vmul.f32 %v1466, %v1470
    %1472 = vmatprep.subr.mxu0 %v536
    %1473 = vmatpush1.msra.mxu0 %v535
    %1474 = vmatprep.subr.mxu0 %v540
    %1475 = vmatpush1.msra.mxu0 %v539
    %1476 = vmatprep.subr.mxu0 %v544
    %1477 = vmatpush1.msra.mxu0 %v543
    %1478 = vmatprep.subr.mxu0 %v548
    %1479 = vmatpush1.msra.mxu0 %v547
    %1480 = vmatprep.subr.mxu0 %v552
    %1481 = vmatpush1.msra.mxu0 %v551
    %1482 = vmatprep.subr.mxu0 %v556
    %1483 = vmatpush1.msra.mxu0 %v555
    %1484 = vmatprep.subr.mxu0 %v560
    %1485 = vmatpush1.msra.mxu0 %v559
    %1486 = vmatprep.subr.mxu0 %v564
    %1487 = vmatpush1.msra.mxu0 %v563
    %1488 = vmatprep.subr.mxu0 %v568
    %1489 = vmatpush1.msra.mxu0 %v567
    %1490 = vmatprep.subr.mxu0 %v572
    %1491 = vmatpush1.msra.mxu0 %v571
    %1492 = vmatprep.subr.mxu0 %v576
    %1493 = vmatpush1.msra.mxu0 %v575
    %1494 = vmatprep.subr.mxu0 %v580
    %1495 = vmatpush1.msra.mxu0 %v579
    %1496 = vmatprep.subr.mxu0 %v584
    %1497 = vmatpush1.msra.mxu0 %v583
    %1498 = vmatprep.subr.mxu0 %v588
    %1499 = vmatpush1.msra.mxu0 %v587
    %1500 = vmatprep.subr.mxu0 %v592
    %1501 = vmatpush1.msra.mxu0 %v591
    %1502 = vmatprep.subr.mxu0 %v596
    %1503 = vmatpush1.msra.mxu0 %v595
    %1504 = vmatprep.subr.mxu0 0.0
    %1505 = vmatpush1.msra.mxu0 0.0
    %1506 = vmatprep.subr.mxu0 0.0
    %1507 = vmatpush1.msra.mxu0 0.0
    %1508 = vmatprep.subr.mxu0 0.0
    %1509 = vmatpush1.msra.mxu0 0.0
    %1510 = vmatprep.subr.mxu0 0.0
    %1511 = vmatpush1.msra.mxu0 0.0
    %1512 = vmatprep.subr.mxu0 0.0
    %1513 = vmatpush1.msra.mxu0 0.0
    %1514 = vmatprep.subr.mxu0 0.0
    %1515 = vmatpush1.msra.mxu0 0.0
    %1516 = vmatprep.subr.mxu0 0.0
    %1517 = vmatpush1.msra.mxu0 0.0
    %1518 = vmatprep.subr.mxu0 0.0
    %1519 = vmatpush1.msra.mxu0 0.0
    %1520 = vmatprep.subr.mxu0 0.0
    %1521 = vmatpush1.msra.mxu0 0.0
    %1522 = vmatprep.subr.mxu0 0.0
    %1523 = vmatpush1.msra.mxu0 0.0
    %1524 = vmatprep.subr.mxu0 0.0
    %1525 = vmatpush1.msra.mxu0 0.0
    %1526 = vmatprep.subr.mxu0 0.0
    %1527 = vmatpush1.msra.mxu0 0.0
    %1528 = vmatprep.subr.mxu0 0.0
    %1529 = vmatpush1.msra.mxu0 0.0
    %1530 = vmatprep.subr.mxu0 0.0
    %1531 = vmatpush1.msra.mxu0 0.0
    %1532 = vmatprep.subr.mxu0 0.0
    %1533 = vmatpush1.msra.mxu0 0.0
    %1534 = vmatprep.subr.mxu0 0.0
    %1535 = vmatpush1.msra.mxu0 0.0
    %1536 = vmatprep.mubr.f32.mxu0 0.0
    %1537 = vmatmul.mubr.f32.gmra.mrb[0].mxu0 %v1471
    %v1538 = vpop.f32.mrb[0].mxu0
    %v1539 = vadd.f32 %v603, %v1538
    %v1540 = vpop.f32.mrb[0].mxu0
    %v1541 = vadd.f32 %v607, %v1540
    %1542 = vdwg.mxu0
    %1543 = vmatprep.subr.mxu0 %v538
    %1544 = vmatpush1.msra.mxu0 %v537
    %1545 = vmatprep.subr.mxu0 %v542
    %1546 = vmatpush1.msra.mxu0 %v541
    %1547 = vmatprep.subr.mxu0 %v546
    %1548 = vmatpush1.msra.mxu0 %v545
    %1549 = vmatprep.subr.mxu0 %v550
    %1550 = vmatpush1.msra.mxu0 %v549
    %1551 = vmatprep.subr.mxu0 %v554
    %1552 = vmatpush1.msra.mxu0 %v553
    %1553 = vmatprep.subr.mxu0 %v558
    %1554 = vmatpush1.msra.mxu0 %v557
    %1555 = vmatprep.subr.mxu0 %v562
    %1556 = vmatpush1.msra.mxu0 %v561
    %1557 = vmatprep.subr.mxu0 %v566
    %1558 = vmatpush1.msra.mxu0 %v565
    %1559 = vmatprep.subr.mxu0 %v570
    %1560 = vmatpush1.msra.mxu0 %v569
    %1561 = vmatprep.subr.mxu0 %v574
    %1562 = vmatpush1.msra.mxu0 %v573
    %1563 = vmatprep.subr.mxu0 %v578
    %1564 = vmatpush1.msra.mxu0 %v577
    %1565 = vmatprep.subr.mxu0 %v582
    %1566 = vmatpush1.msra.mxu0 %v581
    %1567 = vmatprep.subr.mxu0 %v586
    %1568 = vmatpush1.msra.mxu0 %v585
    %1569 = vmatprep.subr.mxu0 %v590
    %1570 = vmatpush1.msra.mxu0 %v589
    %1571 = vmatprep.subr.mxu0 %v594
    %1572 = vmatpush1.msra.mxu0 %v593
    %1573 = vmatprep.subr.mxu0 %v598
    %1574 = vmatpush1.msra.mxu0 %v597
    %1575 = vmatprep.subr.mxu0 0.0
    %1576 = vmatpush1.msra.mxu0 0.0
    %1577 = vmatprep.subr.mxu0 0.0
    %1578 = vmatpush1.msra.mxu0 0.0
    %1579 = vmatprep.subr.mxu0 0.0
    %1580 = vmatpush1.msra.mxu0 0.0
    %1581 = vmatprep.subr.mxu0 0.0
    %1582 = vmatpush1.msra.mxu0 0.0
    %1583 = vmatprep.subr.mxu0 0.0
    %1584 = vmatpush1.msra.mxu0 0.0
    %1585 = vmatprep.subr.mxu0 0.0
    %1586 = vmatpush1.msra.mxu0 0.0
    %1587 = vmatprep.subr.mxu0 0.0
    %1588 = vmatpush1.msra.mxu0 0.0
    %1589 = vmatprep.subr.mxu0 0.0
    %1590 = vmatpush1.msra.mxu0 0.0
    %1591 = vmatprep.subr.mxu0 0.0
    %1592 = vmatpush1.msra.mxu0 0.0
    %1593 = vmatprep.subr.mxu0 0.0
    %1594 = vmatpush1.msra.mxu0 0.0
    %1595 = vmatprep.subr.mxu0 0.0
    %1596 = vmatpush1.msra.mxu0 0.0
    %1597 = vmatprep.subr.mxu0 0.0
    %1598 = vmatpush1.msra.mxu0 0.0
    %1599 = vmatprep.subr.mxu0 0.0
    %1600 = vmatpush1.msra.mxu0 0.0
    %1601 = vmatprep.subr.mxu0 0.0
    %1602 = vmatpush1.msra.mxu0 0.0
    %1603 = vmatprep.subr.mxu0 0.0
    %1604 = vmatpush1.msra.mxu0 0.0
    %1605 = vmatprep.subr.mxu0 0.0
    %1606 = vmatpush1.msra.mxu0 0.0
    %1607 = vmatprep.mubr.f32.mxu0 0.0
    %1608 = vmatmul.mubr.f32.gmra.mrb[0].mxu0 %v1471
    %v1609 = vpop.f32.mrb[0].mxu0
    %v1610 = vadd.f32 %v611, %v1609
    %v1611 = vpop.f32.mrb[0].mxu0
    %v1612 = vadd.f32 %v615, %v1611
    %1613 = vdwg.mxu0
    %s1614 = scalar_lea.vmem [#allocation2], 5
    %v1615 = vld [vmem:[%s1614] ss:$8 sm:$0xf]
    %v1617 = vlaneseq
    %v1618 = vshrl.u32 %v1617, 7
    %v1619 = vsub.s32 0, %v1618
    %v1620 = vrot.slane %v1615, %v1619
    %v1621 = vlaneseq
    %v1622 = vshrl.u32 %v1621, 7
    %v1623 = vsub.s32 1, %v1622
    %v1624 = vrot.slane %v1615, %v1623
    %v1625 = vlaneseq
    %v1626 = vshrl.u32 %v1625, 7
    %v1627 = vsub.s32 2, %v1626
    %v1628 = vrot.slane %v1615, %v1627
    %v1629 = vlaneseq
    %v1630 = vshrl.u32 %v1629, 7
    %v1631 = vsub.s32 3, %v1630
    %v1632 = vrot.slane %v1615, %v1631
    %v1637 = vadd.f32 %v1539, %v1620
    %v1638 = vadd.f32 %v1541, %v1624
    %v1639 = vadd.f32 %v1610, %v1628
    %v1640 = vadd.f32 %v1612, %v1632
    %s1641 = scalar_lea.vmem [#allocation3], 5
    %v1642 = vld [vmem:[%s1641] ss:$8 sm:$0xf]
    %v1644 = vlaneseq
    %v1645 = vshrl.u32 %v1644, 7
    %v1646 = vsub.s32 0, %v1645
    %v1647 = vrot.slane %v1642, %v1646
    %v1648 = vlaneseq
    %v1649 = vshrl.u32 %v1648, 7
    %v1650 = vsub.s32 1, %v1649
    %v1651 = vrot.slane %v1642, %v1650
    %v1652 = vlaneseq
    %v1653 = vshrl.u32 %v1652, 7
    %v1654 = vsub.s32 2, %v1653
    %v1655 = vrot.slane %v1642, %v1654
    %v1656 = vlaneseq
    %v1657 = vshrl.u32 %v1656, 7
    %v1658 = vsub.s32 3, %v1657
    %v1659 = vrot.slane %v1642, %v1658
    %v1664 = vadd.f32 %v1637, %v1647
    %v1665 = vadd.f32 %v1638, %v1651
    %v1666 = vadd.f32 %v1639, %v1655
    %v1667 = vadd.f32 %v1640, %v1659
    %v1668 = vtanh.pop %v1664
    %v1669 = vtanh.pop %v1665
    %v1670 = vtanh.pop %v1666
    %v1671 = vtanh.pop %v1667
    %v1672 = vmul.f32 %v1668, %v65
    %v1673 = vmul.f32 %v1669, %v66
    %v1674 = vmul.f32 %v1670, %v67
    %v1675 = vmul.f32 %v1671, %v68
    %v1676 = vadd.f32 %v1672, %v69
    %v1677 = vadd.f32 %v1673, %v70
    %v1678 = vadd.f32 %v1674, %v71
    %v1679 = vadd.f32 %v1675, %v72
    %v1680 = vmul.f32 %v1677, %v1469
    %v1681 = vmul.f32 %v1676, %v1678
    %v1682 = vadd.f32 %v1680, %v1681
    %v1683 = vtanh.pop %v1682
    %v1684 = vmul.f32 %v1679, %v1683
    %1685 = vmatprep.subr.mxu0 %v536
    %1686 = vmatpush1.msra.mxu0 %v535
    %1687 = vmatprep.subr.mxu0 %v540
    %1688 = vmatpush1.msra.mxu0 %v539
    %1689 = vmatprep.subr.mxu0 %v544
    %1690 = vmatpush1.msra.mxu0 %v543
    %1691 = vmatprep.subr.mxu0 %v548
    %1692 = vmatpush1.msra.mxu0 %v547
    %1693 = vmatprep.subr.mxu0 %v552
    %1694 = vmatpush1.msra.mxu0 %v551
    %1695 = vmatprep.subr.mxu0 %v556
    %1696 = vmatpush1.msra.mxu0 %v555
    %1697 = vmatprep.subr.mxu0 %v560
    %1698 = vmatpush1.msra.mxu0 %v559
    %1699 = vmatprep.subr.mxu0 %v564
    %1700 = vmatpush1.msra.mxu0 %v563
    %1701 = vmatprep.subr.mxu0 %v568
    %1702 = vmatpush1.msra.mxu0 %v567
    %1703 = vmatprep.subr.mxu0 %v572
    %1704 = vmatpush1.msra.mxu0 %v571
    %1705 = vmatprep.subr.mxu0 %v576
    %1706 = vmatpush1.msra.mxu0 %v575
    %1707 = vmatprep.subr.mxu0 %v580
    %1708 = vmatpush1.msra.mxu0 %v579
    %1709 = vmatprep.subr.mxu0 %v584
    %1710 = vmatpush1.msra.mxu0 %v583
    %1711 = vmatprep.subr.mxu0 %v588
    %1712 = vmatpush1.msra.mxu0 %v587
    %1713 = vmatprep.subr.mxu0 %v592
    %1714 = vmatpush1.msra.mxu0 %v591
    %1715 = vmatprep.subr.mxu0 %v596
    %1716 = vmatpush1.msra.mxu0 %v595
    %1717 = vmatprep.subr.mxu0 0.0
    %1718 = vmatpush1.msra.mxu0 0.0
    %1719 = vmatprep.subr.mxu0 0.0
    %1720 = vmatpush1.msra.mxu0 0.0
    %1721 = vmatprep.subr.mxu0 0.0
    %1722 = vmatpush1.msra.mxu0 0.0
    %1723 = vmatprep.subr.mxu0 0.0
    %1724 = vmatpush1.msra.mxu0 0.0
    %1725 = vmatprep.subr.mxu0 0.0
    %1726 = vmatpush1.msra.mxu0 0.0
    %1727 = vmatprep.subr.mxu0 0.0
    %1728 = vmatpush1.msra.mxu0 0.0
    %1729 = vmatprep.subr.mxu0 0.0
    %1730 = vmatpush1.msra.mxu0 0.0
    %1731 = vmatprep.subr.mxu0 0.0
    %1732 = vmatpush1.msra.mxu0 0.0
    %1733 = vmatprep.subr.mxu0 0.0
    %1734 = vmatpush1.msra.mxu0 0.0
    %1735 = vmatprep.subr.mxu0 0.0
    %1736 = vmatpush1.msra.mxu0 0.0
    %1737 = vmatprep.subr.mxu0 0.0
    %1738 = vmatpush1.msra.mxu0 0.0
    %1739 = vmatprep.subr.mxu0 0.0
    %1740 = vmatpush1.msra.mxu0 0.0
    %1741 = vmatprep.subr.mxu0 0.0
    %1742 = vmatpush1.msra.mxu0 0.0
    %1743 = vmatprep.subr.mxu0 0.0
    %1744 = vmatpush1.msra.mxu0 0.0
    %1745 = vmatprep.subr.mxu0 0.0
    %1746 = vmatpush1.msra.mxu0 0.0
    %1747 = vmatprep.subr.mxu0 0.0
    %1748 = vmatpush1.msra.mxu0 0.0
    %1749 = vmatprep.mubr.f32.mxu0 0.0
    %1750 = vmatmul.mubr.f32.gmra.mrb[0].mxu0 %v1684
    %v1751 = vpop.f32.mrb[0].mxu0
    %v1752 = vadd.f32 %v603, %v1751
    %v1753 = vpop.f32.mrb[0].mxu0
    %v1754 = vadd.f32 %v607, %v1753
    %1755 = vdwg.mxu0
    %1756 = vmatprep.subr.mxu0 %v538
    %1757 = vmatpush1.msra.mxu0 %v537
    %1758 = vmatprep.subr.mxu0 %v542
    %1759 = vmatpush1.msra.mxu0 %v541
    %1760 = vmatprep.subr.mxu0 %v546
    %1761 = vmatpush1.msra.mxu0 %v545
    %1762 = vmatprep.subr.mxu0 %v550
    %1763 = vmatpush1.msra.mxu0 %v549
    %1764 = vmatprep.subr.mxu0 %v554
    %1765 = vmatpush1.msra.mxu0 %v553
    %1766 = vmatprep.subr.mxu0 %v558
    %1767 = vmatpush1.msra.mxu0 %v557
    %1768 = vmatprep.subr.mxu0 %v562
    %1769 = vmatpush1.msra.mxu0 %v561
    %1770 = vmatprep.subr.mxu0 %v566
    %1771 = vmatpush1.msra.mxu0 %v565
    %1772 = vmatprep.subr.mxu0 %v570
    %1773 = vmatpush1.msra.mxu0 %v569
    %1774 = vmatprep.subr.mxu0 %v574
    %1775 = vmatpush1.msra.mxu0 %v573
    %1776 = vmatprep.subr.mxu0 %v578
    %1777 = vmatpush1.msra.mxu0 %v577
    %1778 = vmatprep.subr.mxu0 %v582
    %1779 = vmatpush1.msra.mxu0 %v581
    %1780 = vmatprep.subr.mxu0 %v586
    %1781 = vmatpush1.msra.mxu0 %v585
    %1782 = vmatprep.subr.mxu0 %v590
    %1783 = vmatpush1.msra.mxu0 %v589
    %1784 = vmatprep.subr.mxu0 %v594
    %1785 = vmatpush1.msra.mxu0 %v593
    %1786 = vmatprep.subr.mxu0 %v598
    %1787 = vmatpush1.msra.mxu0 %v597
    %1788 = vmatprep.subr.mxu0 0.0
    %1789 = vmatpush1.msra.mxu0 0.0
    %1790 = vmatprep.subr.mxu0 0.0
    %1791 = vmatpush1.msra.mxu0 0.0
    %1792 = vmatprep.subr.mxu0 0.0
    %1793 = vmatpush1.msra.mxu0 0.0
    %1794 = vmatprep.subr.mxu0 0.0
    %1795 = vmatpush1.msra.mxu0 0.0
    %1796 = vmatprep.subr.mxu0 0.0
    %1797 = vmatpush1.msra.mxu0 0.0
    %1798 = vmatprep.subr.mxu0 0.0
    %1799 = vmatpush1.msra.mxu0 0.0
    %1800 = vmatprep.subr.mxu0 0.0
    %1801 = vmatpush1.msra.mxu0 0.0
    %1802 = vmatprep.subr.mxu0 0.0
    %1803 = vmatpush1.msra.mxu0 0.0
    %1804 = vmatprep.subr.mxu0 0.0
    %1805 = vmatpush1.msra.mxu0 0.0
    %1806 = vmatprep.subr.mxu0 0.0
    %1807 = vmatpush1.msra.mxu0 0.0
    %1808 = vmatprep.subr.mxu0 0.0
    %1809 = vmatpush1.msra.mxu0 0.0
    %1810 = vmatprep.subr.mxu0 0.0
    %1811 = vmatpush1.msra.mxu0 0.0
    %1812 = vmatprep.subr.mxu0 0.0
    %1813 = vmatpush1.msra.mxu0 0.0
    %1814 = vmatprep.subr.mxu0 0.0
    %1815 = vmatpush1.msra.mxu0 0.0
    %1816 = vmatprep.subr.mxu0 0.0
    %1817 = vmatpush1.msra.mxu0 0.0
    %1818 = vmatprep.subr.mxu0 0.0
    %1819 = vmatpush1.msra.mxu0 0.0
    %1820 = vmatprep.mubr.f32.mxu0 0.0
    %1821 = vmatmul.mubr.f32.gmra.mrb[0].mxu0 %v1684
    %v1822 = vpop.f32.mrb[0].mxu0
    %v1823 = vadd.f32 %v611, %v1822
    %v1824 = vpop.f32.mrb[0].mxu0
    %v1825 = vadd.f32 %v615, %v1824
    %1826 = vdwg.mxu0
    %s1827 = scalar_lea.vmem [#allocation2], 6
    %v1828 = vld [vmem:[%s1827] ss:$8 sm:$0xf]
    %v1830 = vlaneseq
    %v1831 = vshrl.u32 %v1830, 7
    %v1832 = vsub.s32 0, %v1831
    %v1833 = vrot.slane %v1828, %v1832
    %v1834 = vlaneseq
    %v1835 = vshrl.u32 %v1834, 7
    %v1836 = vsub.s32 1, %v1835
    %v1837 = vrot.slane %v1828, %v1836
    %v1838 = vlaneseq
    %v1839 = vshrl.u32 %v1838, 7
    %v1840 = vsub.s32 2, %v1839
    %v1841 = vrot.slane %v1828, %v1840
    %v1842 = vlaneseq
    %v1843 = vshrl.u32 %v1842, 7
    %v1844 = vsub.s32 3, %v1843
    %v1845 = vrot.slane %v1828, %v1844
    %v1850 = vadd.f32 %v1752, %v1833
    %v1851 = vadd.f32 %v1754, %v1837
    %v1852 = vadd.f32 %v1823, %v1841
    %v1853 = vadd.f32 %v1825, %v1845
    %s1854 = scalar_lea.vmem [#allocation3], 6
    %v1855 = vld [vmem:[%s1854] ss:$8 sm:$0xf]
    %v1857 = vlaneseq
    %v1858 = vshrl.u32 %v1857, 7
    %v1859 = vsub.s32 0, %v1858
    %v1860 = vrot.slane %v1855, %v1859
    %v1861 = vlaneseq
    %v1862 = vshrl.u32 %v1861, 7
    %v1863 = vsub.s32 1, %v1862
    %v1864 = vrot.slane %v1855, %v1863
    %v1865 = vlaneseq
    %v1866 = vshrl.u32 %v1865, 7
    %v1867 = vsub.s32 2, %v1866
    %v1868 = vrot.slane %v1855, %v1867
    %v1869 = vlaneseq
    %v1870 = vshrl.u32 %v1869, 7
    %v1871 = vsub.s32 3, %v1870
    %v1872 = vrot.slane %v1855, %v1871
    %v1877 = vadd.f32 %v1850, %v1860
    %v1878 = vadd.f32 %v1851, %v1864
    %v1879 = vadd.f32 %v1852, %v1868
    %v1880 = vadd.f32 %v1853, %v1872
    %v1881 = vtanh.pop %v1877
    %v1882 = vtanh.pop %v1878
    %v1883 = vtanh.pop %v1879
    %v1884 = vtanh.pop %v1880
    %v1885 = vmul.f32 %v1881, %v65
    %v1886 = vmul.f32 %v1882, %v66
    %v1887 = vmul.f32 %v1883, %v67
    %v1888 = vmul.f32 %v1884, %v68
    %v1889 = vadd.f32 %v1885, %v69
    %v1890 = vadd.f32 %v1886, %v70
    %v1891 = vadd.f32 %v1887, %v71
    %v1892 = vadd.f32 %v1888, %v72
    %v1893 = vmul.f32 %v1890, %v1682
    %v1894 = vmul.f32 %v1889, %v1891
    %v1895 = vadd.f32 %v1893, %v1894
    %v1896 = vtanh.pop %v1895
    %v1897 = vmul.f32 %v1892, %v1896
    %1898 = vmatprep.subr.mxu0 %v536
    %1899 = vmatpush1.msra.mxu0 %v535
    %1900 = vmatprep.subr.mxu0 %v540
    %1901 = vmatpush1.msra.mxu0 %v539
    %1902 = vmatprep.subr.mxu0 %v544
    %1903 = vmatpush1.msra.mxu0 %v543
    %1904 = vmatprep.subr.mxu0 %v548
    %1905 = vmatpush1.msra.mxu0 %v547
    %1906 = vmatprep.subr.mxu0 %v552
    %1907 = vmatpush1.msra.mxu0 %v551
    %1908 = vmatprep.subr.mxu0 %v556
    %1909 = vmatpush1.msra.mxu0 %v555
    %1910 = vmatprep.subr.mxu0 %v560
    %1911 = vmatpush1.msra.mxu0 %v559
    %1912 = vmatprep.subr.mxu0 %v564
    %1913 = vmatpush1.msra.mxu0 %v563
    %1914 = vmatprep.subr.mxu0 %v568
    %1915 = vmatpush1.msra.mxu0 %v567
    %1916 = vmatprep.subr.mxu0 %v572
    %1917 = vmatpush1.msra.mxu0 %v571
    %1918 = vmatprep.subr.mxu0 %v576
    %1919 = vmatpush1.msra.mxu0 %v575
    %1920 = vmatprep.subr.mxu0 %v580
    %1921 = vmatpush1.msra.mxu0 %v579
    %1922 = vmatprep.subr.mxu0 %v584
    %1923 = vmatpush1.msra.mxu0 %v583
    %1924 = vmatprep.subr.mxu0 %v588
    %1925 = vmatpush1.msra.mxu0 %v587
    %1926 = vmatprep.subr.mxu0 %v592
    %1927 = vmatpush1.msra.mxu0 %v591
    %1928 = vmatprep.subr.mxu0 %v596
    %1929 = vmatpush1.msra.mxu0 %v595
    %1930 = vmatprep.subr.mxu0 0.0
    %1931 = vmatpush1.msra.mxu0 0.0
    %1932 = vmatprep.subr.mxu0 0.0
    %1933 = vmatpush1.msra.mxu0 0.0
    %1934 = vmatprep.subr.mxu0 0.0
    %1935 = vmatpush1.msra.mxu0 0.0
    %1936 = vmatprep.subr.mxu0 0.0
    %1937 = vmatpush1.msra.mxu0 0.0
    %1938 = vmatprep.subr.mxu0 0.0
    %1939 = vmatpush1.msra.mxu0 0.0
    %1940 = vmatprep.subr.mxu0 0.0
    %1941 = vmatpush1.msra.mxu0 0.0
    %1942 = vmatprep.subr.mxu0 0.0
    %1943 = vmatpush1.msra.mxu0 0.0
    %1944 = vmatprep.subr.mxu0 0.0
    %1945 = vmatpush1.msra.mxu0 0.0
    %1946 = vmatprep.subr.mxu0 0.0
    %1947 = vmatpush1.msra.mxu0 0.0
    %1948 = vmatprep.subr.mxu0 0.0
    %1949 = vmatpush1.msra.mxu0 0.0
    %1950 = vmatprep.subr.mxu0 0.0
    %1951 = vmatpush1.msra.mxu0 0.0
    %1952 = vmatprep.subr.mxu0 0.0
    %1953 = vmatpush1.msra.mxu0 0.0
    %1954 = vmatprep.subr.mxu0 0.0
    %1955 = vmatpush1.msra.mxu0 0.0
    %1956 = vmatprep.subr.mxu0 0.0
    %1957 = vmatpush1.msra.mxu0 0.0
    %1958 = vmatprep.subr.mxu0 0.0
    %1959 = vmatpush1.msra.mxu0 0.0
    %1960 = vmatprep.subr.mxu0 0.0
    %1961 = vmatpush1.msra.mxu0 0.0
    %1962 = vmatprep.mubr.f32.mxu0 0.0
    %1963 = vmatmul.mubr.f32.gmra.mrb[0].mxu0 %v1897
    %v1964 = vpop.f32.mrb[0].mxu0
    %v1965 = vadd.f32 %v603, %v1964
    %v1966 = vpop.f32.mrb[0].mxu0
    %v1967 = vadd.f32 %v607, %v1966
    %1968 = vdwg.mxu0
    %1969 = vmatprep.subr.mxu0 %v538
    %1970 = vmatpush1.msra.mxu0 %v537
    %1971 = vmatprep.subr.mxu0 %v542
    %1972 = vmatpush1.msra.mxu0 %v541
    %1973 = vmatprep.subr.mxu0 %v546
    %1974 = vmatpush1.msra.mxu0 %v545
    %1975 = vmatprep.subr.mxu0 %v550
    %1976 = vmatpush1.msra.mxu0 %v549
    %1977 = vmatprep.subr.mxu0 %v554
    %1978 = vmatpush1.msra.mxu0 %v553
    %1979 = vmatprep.subr.mxu0 %v558
    %1980 = vmatpush1.msra.mxu0 %v557
    %1981 = vmatprep.subr.mxu0 %v562
    %1982 = vmatpush1.msra.mxu0 %v561
    %1983 = vmatprep.subr.mxu0 %v566
    %1984 = vmatpush1.msra.mxu0 %v565
    %1985 = vmatprep.subr.mxu0 %v570
    %1986 = vmatpush1.msra.mxu0 %v569
    %1987 = vmatprep.subr.mxu0 %v574
    %1988 = vmatpush1.msra.mxu0 %v573
    %1989 = vmatprep.subr.mxu0 %v578
    %1990 = vmatpush1.msra.mxu0 %v577
    %1991 = vmatprep.subr.mxu0 %v582
    %1992 = vmatpush1.msra.mxu0 %v581
    %1993 = vmatprep.subr.mxu0 %v586
    %1994 = vmatpush1.msra.mxu0 %v585
    %1995 = vmatprep.subr.mxu0 %v590
    %1996 = vmatpush1.msra.mxu0 %v589
    %1997 = vmatprep.subr.mxu0 %v594
    %1998 = vmatpush1.msra.mxu0 %v593
    %1999 = vmatprep.subr.mxu0 %v598
    %2000 = vmatpush1.msra.mxu0 %v597
    %2001 = vmatprep.subr.mxu0 0.0
    %2002 = vmatpush1.msra.mxu0 0.0
    %2003 = vmatprep.subr.mxu0 0.0
    %2004 = vmatpush1.msra.mxu0 0.0
    %2005 = vmatprep.subr.mxu0 0.0
    %2006 = vmatpush1.msra.mxu0 0.0
    %2007 = vmatprep.subr.mxu0 0.0
    %2008 = vmatpush1.msra.mxu0 0.0
    %2009 = vmatprep.subr.mxu0 0.0
    %2010 = vmatpush1.msra.mxu0 0.0
    %2011 = vmatprep.subr.mxu0 0.0
    %2012 = vmatpush1.msra.mxu0 0.0
    %2013 = vmatprep.subr.mxu0 0.0
    %2014 = vmatpush1.msra.mxu0 0.0
    %2015 = vmatprep.subr.mxu0 0.0
    %2016 = vmatpush1.msra.mxu0 0.0
    %2017 = vmatprep.subr.mxu0 0.0
    %2018 = vmatpush1.msra.mxu0 0.0
    %2019 = vmatprep.subr.mxu0 0.0
    %2020 = vmatpush1.msra.mxu0 0.0
    %2021 = vmatprep.subr.mxu0 0.0
    %2022 = vmatpush1.msra.mxu0 0.0
    %2023 = vmatprep.subr.mxu0 0.0
    %2024 = vmatpush1.msra.mxu0 0.0
    %2025 = vmatprep.subr.mxu0 0.0
    %2026 = vmatpush1.msra.mxu0 0.0
    %2027 = vmatprep.subr.mxu0 0.0
    %2028 = vmatpush1.msra.mxu0 0.0
    %2029 = vmatprep.subr.mxu0 0.0
    %2030 = vmatpush1.msra.mxu0 0.0
    %2031 = vmatprep.subr.mxu0 0.0
    %2032 = vmatpush1.msra.mxu0 0.0
    %2033 = vmatprep.mubr.f32.mxu0 0.0
    %2034 = vmatmul.mubr.f32.gmra.mrb[0].mxu0 %v1897
    %v2035 = vpop.f32.mrb[0].mxu0
    %v2036 = vadd.f32 %v611, %v2035
    %v2037 = vpop.f32.mrb[0].mxu0
    %v2038 = vadd.f32 %v615, %v2037
    %2039 = vdwg.mxu0
    %s2040 = scalar_lea.vmem [#allocation2], 7
    %v2041 = vld [vmem:[%s2040] ss:$8 sm:$0xf]
    %v2043 = vlaneseq
    %v2044 = vshrl.u32 %v2043, 7
    %v2045 = vsub.s32 0, %v2044
    %v2046 = vrot.slane %v2041, %v2045
    %v2047 = vlaneseq
    %v2048 = vshrl.u32 %v2047, 7
    %v2049 = vsub.s32 1, %v2048
    %v2050 = vrot.slane %v2041, %v2049
    %v2051 = vlaneseq
    %v2052 = vshrl.u32 %v2051, 7
    %v2053 = vsub.s32 2, %v2052
    %v2054 = vrot.slane %v2041, %v2053
    %v2055 = vlaneseq
    %v2056 = vshrl.u32 %v2055, 7
    %v2057 = vsub.s32 3, %v2056
    %v2058 = vrot.slane %v2041, %v2057
    %v2063 = vadd.f32 %v1965, %v2046
    %v2064 = vadd.f32 %v1967, %v2050
    %v2065 = vadd.f32 %v2036, %v2054
    %v2066 = vadd.f32 %v2038, %v2058
    %s2067 = scalar_lea.vmem [#allocation3], 7
    %v2068 = vld [vmem:[%s2067] ss:$8 sm:$0xf]
    %v2070 = vlaneseq
    %v2071 = vshrl.u32 %v2070, 7
    %v2072 = vsub.s32 0, %v2071
    %v2073 = vrot.slane %v2068, %v2072
    %v2074 = vlaneseq
    %v2075 = vshrl.u32 %v2074, 7
    %v2076 = vsub.s32 1, %v2075
    %v2077 = vrot.slane %v2068, %v2076
    %v2078 = vlaneseq
    %v2079 = vshrl.u32 %v2078, 7
    %v2080 = vsub.s32 2, %v2079
    %v2081 = vrot.slane %v2068, %v2080
    %v2082 = vlaneseq
    %v2083 = vshrl.u32 %v2082, 7
    %v2084 = vsub.s32 3, %v2083
    %v2085 = vrot.slane %v2068, %v2084
    %v2090 = vadd.f32 %v2063, %v2073
    %v2091 = vadd.f32 %v2064, %v2077
    %v2092 = vadd.f32 %v2065, %v2081
    %v2093 = vadd.f32 %v2066, %v2085
    %v2094 = vtanh.pop %v2090
    %v2095 = vtanh.pop %v2091
    %v2096 = vtanh.pop %v2092
    %v2097 = vtanh.pop %v2093
    %v2098 = vmul.f32 %v2094, %v65
    %v2099 = vmul.f32 %v2095, %v66
    %v2100 = vmul.f32 %v2096, %v67
    %v2101 = vmul.f32 %v2097, %v68
    %v2102 = vadd.f32 %v2098, %v69
    %v2103 = vadd.f32 %v2099, %v70
    %v2104 = vadd.f32 %v2100, %v71
    %v2105 = vadd.f32 %v2101, %v72
    %v2106 = vmul.f32 %v2103, %v1895
    %v2107 = vmul.f32 %v2102, %v2104
    %v2108 = vadd.f32 %v2106, %v2107
    %v2109 = vtanh.pop %v2108
    %v2110 = vmul.f32 %v2105, %v2109
    %2111 = vmatprep.subr.mxu0 %v536
    %2112 = vmatpush1.msra.mxu0 %v535
    %2113 = vmatprep.subr.mxu0 %v540
    %2114 = vmatpush1.msra.mxu0 %v539
    %2115 = vmatprep.subr.mxu0 %v544
    %2116 = vmatpush1.msra.mxu0 %v543
    %2117 = vmatprep.subr.mxu0 %v548
    %2118 = vmatpush1.msra.mxu0 %v547
    %2119 = vmatprep.subr.mxu0 %v552
    %2120 = vmatpush1.msra.mxu0 %v551
    %2121 = vmatprep.subr.mxu0 %v556
    %2122 = vmatpush1.msra.mxu0 %v555
    %2123 = vmatprep.subr.mxu0 %v560
    %2124 = vmatpush1.msra.mxu0 %v559
    %2125 = vmatprep.subr.mxu0 %v564
    %2126 = vmatpush1.msra.mxu0 %v563
    %2127 = vmatprep.subr.mxu0 %v568
    %2128 = vmatpush1.msra.mxu0 %v567
    %2129 = vmatprep.subr.mxu0 %v572
    %2130 = vmatpush1.msra.mxu0 %v571
    %2131 = vmatprep.subr.mxu0 %v576
    %2132 = vmatpush1.msra.mxu0 %v575
    %2133 = vmatprep.subr.mxu0 %v580
    %2134 = vmatpush1.msra.mxu0 %v579
    %2135 = vmatprep.subr.mxu0 %v584
    %2136 = vmatpush1.msra.mxu0 %v583
    %2137 = vmatprep.subr.mxu0 %v588
    %2138 = vmatpush1.msra.mxu0 %v587
    %2139 = vmatprep.subr.mxu0 %v592
    %2140 = vmatpush1.msra.mxu0 %v591
    %2141 = vmatprep.subr.mxu0 %v596
    %2142 = vmatpush1.msra.mxu0 %v595
    %2143 = vmatprep.subr.mxu0 0.0
    %2144 = vmatpush1.msra.mxu0 0.0
    %2145 = vmatprep.subr.mxu0 0.0
    %2146 = vmatpush1.msra.mxu0 0.0
    %2147 = vmatprep.subr.mxu0 0.0
    %2148 = vmatpush1.msra.mxu0 0.0
    %2149 = vmatprep.subr.mxu0 0.0
    %2150 = vmatpush1.msra.mxu0 0.0
    %2151 = vmatprep.subr.mxu0 0.0
    %2152 = vmatpush1.msra.mxu0 0.0
    %2153 = vmatprep.subr.mxu0 0.0
    %2154 = vmatpush1.msra.mxu0 0.0
    %2155 = vmatprep.subr.mxu0 0.0
    %2156 = vmatpush1.msra.mxu0 0.0
    %2157 = vmatprep.subr.mxu0 0.0
    %2158 = vmatpush1.msra.mxu0 0.0
    %2159 = vmatprep.subr.mxu0 0.0
    %2160 = vmatpush1.msra.mxu0 0.0
    %2161 = vmatprep.subr.mxu0 0.0
    %2162 = vmatpush1.msra.mxu0 0.0
    %2163 = vmatprep.subr.mxu0 0.0
    %2164 = vmatpush1.msra.mxu0 0.0
    %2165 = vmatprep.subr.mxu0 0.0
    %2166 = vmatpush1.msra.mxu0 0.0
    %2167 = vmatprep.subr.mxu0 0.0
    %2168 = vmatpush1.msra.mxu0 0.0
    %2169 = vmatprep.subr.mxu0 0.0
    %2170 = vmatpush1.msra.mxu0 0.0
    %2171 = vmatprep.subr.mxu0 0.0
    %2172 = vmatpush1.msra.mxu0 0.0
    %2173 = vmatprep.subr.mxu0 0.0
    %2174 = vmatpush1.msra.mxu0 0.0
    %2175 = vmatprep.mubr.f32.mxu0 0.0
    %2176 = vmatmul.mubr.f32.gmra.mrb[0].mxu0 %v2110
    %v2177 = vpop.f32.mrb[0].mxu0
    %v2178 = vadd.f32 %v603, %v2177
    %v2179 = vpop.f32.mrb[0].mxu0
    %v2180 = vadd.f32 %v607, %v2179
    %2181 = vdwg.mxu0
    %2182 = vmatprep.subr.mxu0 %v538
    %2183 = vmatpush1.msra.mxu0 %v537
    %2184 = vmatprep.subr.mxu0 %v542
    %2185 = vmatpush1.msra.mxu0 %v541
    %2186 = vmatprep.subr.mxu0 %v546
    %2187 = vmatpush1.msra.mxu0 %v545
    %2188 = vmatprep.subr.mxu0 %v550
    %2189 = vmatpush1.msra.mxu0 %v549
    %2190 = vmatprep.subr.mxu0 %v554
    %2191 = vmatpush1.msra.mxu0 %v553
    %2192 = vmatprep.subr.mxu0 %v558
    %2193 = vmatpush1.msra.mxu0 %v557
    %2194 = vmatprep.subr.mxu0 %v562
    %2195 = vmatpush1.msra.mxu0 %v561
    %2196 = vmatprep.subr.mxu0 %v566
    %2197 = vmatpush1.msra.mxu0 %v565
    %2198 = vmatprep.subr.mxu0 %v570
    %2199 = vmatpush1.msra.mxu0 %v569
    %2200 = vmatprep.subr.mxu0 %v574
    %2201 = vmatpush1.msra.mxu0 %v573
    %2202 = vmatprep.subr.mxu0 %v578
    %2203 = vmatpush1.msra.mxu0 %v577
    %2204 = vmatprep.subr.mxu0 %v582
    %2205 = vmatpush1.msra.mxu0 %v581
    %2206 = vmatprep.subr.mxu0 %v586
    %2207 = vmatpush1.msra.mxu0 %v585
    %2208 = vmatprep.subr.mxu0 %v590
    %2209 = vmatpush1.msra.mxu0 %v589
    %2210 = vmatprep.subr.mxu0 %v594
    %2211 = vmatpush1.msra.mxu0 %v593
    %2212 = vmatprep.subr.mxu0 %v598
    %2213 = vmatpush1.msra.mxu0 %v597
    %2214 = vmatprep.subr.mxu0 0.0
    %2215 = vmatpush1.msra.mxu0 0.0
    %2216 = vmatprep.subr.mxu0 0.0
    %2217 = vmatpush1.msra.mxu0 0.0
    %2218 = vmatprep.subr.mxu0 0.0
    %2219 = vmatpush1.msra.mxu0 0.0
    %2220 = vmatprep.subr.mxu0 0.0
    %2221 = vmatpush1.msra.mxu0 0.0
    %2222 = vmatprep.subr.mxu0 0.0
    %2223 = vmatpush1.msra.mxu0 0.0
    %2224 = vmatprep.subr.mxu0 0.0
    %2225 = vmatpush1.msra.mxu0 0.0
    %2226 = vmatprep.subr.mxu0 0.0
    %2227 = vmatpush1.msra.mxu0 0.0
    %2228 = vmatprep.subr.mxu0 0.0
    %2229 = vmatpush1.msra.mxu0 0.0
    %2230 = vmatprep.subr.mxu0 0.0
    %2231 = vmatpush1.msra.mxu0 0.0
    %2232 = vmatprep.subr.mxu0 0.0
    %2233 = vmatpush1.msra.mxu0 0.0
    %2234 = vmatprep.subr.mxu0 0.0
    %2235 = vmatpush1.msra.mxu0 0.0
    %2236 = vmatprep.subr.mxu0 0.0
    %2237 = vmatpush1.msra.mxu0 0.0
    %2238 = vmatprep.subr.mxu0 0.0
    %2239 = vmatpush1.msra.mxu0 0.0
    %2240 = vmatprep.subr.mxu0 0.0
    %2241 = vmatpush1.msra.mxu0 0.0
    %2242 = vmatprep.subr.mxu0 0.0
    %2243 = vmatpush1.msra.mxu0 0.0
    %2244 = vmatprep.subr.mxu0 0.0
    %2245 = vmatpush1.msra.mxu0 0.0
    %2246 = vmatprep.mubr.f32.mxu0 0.0
    %2247 = vmatmul.mubr.f32.gmra.mrb[0].mxu0 %v2110
    %v2248 = vpop.f32.mrb[0].mxu0
    %v2249 = vadd.f32 %v611, %v2248
    %v2250 = vpop.f32.mrb[0].mxu0
    %v2251 = vadd.f32 %v615, %v2250
    %2252 = vdwg.mxu0
    %v2253 = vtanh.pop %v2178
    %v2254 = vtanh.pop %v2180
    %v2255 = vtanh.pop %v2249
    %v2256 = vtanh.pop %v2251
    %v2257 = vmul.f32 %v2253, %v65
    %v2258 = vmul.f32 %v2254, %v66
    %v2259 = vmul.f32 %v2255, %v67
    %v2260 = vmul.f32 %v2256, %v68
    %v2261 = vadd.f32 %v2257, %v69
    %v2262 = vadd.f32 %v2258, %v70
    %v2263 = vadd.f32 %v2259, %v71
    %v2264 = vadd.f32 %v2260, %v72
    %v2265 = vmul.f32 %v2262, %v2108
    %v2266 = vmul.f32 %v2261, %v2263
    %v2267 = vadd.f32 %v2265, %v2266
    %v2268 = vtanh.pop %v2267
    %v2269 = vmul.f32 %v2264, %v2268
    %vm2270 = vcmp.ge.s32.totalorder %v49, 32
    %vm2271 = vcmp.lt.s32.totalorder %v49, 64
    %vm2272 = vmand %vm2270, %vm2271
    %vm2273 = vcmp.ge.s32.totalorder %v49, 96
    %vm2274 = vmor %vm2272, %vm2273
    %v2275 = vsel %vm2274, %v2269, %v2110
    %v2276 = vld [vmem:[%s4] sm:$0x1]
    %v2277 = vld [vmem:[%s4 + $0x1] sm:$0x1]
    %v2278 = vld [vmem:[#allocation6] sm:$0xff]
    %v2279 = vld [vmem:[#allocation6 + $0x8] sm:$0xff]
    %v2280 = vld [vmem:[#allocation6 + $0x10] sm:$0xff]
    %v2281 = vld [vmem:[#allocation6 + $0x18] sm:$0xff]
    %v2282 = vld [vmem:[#allocation6 + $0x20] sm:$0xff]
    %v2283 = vld [vmem:[#allocation6 + $0x28] sm:$0xff]
    %v2284 = vld [vmem:[#allocation6 + $0x30] sm:$0xff]
    %v2285 = vld [vmem:[#allocation6 + $0x38] sm:$0xff]
    %v2286 = vld [vmem:[#allocation6 + $0x40] sm:$0xff]
    %v2287 = vld [vmem:[#allocation6 + $0x48] sm:$0xff]
    %v2288 = vld [vmem:[#allocation6 + $0x50] sm:$0xff]
    %v2289 = vld [vmem:[#allocation6 + $0x58] sm:$0xff]
    %v2290 = vld [vmem:[#allocation6 + $0x60] sm:$0xff]
    %v2291 = vld [vmem:[#allocation6 + $0x68] sm:$0xff]
    %v2292 = vld [vmem:[#allocation6 + $0x70] sm:$0xff]
    %v2293 = vld [vmem:[#allocation6 + $0x78] sm:$0xff]
    %v2294 = vld [vmem:[#allocation6 + $0x80] sm:$0x1]
    %2295 = vmatprep.subr.mxu0 0.0
    %2296 = vmatpush1.msra.mxu0 %v2278
    %2297 = vmatprep.subr.mxu0 0.0
    %2298 = vmatpush1.msra.mxu0 %v2279
    %2299 = vmatprep.subr.mxu0 0.0
    %2300 = vmatpush1.msra.mxu0 %v2280
    %2301 = vmatprep.subr.mxu0 0.0
    %2302 = vmatpush1.msra.mxu0 %v2281
    %2303 = vmatprep.subr.mxu0 0.0
    %2304 = vmatpush1.msra.mxu0 %v2282
    %2305 = vmatprep.subr.mxu0 0.0
    %2306 = vmatpush1.msra.mxu0 %v2283
    %2307 = vmatprep.subr.mxu0 0.0
    %2308 = vmatpush1.msra.mxu0 %v2284
    %2309 = vmatprep.subr.mxu0 0.0
    %2310 = vmatpush1.msra.mxu0 %v2285
    %2311 = vmatprep.subr.mxu0 0.0
    %2312 = vmatpush1.msra.mxu0 %v2286
    %2313 = vmatprep.subr.mxu0 0.0
    %2314 = vmatpush1.msra.mxu0 %v2287
    %2315 = vmatprep.subr.mxu0 0.0
    %2316 = vmatpush1.msra.mxu0 %v2288
    %2317 = vmatprep.subr.mxu0 0.0
    %2318 = vmatpush1.msra.mxu0 %v2289
    %2319 = vmatprep.subr.mxu0 0.0
    %2320 = vmatpush1.msra.mxu0 %v2290
    %2321 = vmatprep.subr.mxu0 0.0
    %2322 = vmatpush1.msra.mxu0 %v2291
    %2323 = vmatprep.subr.mxu0 0.0
    %2324 = vmatpush1.msra.mxu0 %v2292
    %2325 = vmatprep.subr.mxu0 0.0
    %2326 = vmatpush1.msra.mxu0 %v2293
    %2327 = vmatprep.subr.mxu0 0.0
    %2328 = vmatpush1.msra.mxu0 0.0
    %2329 = vmatprep.subr.mxu0 0.0
    %2330 = vmatpush1.msra.mxu0 0.0
    %2331 = vmatprep.subr.mxu0 0.0
    %2332 = vmatpush1.msra.mxu0 0.0
    %2333 = vmatprep.subr.mxu0 0.0
    %2334 = vmatpush1.msra.mxu0 0.0
    %2335 = vmatprep.subr.mxu0 0.0
    %2336 = vmatpush1.msra.mxu0 0.0
    %2337 = vmatprep.subr.mxu0 0.0
    %2338 = vmatpush1.msra.mxu0 0.0
    %2339 = vmatprep.subr.mxu0 0.0
    %2340 = vmatpush1.msra.mxu0 0.0
    %2341 = vmatprep.subr.mxu0 0.0
    %2342 = vmatpush1.msra.mxu0 0.0
    %2343 = vmatprep.subr.mxu0 0.0
    %2344 = vmatpush1.msra.mxu0 0.0
    %2345 = vmatprep.subr.mxu0 0.0
    %2346 = vmatpush1.msra.mxu0 0.0
    %2347 = vmatprep.subr.mxu0 0.0
    %2348 = vmatpush1.msra.mxu0 0.0
    %2349 = vmatprep.subr.mxu0 0.0
    %2350 = vmatpush1.msra.mxu0 0.0
    %2351 = vmatprep.subr.mxu0 0.0
    %2352 = vmatpush1.msra.mxu0 0.0
    %2353 = vmatprep.subr.mxu0 0.0
    %2354 = vmatpush1.msra.mxu0 0.0
    %2355 = vmatprep.subr.mxu0 0.0
    %2356 = vmatpush1.msra.mxu0 0.0
    %2357 = vmatprep.subr.mxu0 0.0
    %2358 = vmatpush1.msra.mxu0 0.0
    %2359 = vmatprep.mubr.f32.mxu0 0.0
    %2360 = vmatmul.mubr.f32.gmra.mrb[0].mxu0 %v2275
    %v2361 = vpop.f32.mrb[0].mxu0
    %v2362 = vadd.f32 %v2294, %v2361
    %v2363 = vpop.f32.mrb[0].mxu0
    %2364 = vdwg.mxu0
    %v2365 = vld [vmem:[#allocation6 + $0x88] sm:$0xff]
    %v2366 = vld [vmem:[#allocation6 + $0x90] sm:$0xff]
    %v2367 = vld [vmem:[#allocation6 + $0x98] sm:$0xff]
    %v2368 = vld [vmem:[#allocation6 + $0xa0] sm:$0xff]
    %v2369 = vld [vmem:[#allocation6 + $0xa8] sm:$0xff]
    %v2370 = vld [vmem:[#allocation6 + $0xb0] sm:$0xff]
    %v2371 = vld [vmem:[#allocation6 + $0xb8] sm:$0xff]
    %v2372 = vld [vmem:[#allocation6 + $0xc0] sm:$0xff]
    %v2373 = vld [vmem:[#allocation6 + $0xc8] sm:$0xff]
    %v2374 = vld [vmem:[#allocation6 + $0xd0] sm:$0xff]
    %v2375 = vld [vmem:[#allocation6 + $0xd8] sm:$0xff]
    %v2376 = vld [vmem:[#allocation6 + $0xe0] sm:$0xff]
    %v2377 = vld [vmem:[#allocation6 + $0xe8] sm:$0xff]
    %v2378 = vld [vmem:[#allocation6 + $0xf0] sm:$0xff]
    %v2379 = vld [vmem:[#allocation6 + $0xf8] sm:$0xff]
    %v2380 = vld [vmem:[#allocation6 + $0x100] sm:$0xff]
    %v2381 = vld [vmem:[#allocation6 + $0x108] sm:$0xff]
    %v2382 = vld [vmem:[#allocation6 + $0x110] sm:$0xff]
    %v2383 = vld [vmem:[#allocation6 + $0x118] sm:$0xff]
    %v2384 = vld [vmem:[#allocation6 + $0x120] sm:$0xff]
    %vm2385 = vcmask 261120
    %v2387 = vsel %vm2385, %v2276, 0
    %2389 = vmatprep.subr.mxu0 0.0
    %2390 = vmatpush1.msra.mxu0 %v2381
    %2391 = vmatprep.subr.mxu0 0.0
    %2392 = vmatpush1.msra.mxu0 %v2382
    %2393 = vmatprep.subr.mxu0 0.0
    %2394 = vmatpush1.msra.mxu0 %v2383
    %2395 = vmatprep.subr.mxu0 0.0
    %2396 = vmatpush1.msra.mxu0 %v2384
    %2397 = vmatprep.subr.mxu0 0.0
    %2398 = vmatpush1.msra.mxu0 0.0
    %2399 = vmatprep.subr.mxu0 0.0
    %2400 = vmatpush1.msra.mxu0 0.0
    %2401 = vmatprep.subr.mxu0 0.0
    %2402 = vmatpush1.msra.mxu0 0.0
    %2403 = vmatprep.subr.mxu0 0.0
    %2404 = vmatpush1.msra.mxu0 0.0
    %2405 = vmatprep.subr.mxu0 0.0
    %2406 = vmatpush1.msra.mxu0 0.0
    %2407 = vmatprep.subr.mxu0 0.0
    %2408 = vmatpush1.msra.mxu0 0.0
    %2409 = vmatprep.subr.mxu0 0.0
    %2410 = vmatpush1.msra.mxu0 0.0
    %2411 = vmatprep.subr.mxu0 0.0
    %2412 = vmatpush1.msra.mxu0 0.0
    %2413 = vmatprep.subr.mxu0 0.0
    %2414 = vmatpush1.msra.mxu0 0.0
    %2415 = vmatprep.subr.mxu0 0.0
    %2416 = vmatpush1.msra.mxu0 0.0
    %2417 = vmatprep.subr.mxu0 0.0
    %2418 = vmatpush1.msra.mxu0 0.0
    %2419 = vmatprep.subr.mxu0 0.0
    %2420 = vmatpush1.msra.mxu0 0.0
    %2421 = vmatprep.subr.mxu0 0.0
    %2422 = vmatpush1.msra.mxu0 0.0
    %2423 = vmatprep.subr.mxu0 0.0
    %2424 = vmatpush1.msra.mxu0 0.0
    %2425 = vmatprep.subr.mxu0 0.0
    %2426 = vmatpush1.msra.mxu0 0.0
    %2427 = vmatprep.subr.mxu0 0.0
    %2428 = vmatpush1.msra.mxu0 0.0
    %2429 = vmatprep.subr.mxu0 0.0
    %2430 = vmatpush1.msra.mxu0 0.0
    %2431 = vmatprep.subr.mxu0 0.0
    %2432 = vmatpush1.msra.mxu0 0.0
    %2433 = vmatprep.subr.mxu0 0.0
    %2434 = vmatpush1.msra.mxu0 0.0
    %2435 = vmatprep.subr.mxu0 0.0
    %2436 = vmatpush1.msra.mxu0 0.0
    %2437 = vmatprep.subr.mxu0 0.0
    %2438 = vmatpush1.msra.mxu0 0.0
    %2439 = vmatprep.subr.mxu0 0.0
    %2440 = vmatpush1.msra.mxu0 0.0
    %2441 = vmatprep.subr.mxu0 0.0
    %2442 = vmatpush1.msra.mxu0 0.0
    %2443 = vmatprep.subr.mxu0 0.0
    %2444 = vmatpush1.msra.mxu0 0.0
    %2445 = vmatprep.subr.mxu0 0.0
    %2446 = vmatpush1.msra.mxu0 0.0
    %2447 = vmatprep.subr.mxu0 0.0
    %2448 = vmatpush1.msra.mxu0 0.0
    %2449 = vmatprep.subr.mxu0 0.0
    %2450 = vmatpush1.msra.mxu0 0.0
    %2451 = vmatprep.subr.mxu0 0.0
    %2452 = vmatpush1.msra.mxu0 0.0
    %2453 = vmatprep.mubr.f32.mxu0 0.0
    %2454 = vmatmul.mubr.f32.gmra.mrb[0].mxu0 %v2387
    %v2455 = vpop.f32.mrb[0].mxu0
    %v2456 = vadd.f32 0.0, %v2455
    %v2457 = vpop.f32.mrb[0].mxu0
    %2458 = vdwg.mxu0
    %2459 = vmatprep.subr.mxu0 0.0
    %2460 = vmatpush1.msra.mxu0 %v2365
    %2461 = vmatprep.subr.mxu0 0.0
    %2462 = vmatpush1.msra.mxu0 %v2366
    %2463 = vmatprep.subr.mxu0 0.0
    %2464 = vmatpush1.msra.mxu0 %v2367
    %2465 = vmatprep.subr.mxu0 0.0
    %2466 = vmatpush1.msra.mxu0 %v2368
    %2467 = vmatprep.subr.mxu0 0.0
    %2468 = vmatpush1.msra.mxu0 %v2369
    %2469 = vmatprep.subr.mxu0 0.0
    %2470 = vmatpush1.msra.mxu0 %v2370
    %2471 = vmatprep.subr.mxu0 0.0
    %2472 = vmatpush1.msra.mxu0 %v2371
    %2473 = vmatprep.subr.mxu0 0.0
    %2474 = vmatpush1.msra.mxu0 %v2372
    %2475 = vmatprep.subr.mxu0 0.0
    %2476 = vmatpush1.msra.mxu0 %v2373
    %2477 = vmatprep.subr.mxu0 0.0
    %2478 = vmatpush1.msra.mxu0 %v2374
    %2479 = vmatprep.subr.mxu0 0.0
    %2480 = vmatpush1.msra.mxu0 %v2375
    %2481 = vmatprep.subr.mxu0 0.0
    %2482 = vmatpush1.msra.mxu0 %v2376
    %2483 = vmatprep.subr.mxu0 0.0
    %2484 = vmatpush1.msra.mxu0 %v2377
    %2485 = vmatprep.subr.mxu0 0.0
    %2486 = vmatpush1.msra.mxu0 %v2378
    %2487 = vmatprep.subr.mxu0 0.0
    %2488 = vmatpush1.msra.mxu0 %v2379
    %2489 = vmatprep.subr.mxu0 0.0
    %2490 = vmatpush1.msra.mxu0 %v2380
    %2491 = vmatprep.subr.mxu0 0.0
    %2492 = vmatpush1.msra.mxu0 0.0
    %2493 = vmatprep.subr.mxu0 0.0
    %2494 = vmatpush1.msra.mxu0 0.0
    %2495 = vmatprep.subr.mxu0 0.0
    %2496 = vmatpush1.msra.mxu0 0.0
    %2497 = vmatprep.subr.mxu0 0.0
    %2498 = vmatpush1.msra.mxu0 0.0
    %2499 = vmatprep.subr.mxu0 0.0
    %2500 = vmatpush1.msra.mxu0 0.0
    %2501 = vmatprep.subr.mxu0 0.0
    %2502 = vmatpush1.msra.mxu0 0.0
    %2503 = vmatprep.subr.mxu0 0.0
    %2504 = vmatpush1.msra.mxu0 0.0
    %2505 = vmatprep.subr.mxu0 0.0
    %2506 = vmatpush1.msra.mxu0 0.0
    %2507 = vmatprep.subr.mxu0 0.0
    %2508 = vmatpush1.msra.mxu0 0.0
    %2509 = vmatprep.subr.mxu0 0.0
    %2510 = vmatpush1.msra.mxu0 0.0
    %2511 = vmatprep.subr.mxu0 0.0
    %2512 = vmatpush1.msra.mxu0 0.0
    %2513 = vmatprep.subr.mxu0 0.0
    %2514 = vmatpush1.msra.mxu0 0.0
    %2515 = vmatprep.subr.mxu0 0.0
    %2516 = vmatpush1.msra.mxu0 0.0
    %2517 = vmatprep.subr.mxu0 0.0
    %2518 = vmatpush1.msra.mxu0 0.0
    %2519 = vmatprep.subr.mxu0 0.0
    %2520 = vmatpush1.msra.mxu0 0.0
    %2521 = vmatprep.subr.mxu0 0.0
    %2522 = vmatpush1.msra.mxu0 0.0
    %2523 = vmatprep.mubr.f32.mxu0 0.0
    %2524 = vmatmul.mubr.f32.gmra.mrb[0].mxu0 %v2362
    %v2525 = vpop.f32.mrb[0].mxu0
    %v2526 = vadd.f32 %v2456, %v2525
    %v2527 = vpop.f32.mrb[0].mxu0
    %2528 = vdwg.mxu0
    %v2529 = vld [vmem:[#allocation6 + $0x128] sm:$0x1]
    %v2530 = vadd.f32 %v2526, %v2529
    %v2531 = vtanh.pop %v2530
    %v2532 = vmul.f32 %v2531, %v76
    %v2533 = vadd.f32 %v2532, %v77
    %2535 = vrot.lane.b32.xlu0 %v2277, 32
    %v2536 = vpop.permute.xlu0 %2535
    %v2538 = vmul.f32 %v2533, %v2536
    %2540 = vrot.lane.b32.xlu0 %v2533, 64
    %v2541 = vpop.permute.xlu0 %2540
    %v2543 = vmul.f32 %v2533, %v2541
    %2545 = vrot.lane.b32.xlu0 %v2543, 32
    %v2546 = vpop.permute.xlu0 %2545
    %v2548 = vadd.f32 %v2538, %v2546
    %v2549 = vtanh.pop %v2548
    %2551 = vrot.lane.b32.xlu0 %v2549, 64
    %v2552 = vpop.permute.xlu0 %2551
    %v2554 = vmul.f32 %v2533, %v2552
    %v2555 = vld [vmem:[#allocation6 + $0x130] sm:$0x1]
    %2557 = vrot.lane.b32.xlu0 %v2555, 96
    %v2558 = vpop.permute.xlu0 %2557
    %v2560 = vmul.f32 %v2554, %v2558
    %2562 = vrot.lane.b32.xlu0 %v2560, 32
    %v2563 = vpop.permute.xlu0 %2562
    %vm2565 = vcmask 253952
    %v2566 = vsel %vm2565, %v2563, 0.0
    %2567 = vadd.xlane.f32.xlu0 %v2566
    %v2568 = vpop.xlane.xlu0 %2567
    %v2569 = vadd.f32 %v2568, %v2555
    %v2570 = vxor.u32 %v2569, 2147483648
    %v2571 = vmul.f32 %v2570, 1.442695
    %v2572 = vpow.pop %v2571
    %v2573 = vadd.f32 %v2572, 1.0
    %v2574 = vrcp.pop %v2573
    %v2575 = vmul.f32 1.0, %v2574
    %2577 = vset.pattern.permute.xlu0 127
    %2578 = vperm.xlu0 %2577, %v2575
    %v2579 = vpop.permute.xlu0 %2578
    %2582 = vrot.lane.b32.xlu0 %v2554, 32
    %v2583 = vpop.permute.xlu0 %2582
    %v2585 = vsel %vm2385, %v2583, %v2548
    %vm2586 = vcmask 523264
    %v2587 = vsel %vm2586, %v2585, %v2579
    %2588 = vst [vmem:[%s5] sm:$0x1] %v2587
    // Predicated region
    $region30: #{_forward_impl.1} parent=1 // pred_check
      _
    $region31: #{_forward_impl.1} parent=1 // pred_check_branch
      %2590 = sbr.rel (0) target = $region33
    $region32: #{_forward_impl.1} parent=1 // pred_region
      _
    $region33: #{_forward_impl.1} parent=1 // pred_fallthru
      _
    // Predicated region
    $region34: #{_forward_impl.1} parent=1 // pred_check
      _
    $region35: #{_forward_impl.1} parent=1 // pred_check_branch
      %2592 = sbr.rel (0) target = $region37
    $region36: #{_forward_impl.1} parent=1 // pred_region
      _
    $region37: #{_forward_impl.1} parent=1 // pred_fallthru
      _
    %2593 = vsyncpa [#allocation5], 1
    %2594 = vsyncpa [#allocation7], 1

</llo_original>
